<compile_context>
chip_gen: v6e
topology: v6e:2x2x1
jax: 0.10.0
libtpu: 0.0.40
codegen_flags: <defaults>
</compile_context>

<pallas_src>
import math

import jax
import jax.numpy as jnp
from jax.experimental import pallas as pl
from jax.experimental.pallas import tpu as pltpu

D = 768  # fixed by nn.Linear(768, 768)


def _round_up(x, m):
    return (x + m - 1) // m * m


def _attention_kernel(x_ref, bias0_ref, wqk_ref, wv_ref, out_ref):
    # x_ref:     (B_blk, S, D) bf16   raw input slab (no K/V projection needed)
    # bias0_ref: (B_blk, 1)    f32    additive mask bias for query row 0 (0 or -inf)
    # wqk_ref:   (D, D)        bf16   (Wq^T / sqrt(D)) @ Wk
    # wv_ref:    (D, D)        bf16   Wv^T
    # out_ref:   (B_blk, D)    f32    attention[:, 0, :] for this slab
    x = x_ref[...]                                      # (B_blk, S, D) bf16
    x0 = x[:, 0, :]                                     # (B_blk, D)    bf16

    # t[b] = x0[b] @ Wqk  (MXU: bf16 x bf16 -> f32 accumulate).
    t = jnp.dot(x0, wqk_ref[...], preferred_element_type=jnp.float32)   # (B_blk, D) f32

    # scores[b, s] = <t[b], x[b, s]>  -- lane reduction against raw x (no K projection,
    # no K transpose, no (S, S) score matrix).  Elementwise math in f32.
    xf = x.astype(jnp.float32)                          # (B_blk, S, D) f32
    scores = jnp.sum(t[:, None, :] * xf, axis=-1)       # (B_blk, S)

    # masked_fill(mask == 0, -inf) for query row 0, as a precomputed additive bias.
    scores = scores + bias0_ref[...]

    # softmax over the key axis (single query row per example).
    smax = jnp.max(scores, axis=-1, keepdims=True)
    e = jnp.exp(scores - smax)
    denom = jnp.sum(e, axis=-1, keepdims=True)
    attn = e * pl.reciprocal(denom, approx=True)        # (B_blk, S) f32

    # ctx[b, :] = sum_s attn[b, s] * x[b, s, :]  -- sublane reduction over S.
    ctx = jnp.sum(attn[:, :, None] * xf, axis=1)        # (B_blk, D) f32

    # out[b] = ctx[b] @ Wv^T  (V projection deferred until after attention weighting).
    out = jnp.dot(ctx.astype(jnp.bfloat16), wv_ref[...],
                  preferred_element_type=jnp.float32)   # (B_blk, D) f32
    out_ref[...] = out.astype(out_ref.dtype)


def attention_layer_pallas(b_in, mask, wq, wk, wv, *, b_blk=128):
    """b_in: (B, S, 768); mask: (B, S) of 0/1; w*: (768, 768) PyTorch (out, in) layout."""
    B, S, d = b_in.shape
    assert d == D
    scale = 1.0 / math.sqrt(D)

    # ---- trace-time weight algebra (f32), then cast MXU operands to bf16 ----
    # scores = x0 @ [(Wq^T * scale) @ Wk] @ x^T     (exact refactor of q0 . k_s)
    # out    = (attn-weighted sum of x) @ Wv^T      (exact refactor of attn . v)
    wq_f = wq.astype(jnp.float32)
    wk_f = wk.astype(jnp.float32)
    wqk = ((wq_f.T * scale) @ wk_f).astype(jnp.bfloat16)        # (D, D)
    wv_t = wv.astype(jnp.float32).T.astype(jnp.bfloat16)        # (D, D)

    # Additive mask bias for query row 0 (only mask[:, 0] affects the returned row).
    bias0 = jnp.where(mask[:, 0:1] == 0, -jnp.inf, 0.0).astype(jnp.float32)   # (B, 1)

    # ---- batch blocking ----
    b_blk = max(8, min(_round_up(b_blk, 8), _round_up(B, 8)))
    # Prefer >= 2 grid steps when the batch allows it (pipelining; 2-TC sharding on v7x).
    if B > 8 and _round_up(B, b_blk) // b_blk < 2:
        b_blk = max(8, _round_up((B + 1) // 2, 8))
    B_pad = _round_up(B, b_blk)

    x = b_in.astype(jnp.bfloat16)                       # bf16 MXU operand; halves x DMA
    if B_pad != B:
        x = jnp.concatenate([x, jnp.zeros((B_pad - B, S, D), x.dtype)], axis=0)
        bias0 = jnp.concatenate(
            [bias0, jnp.zeros((B_pad - B, 1), bias0.dtype)], axis=0)  # padded rows finite

    grid = (B_pad // b_blk,)

    flops = (2 * B_pad * D * D          # t = x0 @ Wqk
             + 2 * B_pad * D * D        # out = ctx @ Wv^T
             + 4 * B_pad * S * D)       # scores + ctx reductions
    bytes_accessed = (2 * B_pad * S * D      # x slab (bf16)
                      + 4 * B_pad            # mask bias
                      + 2 * 2 * D * D        # two bf16 weight operands
                      + 4 * B_pad * D)       # f32 output

    out = pl.pallas_call(
        _attention_kernel,
        out_shape=jax.ShapeDtypeStruct((B_pad, D), b_in.dtype),
        grid_spec=pltpu.PrefetchScalarGridSpec(
            num_scalar_prefetch=0,
            grid=grid,
            in_specs=[
                pl.BlockSpec((b_blk, S, D), lambda b: (b, 0, 0)),   # x slab (bf16)
                pl.BlockSpec((b_blk, 1), lambda b: (b, 0)),         # mask bias, row 0
                pl.BlockSpec((D, D), lambda b: (0, 0)),             # Wqk (grid-invariant)
                pl.BlockSpec((D, D), lambda b: (0, 0)),             # Wv^T (grid-invariant)
            ],
            out_specs=pl.BlockSpec((b_blk, D), lambda b: (b, 0)),   # lane-dense 768-wide
        ),
        compiler_params=pltpu.CompilerParams(
            dimension_semantics=("parallel",),    # batch axis shards across v7x's 2 TCs
            vmem_limit_bytes=32 << 20,            # ~15 MiB working set @ b_blk=128
        ),
        cost_estimate=pl.CostEstimate(
            flops=int(flops),
            transcendentals=int(B_pad * S + B_pad),
            bytes_accessed=int(bytes_accessed),
        ),
    )(x, bias0, wqk, wv_t)

    return out[:B]   # == attention[:, 0, :]


def attention_layer_ref(b_in, mask, wq, wk, wv):
    """Pure-JAX reference matching the PyTorch forward exactly."""
    scale = 1.0 / math.sqrt(D)
    q = jnp.einsum("bsd,ed->bse", b_in, wq)
    k = jnp.einsum("bsd,ed->bse", b_in, wk)
    v = jnp.einsum("bsd,ed->bse", b_in, wv)
    att = jnp.einsum("bqd,bkd->bqk", q, k) * scale
    m = mask[:, :, None]
    att = jnp.where(m == 0.0, -jnp.inf, att)
    att = jax.nn.softmax(att, axis=-1)
    out = jnp.einsum("bqk,bkd->bqd", att, v)
    return out[:, 0, :]


if __name__ == "__main__":
    key = jax.random.PRNGKey(0)
    k_x, k_m, k_q, k_k, k_v = jax.random.split(key, 5)

    B, S = 2, 8
    b_in = jax.random.normal(k_x, (B, S, D), dtype=jnp.float32)

    # 0/1 mask; keep position 0 unmasked so row 0 (the returned row) is well-defined.
    mask = (jax.random.uniform(k_m, (B, S)) > 0.3).astype(jnp.float32)
    mask = mask.at[:, 0].set(1.0)

    # Deterministic "Linear(768, 768, bias=False)" weights, PyTorch layout (out, in).
    bound = 1.0 / math.sqrt(D)
    wq = jax.random.uniform(k_q, (D, D), minval=-bound, maxval=bound, dtype=jnp.float32)
    wk = jax.random.uniform(k_k, (D, D), minval=-bound, maxval=bound, dtype=jnp.float32)
    wv = jax.random.uniform(k_v, (D, D), minval=-bound, maxval=bound, dtype=jnp.float32)

    pre = attention_layer_pallas(b_in, mask, wq, wk, wv)
    pre = jax.block_until_ready(pre)

    ref = attention_layer_ref(b_in, mask, wq, wk, wv)
    assert pre.shape == (B, D)
    # bf16 MXU operands (f32 accumulation) -> looser tolerance than the all-f32 version.
    assert jnp.allclose(pre, ref, atol=3e-2, rtol=3e-2), "mismatch vs reference"

    print("KERNEL_OK")
</pallas_src>

<mosaic_0001>
module attributes {stable_mosaic.version = 11 : i64} {
  func.func @_attention_kernel(%arg0: i32, %arg1: memref<8x8x768xbf16, #tpu.memory_space<vmem>>, %arg2: memref<8x1xf32, #tpu.memory_space<vmem>>, %arg3: memref<768x768xbf16, #tpu.memory_space<vmem>>, %arg4: memref<768x768xbf16, #tpu.memory_space<vmem>>, %arg5: memref<8x768xf32, #tpu.memory_space<vmem>>) attributes {dimension_semantics = [#tpu.dimension_semantics<parallel>], iteration_bounds = array<i64: 1>, scalar_prefetch = 0 : i64, scratch_operands = 0 : i64, tpu.core_type = #tpu.core_type<tc>, window_params = [{transform_indices = @transform_0, window_bounds = array<i64: 8, 8, 768>}, {transform_indices = @transform_1, window_bounds = array<i64: 8, 1>}, {pipeline_mode = #tpu.pipeline_mode<synchronous>, transform_indices = @transform_2, window_bounds = array<i64: 768, 768>}, {pipeline_mode = #tpu.pipeline_mode<synchronous>, transform_indices = @transform_3, window_bounds = array<i64: 768, 768>}, {transform_indices = @transform_4, window_bounds = array<i64: 8, 768>}]} {
    %c0 = arith.constant 0 : index
    %c0_0 = arith.constant 0 : index
    %c0_1 = arith.constant 0 : index
    %0 = vector.load %arg1[%c0, %c0_0, %c0_1] : memref<8x8x768xbf16, #tpu.memory_space<vmem>>, vector<8x8x768xbf16>
    %1 = vector.extract_strided_slice %0 {offsets = [0, 0, 0], sizes = [8, 1, 768], strides = [1, 1, 1]} : vector<8x8x768xbf16> to vector<8x1x768xbf16>
    %2 = vector.shape_cast %1 : vector<8x1x768xbf16> to vector<8x768xbf16>
    %c0_2 = arith.constant 0 : index
    %c0_3 = arith.constant 0 : index
    %3 = vector.load %arg3[%c0_2, %c0_3] : memref<768x768xbf16, #tpu.memory_space<vmem>>, vector<768x768xbf16>
    %cst = arith.constant dense<0.000000e+00> : vector<8x768xf32>
    %4 = tpu.matmul %2, %3, %cst {dimension_numbers = #tpu.dot_dimension_numbers<[1], [0], [0], [1], [0, 0, 1, 1], [], []>} : vector<8x768xbf16>, vector<768x768xbf16>, vector<8x768xf32> -> vector<8x768xf32>
    %5 = arith.extf %0 : vector<8x8x768xbf16> to vector<8x8x768xf32>
    %6 = vector.shape_cast %4 : vector<8x768xf32> to vector<8x1x768xf32>
    %7 = vector.broadcast %6 : vector<8x1x768xf32> to vector<8x8x768xf32>
    %8 = arith.mulf %7, %5 : vector<8x8x768xf32>
    %cst_4 = arith.constant dense<0.000000e+00> : vector<8x8xf32>
    %9 = vector.multi_reduction <add>, %8, %cst_4 [2] : vector<8x8x768xf32> to vector<8x8xf32>
    %c0_5 = arith.constant 0 : index
    %c0_6 = arith.constant 0 : index
    %10 = vector.load %arg2[%c0_5, %c0_6] : memref<8x1xf32, #tpu.memory_space<vmem>>, vector<8x1xf32>
    %11 = vector.broadcast %10 : vector<8x1xf32> to vector<8x8xf32>
    %12 = arith.addf %9, %11 : vector<8x8xf32>
    %cst_7 = arith.constant dense<0xFF800000> : vector<8xf32>
    %13 = vector.multi_reduction <maximumf>, %12, %cst_7 [1] : vector<8x8xf32> to vector<8xf32>
    %14 = vector.shape_cast %13 : vector<8xf32> to vector<8x1xf32>
    %15 = vector.broadcast %14 : vector<8x1xf32> to vector<8x8xf32>
    %16 = arith.subf %12, %15 : vector<8x8xf32>
    %17 = math.exp %16 : vector<8x8xf32>
    %cst_8 = arith.constant dense<0.000000e+00> : vector<8xf32>
    %18 = vector.multi_reduction <add>, %17, %cst_8 [1] : vector<8x8xf32> to vector<8xf32>
    %19 = vector.shape_cast %18 : vector<8xf32> to vector<8x1xf32>
    %20 = tpu.reciprocal %19 {approx = true} : vector<8x1xf32> -> vector<8x1xf32>
    %21 = vector.broadcast %20 : vector<8x1xf32> to vector<8x8xf32>
    %22 = arith.mulf %17, %21 : vector<8x8xf32>
    %23 = vector.shape_cast %22 : vector<8x8xf32> to vector<8x8x1xf32>
    %24 = vector.broadcast %23 : vector<8x8x1xf32> to vector<8x8x768xf32>
    %25 = arith.mulf %24, %5 : vector<8x8x768xf32>
    %cst_9 = arith.constant dense<0.000000e+00> : vector<8x768xf32>
    %26 = vector.multi_reduction <add>, %25, %cst_9 [1] : vector<8x8x768xf32> to vector<8x768xf32>
    %27 = arith.truncf %26 : vector<8x768xf32> to vector<8x768xbf16>
    %c0_10 = arith.constant 0 : index
    %c0_11 = arith.constant 0 : index
    %28 = vector.load %arg4[%c0_10, %c0_11] : memref<768x768xbf16, #tpu.memory_space<vmem>>, vector<768x768xbf16>
    %cst_12 = arith.constant dense<0.000000e+00> : vector<8x768xf32>
    %29 = tpu.matmul %27, %28, %cst_12 {dimension_numbers = #tpu.dot_dimension_numbers<[1], [0], [0], [1], [0, 0, 1, 1], [], []>} : vector<8x768xbf16>, vector<768x768xbf16>, vector<8x768xf32> -> vector<8x768xf32>
    %c0_13 = arith.constant 0 : index
    %c0_14 = arith.constant 0 : index
    %30 = vector.load %arg5[%c0_13, %c0_14] : memref<8x768xf32, #tpu.memory_space<vmem>>, vector<8x768xf32>
    tpu.vector_store %arg5[%c0_13, %c0_14], %29 {strides = array<i32>} : memref<8x768xf32, #tpu.memory_space<vmem>>, vector<8x768xf32>,
    return
  }
  func.func @transform_0(%arg0: i32) -> (i32, i32, i32) {
    %c0_i32 = arith.constant 0 : i32
    %c0_i32_0 = arith.constant 0 : i32
    %c0_i32_1 = arith.constant 0 : i32
    return %arg0, %c0_i32, %c0_i32_0 : i32, i32, i32
  }
  func.func @transform_1(%arg0: i32) -> (i32, i32) {
    %c0_i32 = arith.constant 0 : i32
    %c0_i32_0 = arith.constant 0 : i32
    return %arg0, %c0_i32 : i32, i32
  }
  func.func @transform_2(%arg0: i32) -> (i32, i32) {
    %c0_i32 = arith.constant 0 : i32
    %c0_i32_0 = arith.constant 0 : i32
    %c0_i32_1 = arith.constant 0 : i32
    return %c0_i32, %c0_i32_0 : i32, i32
  }
  func.func @transform_3(%arg0: i32) -> (i32, i32) {
    %c0_i32 = arith.constant 0 : i32
    %c0_i32_0 = arith.constant 0 : i32
    %c0_i32_1 = arith.constant 0 : i32
    return %c0_i32, %c0_i32_0 : i32, i32
  }
  func.func @transform_4(%arg0: i32) -> (i32, i32) {
    %c0_i32 = arith.constant 0 : i32
    %c0_i32_0 = arith.constant 0 : i32
    return %arg0, %c0_i32 : i32, i32
  }
}

</mosaic_0001>

<llo_original>
// kernel: tpu_custom_call.1
$region0: #{tpu_custom_call.1}
  #allocation0 [shape = 'u32[]', space=smem, size = 0x4, offset = 0x4, fixed_abs, tag = 'smem constant byte address 0x4 - core index']
  #allocation1 [shape = 'u32[144,128]{1,0:T(1,128)}', space=vmem, size = 0x12000, scoped, tag = 'internal scratch']
  %s0 = inlined_call_operand.hbm [shape: bf16[8,8,768], index: 0, kind: input, shape index: {}]
  %s1 = inlined_call_operand.vmem [shape: f32[8,1], index: 1, kind: input, shape index: {}]
  %s2 = inlined_call_operand.hbm [shape: bf16[768,768], index: 2, kind: input, shape index: {}]
  %s3 = inlined_call_operand.hbm [shape: bf16[768,768], index: 3, kind: input, shape index: {}]
  %s4 = inlined_call_operand.hbm [shape: f32[8,768], index: 4, kind: output, shape index: {}]
  %s5 = sld [smem:[#allocation0]]
  $region38: #{tpu_custom_call.1} parent=0
    _
  %s7 = ssub.s32 1, %s5
  %s8 = scalar_select 0, %s7, %s5
  $region1: #{tpu_custom_call.1} parent=0
    #allocation2 [shape = 'u8[98304]{0}', space=vmem, size = 0x18000, scoped, tag = 'input window, operand 0, single buffered']
    #allocation3 [shape = 's32[1]{0}', space=sflag, size = 0x4, scoped, tag = 'scoped memory for tpu_custom_call.1']
    #allocation4 [shape = 's32[1]{0}', space=sflag, size = 0x4, scoped, tag = 'scoped memory for tpu_custom_call.1']
    #allocation5 [shape = 'u8[1179648]{0}', space=vmem, size = 0x120000, scoped, tag = 'input window, operand 2, single buffered']
    #allocation6 [shape = 's32[1]{0}', space=sflag, size = 0x4, scoped, tag = 'scoped memory for tpu_custom_call.1']
    #allocation7 [shape = 'u8[1179648]{0}', space=vmem, size = 0x120000, scoped, tag = 'input window, operand 3, single buffered']
    #allocation8 [shape = 'u8[24576]{0}', space=vmem, size = 0x6000, scoped, tag = 'output window, operand 0, single buffered']
    %9 = vsyncpa [#allocation3], 0
    %10 = vsyncpa [#allocation6], 0
    %11 = vsyncpa [#allocation4], 0
    // Predicated region
    $region2: #{tpu_custom_call.1} parent=1 // pred_check
      _
    $region3: #{tpu_custom_call.1} parent=1 // pred_check_branch
      %13 = sbr.rel (0) target = $region5
    $region4: #{tpu_custom_call.1} parent=1 // pred_region
      %s15 = ssub.s32 3072, 3072
      %16 = vsyncadd [#allocation3], %s15
      %s17 = sshll.u32 [#allocation2], 4
      %s18 = int_to_ptr.vmem [resolvable:$true] %s17
      %23 = dma.hbm_to_vmem [thread:$0]  %s0, 3072, %s18, [#allocation3], 384, 384, 24
    $region5: #{tpu_custom_call.1} parent=1 // pred_fallthru
      _
    // Predicated region
    $region6: #{tpu_custom_call.1} parent=1 // pred_check
      _
    $region7: #{tpu_custom_call.1} parent=1 // pred_check_branch
      %25 = sbr.rel (0) target = $region9
    $region8: #{tpu_custom_call.1} parent=1 // pred_region
      _
    $region9: #{tpu_custom_call.1} parent=1 // pred_fallthru
      _
    // Predicated region
    $region10: #{tpu_custom_call.1} parent=1 // pred_check
      _
    $region11: #{tpu_custom_call.1} parent=1 // pred_check_branch
      %27 = sbr.rel (0) target = $region13
    $region12: #{tpu_custom_call.1} parent=1 // pred_region
      %s29 = ssub.s32 36864, 36864
      %30 = vsyncadd [#allocation6], %s29
      %s31 = sshll.u32 [#allocation5], 4
      %s32 = int_to_ptr.vmem [resolvable:$true] %s31
      %37 = dma.hbm_to_vmem [thread:$0]  %s2, 36864, %s32, [#allocation6], 384, 384, 24
    $region13: #{tpu_custom_call.1} parent=1 // pred_fallthru
      _
    // Predicated region
    $region14: #{tpu_custom_call.1} parent=1 // pred_check
      _
    $region15: #{tpu_custom_call.1} parent=1 // pred_check_branch
      %39 = sbr.rel (0) target = $region17
    $region16: #{tpu_custom_call.1} parent=1 // pred_region
      %s41 = ssub.s32 36864, 36864
      %42 = vsyncadd [#allocation6], %s41
      %s43 = sshll.u32 [#allocation7], 4
      %s44 = int_to_ptr.vmem [resolvable:$true] %s43
      %49 = dma.hbm_to_vmem [thread:$0]  %s3, 36864, %s44, [#allocation6], 384, 384, 24
    $region17: #{tpu_custom_call.1} parent=1 // pred_fallthru
      _
    // Predicated region
    $region18: #{tpu_custom_call.1} parent=1 // pred_check
      _
    $region19: #{tpu_custom_call.1} parent=1 // pred_check_branch
      %51 = sbr.rel (0) target = $region21
    $region20: #{tpu_custom_call.1} parent=1 // pred_region
      %52 = dma.done [#allocation3], 3072
    $region21: #{tpu_custom_call.1} parent=1 // pred_fallthru
      _
    // Predicated region
    $region22: #{tpu_custom_call.1} parent=1 // pred_check
      _
    $region23: #{tpu_custom_call.1} parent=1 // pred_check_branch
      %54 = sbr.rel (0) target = $region25
    $region24: #{tpu_custom_call.1} parent=1 // pred_region
      %55 = dma.done [#allocation6], 36864
    $region25: #{tpu_custom_call.1} parent=1 // pred_fallthru
      _
    // Predicated region
    $region26: #{tpu_custom_call.1} parent=1 // pred_check
      _
    $region27: #{tpu_custom_call.1} parent=1 // pred_check_branch
      %57 = sbr.rel (0) target = $region29
    $region28: #{tpu_custom_call.1} parent=1 // pred_region
      %58 = dma.done [#allocation6], 36864
    $region29: #{tpu_custom_call.1} parent=1 // pred_fallthru
      _
    %v59 = vld [vmem:[#allocation2] sm:$0xff]
    %v60 = vld [vmem:[#allocation2 + $0x8] sm:$0xff]
    %v61 = vld [vmem:[#allocation2 + $0x10] sm:$0xff]
    %v62 = vld [vmem:[#allocation2 + $0x18] sm:$0xff]
    %v63 = vld [vmem:[#allocation2 + $0x20] sm:$0xff]
    %v64 = vld [vmem:[#allocation2 + $0x28] sm:$0xff]
    %v65 = vld [vmem:[#allocation2 + $0x30] sm:$0xff]
    %v66 = vld [vmem:[#allocation2 + $0x38] sm:$0xff]
    %v67 = vld [vmem:[#allocation2 + $0x40] sm:$0xff]
    %v68 = vld [vmem:[#allocation2 + $0x48] sm:$0xff]
    %v69 = vld [vmem:[#allocation2 + $0x50] sm:$0xff]
    %v70 = vld [vmem:[#allocation2 + $0x58] sm:$0xff]
    %v71 = vld [vmem:[#allocation2 + $0x60] sm:$0xff]
    %v72 = vld [vmem:[#allocation2 + $0x68] sm:$0xff]
    %v73 = vld [vmem:[#allocation2 + $0x70] sm:$0xff]
    %v74 = vld [vmem:[#allocation2 + $0x78] sm:$0xff]
    %v75 = vld [vmem:[#allocation2 + $0x80] sm:$0xff]
    %v76 = vld [vmem:[#allocation2 + $0x88] sm:$0xff]
    %v77 = vld [vmem:[#allocation2 + $0x90] sm:$0xff]
    %v78 = vld [vmem:[#allocation2 + $0x98] sm:$0xff]
    %v79 = vld [vmem:[#allocation2 + $0xa0] sm:$0xff]
    %v80 = vld [vmem:[#allocation2 + $0xa8] sm:$0xff]
    %v81 = vld [vmem:[#allocation2 + $0xb0] sm:$0xff]
    %v82 = vld [vmem:[#allocation2 + $0xb8] sm:$0xff]
    %v83 = vld [vmem:[#allocation5] sm:$0xff]
    %v84 = vld [vmem:[#allocation5 + $0x8] sm:$0xff]
    %v85 = vld [vmem:[#allocation5 + $0x10] sm:$0xff]
    %v86 = vld [vmem:[#allocation5 + $0x18] sm:$0xff]
    %v87 = vld [vmem:[#allocation5 + $0x20] sm:$0xff]
    %v88 = vld [vmem:[#allocation5 + $0x28] sm:$0xff]
    %v89 = vld [vmem:[#allocation5 + $0x30] sm:$0xff]
    %v90 = vld [vmem:[#allocation5 + $0x38] sm:$0xff]
    %v91 = vld [vmem:[#allocation5 + $0x40] sm:$0xff]
    %v92 = vld [vmem:[#allocation5 + $0x48] sm:$0xff]
    %v93 = vld [vmem:[#allocation5 + $0x50] sm:$0xff]
    %v94 = vld [vmem:[#allocation5 + $0x58] sm:$0xff]
    %v95 = vld [vmem:[#allocation5 + $0x60] sm:$0xff]
    %v96 = vld [vmem:[#allocation5 + $0x68] sm:$0xff]
    %v97 = vld [vmem:[#allocation5 + $0x70] sm:$0xff]
    %v98 = vld [vmem:[#allocation5 + $0x78] sm:$0xff]
    %v99 = vld [vmem:[#allocation5 + $0x80] sm:$0xff]
    %v100 = vld [vmem:[#allocation5 + $0x88] sm:$0xff]
    %v101 = vld [vmem:[#allocation5 + $0x90] sm:$0xff]
    %v102 = vld [vmem:[#allocation5 + $0x98] sm:$0xff]
    %v103 = vld [vmem:[#allocation5 + $0xa0] sm:$0xff]
    %v104 = vld [vmem:[#allocation5 + $0xa8] sm:$0xff]
    %v105 = vld [vmem:[#allocation5 + $0xb0] sm:$0xff]
    %v106 = vld [vmem:[#allocation5 + $0xb8] sm:$0xff]
    %v107 = vld [vmem:[#allocation5 + $0xc0] sm:$0xff]
    %v108 = vld [vmem:[#allocation5 + $0xc8] sm:$0xff]
    %v109 = vld [vmem:[#allocation5 + $0xd0] sm:$0xff]
    %v110 = vld [vmem:[#allocation5 + $0xd8] sm:$0xff]
    %v111 = vld [vmem:[#allocation5 + $0xe0] sm:$0xff]
    %v112 = vld [vmem:[#allocation5 + $0xe8] sm:$0xff]
    %v113 = vld [vmem:[#allocation5 + $0xf0] sm:$0xff]
    %v114 = vld [vmem:[#allocation5 + $0xf8] sm:$0xff]
    %v115 = vld [vmem:[#allocation5 + $0x100] sm:$0xff]
    %v116 = vld [vmem:[#allocation5 + $0x108] sm:$0xff]
    %v117 = vld [vmem:[#allocation5 + $0x110] sm:$0xff]
    %v118 = vld [vmem:[#allocation5 + $0x118] sm:$0xff]
    %v119 = vld [vmem:[#allocation5 + $0x120] sm:$0xff]
    %v120 = vld [vmem:[#allocation5 + $0x128] sm:$0xff]
    %v121 = vld [vmem:[#allocation5 + $0x130] sm:$0xff]
    %v122 = vld [vmem:[#allocation5 + $0x138] sm:$0xff]
    %v123 = vld [vmem:[#allocation5 + $0x140] sm:$0xff]
    %v124 = vld [vmem:[#allocation5 + $0x148] sm:$0xff]
    %v125 = vld [vmem:[#allocation5 + $0x150] sm:$0xff]
    %v126 = vld [vmem:[#allocation5 + $0x158] sm:$0xff]
    %v127 = vld [vmem:[#allocation5 + $0x160] sm:$0xff]
    %v128 = vld [vmem:[#allocation5 + $0x168] sm:$0xff]
    %v129 = vld [vmem:[#allocation5 + $0x170] sm:$0xff]
    %v130 = vld [vmem:[#allocation5 + $0x178] sm:$0xff]
    %v131 = vld [vmem:[#allocation5 + $0x180] sm:$0xff]
    %v132 = vld [vmem:[#allocation5 + $0x188] sm:$0xff]
    %v133 = vld [vmem:[#allocation5 + $0x190] sm:$0xff]
    %v134 = vld [vmem:[#allocation5 + $0x198] sm:$0xff]
    %v135 = vld [vmem:[#allocation5 + $0x1a0] sm:$0xff]
    %v136 = vld [vmem:[#allocation5 + $0x1a8] sm:$0xff]
    %v137 = vld [vmem:[#allocation5 + $0x1b0] sm:$0xff]
    %v138 = vld [vmem:[#allocation5 + $0x1b8] sm:$0xff]
    %v139 = vld [vmem:[#allocation5 + $0x1c0] sm:$0xff]
    %v140 = vld [vmem:[#allocation5 + $0x1c8] sm:$0xff]
    %v141 = vld [vmem:[#allocation5 + $0x1d0] sm:$0xff]
    %v142 = vld [vmem:[#allocation5 + $0x1d8] sm:$0xff]
    %v143 = vld [vmem:[#allocation5 + $0x1e0] sm:$0xff]
    %v144 = vld [vmem:[#allocation5 + $0x1e8] sm:$0xff]
    %v145 = vld [vmem:[#allocation5 + $0x1f0] sm:$0xff]
    %v146 = vld [vmem:[#allocation5 + $0x1f8] sm:$0xff]
    %v147 = vld [vmem:[#allocation5 + $0x200] sm:$0xff]
    %v148 = vld [vmem:[#allocation5 + $0x208] sm:$0xff]
    %v149 = vld [vmem:[#allocation5 + $0x210] sm:$0xff]
    %v150 = vld [vmem:[#allocation5 + $0x218] sm:$0xff]
    %v151 = vld [vmem:[#allocation5 + $0x220] sm:$0xff]
    %v152 = vld [vmem:[#allocation5 + $0x228] sm:$0xff]
    %v153 = vld [vmem:[#allocation5 + $0x230] sm:$0xff]
    %v154 = vld [vmem:[#allocation5 + $0x238] sm:$0xff]
    %v155 = vld [vmem:[#allocation5 + $0x240] sm:$0xff]
    %v156 = vld [vmem:[#allocation5 + $0x248] sm:$0xff]
    %v157 = vld [vmem:[#allocation5 + $0x250] sm:$0xff]
    %v158 = vld [vmem:[#allocation5 + $0x258] sm:$0xff]
    %v159 = vld [vmem:[#allocation5 + $0x260] sm:$0xff]
    %v160 = vld [vmem:[#allocation5 + $0x268] sm:$0xff]
    %v161 = vld [vmem:[#allocation5 + $0x270] sm:$0xff]
    %v162 = vld [vmem:[#allocation5 + $0x278] sm:$0xff]
    %v163 = vld [vmem:[#allocation5 + $0x280] sm:$0xff]
    %v164 = vld [vmem:[#allocation5 + $0x288] sm:$0xff]
    %v165 = vld [vmem:[#allocation5 + $0x290] sm:$0xff]
    %v166 = vld [vmem:[#allocation5 + $0x298] sm:$0xff]
    %v167 = vld [vmem:[#allocation5 + $0x2a0] sm:$0xff]
    %v168 = vld [vmem:[#allocation5 + $0x2a8] sm:$0xff]
    %v169 = vld [vmem:[#allocation5 + $0x2b0] sm:$0xff]
    %v170 = vld [vmem:[#allocation5 + $0x2b8] sm:$0xff]
    %v171 = vld [vmem:[#allocation5 + $0x2c0] sm:$0xff]
    %v172 = vld [vmem:[#allocation5 + $0x2c8] sm:$0xff]
    %v173 = vld [vmem:[#allocation5 + $0x2d0] sm:$0xff]
    %v174 = vld [vmem:[#allocation5 + $0x2d8] sm:$0xff]
    %v175 = vld [vmem:[#allocation5 + $0x2e0] sm:$0xff]
    %v176 = vld [vmem:[#allocation5 + $0x2e8] sm:$0xff]
    %v177 = vld [vmem:[#allocation5 + $0x2f0] sm:$0xff]
    %v178 = vld [vmem:[#allocation5 + $0x2f8] sm:$0xff]
    %v179 = vld [vmem:[#allocation5 + $0x300] sm:$0xff]
    %v180 = vld [vmem:[#allocation5 + $0x308] sm:$0xff]
    %v181 = vld [vmem:[#allocation5 + $0x310] sm:$0xff]
    %v182 = vld [vmem:[#allocation5 + $0x318] sm:$0xff]
    %v183 = vld [vmem:[#allocation5 + $0x320] sm:$0xff]
    %v184 = vld [vmem:[#allocation5 + $0x328] sm:$0xff]
    %v185 = vld [vmem:[#allocation5 + $0x330] sm:$0xff]
    %v186 = vld [vmem:[#allocation5 + $0x338] sm:$0xff]
    %v187 = vld [vmem:[#allocation5 + $0x340] sm:$0xff]
    %v188 = vld [vmem:[#allocation5 + $0x348] sm:$0xff]
    %v189 = vld [vmem:[#allocation5 + $0x350] sm:$0xff]
    %v190 = vld [vmem:[#allocation5 + $0x358] sm:$0xff]
    %v191 = vld [vmem:[#allocation5 + $0x360] sm:$0xff]
    %v192 = vld [vmem:[#allocation5 + $0x368] sm:$0xff]
    %v193 = vld [vmem:[#allocation5 + $0x370] sm:$0xff]
    %v194 = vld [vmem:[#allocation5 + $0x378] sm:$0xff]
    %v195 = vld [vmem:[#allocation5 + $0x380] sm:$0xff]
    %v196 = vld [vmem:[#allocation5 + $0x388] sm:$0xff]
    %v197 = vld [vmem:[#allocation5 + $0x390] sm:$0xff]
    %v198 = vld [vmem:[#allocation5 + $0x398] sm:$0xff]
    %v199 = vld [vmem:[#allocation5 + $0x3a0] sm:$0xff]
    %v200 = vld [vmem:[#allocation5 + $0x3a8] sm:$0xff]
    %v201 = vld [vmem:[#allocation5 + $0x3b0] sm:$0xff]
    %v202 = vld [vmem:[#allocation5 + $0x3b8] sm:$0xff]
    %v203 = vld [vmem:[#allocation5 + $0x3c0] sm:$0xff]
    %v204 = vld [vmem:[#allocation5 + $0x3c8] sm:$0xff]
    %v205 = vld [vmem:[#allocation5 + $0x3d0] sm:$0xff]
    %v206 = vld [vmem:[#allocation5 + $0x3d8] sm:$0xff]
    %v207 = vld [vmem:[#allocation5 + $0x3e0] sm:$0xff]
    %v208 = vld [vmem:[#allocation5 + $0x3e8] sm:$0xff]
    %v209 = vld [vmem:[#allocation5 + $0x3f0] sm:$0xff]
    %v210 = vld [vmem:[#allocation5 + $0x3f8] sm:$0xff]
    %v211 = vld [vmem:[#allocation5 + $0x400] sm:$0xff]
    %v212 = vld [vmem:[#allocation5 + $0x408] sm:$0xff]
    %v213 = vld [vmem:[#allocation5 + $0x410] sm:$0xff]
    %v214 = vld [vmem:[#allocation5 + $0x418] sm:$0xff]
    %v215 = vld [vmem:[#allocation5 + $0x420] sm:$0xff]
    %v216 = vld [vmem:[#allocation5 + $0x428] sm:$0xff]
    %v217 = vld [vmem:[#allocation5 + $0x430] sm:$0xff]
    %v218 = vld [vmem:[#allocation5 + $0x438] sm:$0xff]
    %v219 = vld [vmem:[#allocation5 + $0x440] sm:$0xff]
    %v220 = vld [vmem:[#allocation5 + $0x448] sm:$0xff]
    %v221 = vld [vmem:[#allocation5 + $0x450] sm:$0xff]
    %v222 = vld [vmem:[#allocation5 + $0x458] sm:$0xff]
    %v223 = vld [vmem:[#allocation5 + $0x460] sm:$0xff]
    %v224 = vld [vmem:[#allocation5 + $0x468] sm:$0xff]
    %v225 = vld [vmem:[#allocation5 + $0x470] sm:$0xff]
    %v226 = vld [vmem:[#allocation5 + $0x478] sm:$0xff]
    %v227 = vld [vmem:[#allocation5 + $0x480] sm:$0xff]
    %v228 = vld [vmem:[#allocation5 + $0x488] sm:$0xff]
    %v229 = vld [vmem:[#allocation5 + $0x490] sm:$0xff]
    %v230 = vld [vmem:[#allocation5 + $0x498] sm:$0xff]
    %v231 = vld [vmem:[#allocation5 + $0x4a0] sm:$0xff]
    %v232 = vld [vmem:[#allocation5 + $0x4a8] sm:$0xff]
    %v233 = vld [vmem:[#allocation5 + $0x4b0] sm:$0xff]
    %v234 = vld [vmem:[#allocation5 + $0x4b8] sm:$0xff]
    %v235 = vld [vmem:[#allocation5 + $0x4c0] sm:$0xff]
    %v236 = vld [vmem:[#allocation5 + $0x4c8] sm:$0xff]
    %v237 = vld [vmem:[#allocation5 + $0x4d0] sm:$0xff]
    %v238 = vld [vmem:[#allocation5 + $0x4d8] sm:$0xff]
    %v239 = vld [vmem:[#allocation5 + $0x4e0] sm:$0xff]
    %v240 = vld [vmem:[#allocation5 + $0x4e8] sm:$0xff]
    %v241 = vld [vmem:[#allocation5 + $0x4f0] sm:$0xff]
    %v242 = vld [vmem:[#allocation5 + $0x4f8] sm:$0xff]
    %v243 = vld [vmem:[#allocation5 + $0x500] sm:$0xff]
    %v244 = vld [vmem:[#allocation5 + $0x508] sm:$0xff]
    %v245 = vld [vmem:[#allocation5 + $0x510] sm:$0xff]
    %v246 = vld [vmem:[#allocation5 + $0x518] sm:$0xff]
    %v247 = vld [vmem:[#allocation5 + $0x520] sm:$0xff]
    %v248 = vld [vmem:[#allocation5 + $0x528] sm:$0xff]
    %v249 = vld [vmem:[#allocation5 + $0x530] sm:$0xff]
    %v250 = vld [vmem:[#allocation5 + $0x538] sm:$0xff]
    %v251 = vld [vmem:[#allocation5 + $0x540] sm:$0xff]
    %v252 = vld [vmem:[#allocation5 + $0x548] sm:$0xff]
    %v253 = vld [vmem:[#allocation5 + $0x550] sm:$0xff]
    %v254 = vld [vmem:[#allocation5 + $0x558] sm:$0xff]
    %v255 = vld [vmem:[#allocation5 + $0x560] sm:$0xff]
    %v256 = vld [vmem:[#allocation5 + $0x568] sm:$0xff]
    %v257 = vld [vmem:[#allocation5 + $0x570] sm:$0xff]
    %v258 = vld [vmem:[#allocation5 + $0x578] sm:$0xff]
    %v259 = vld [vmem:[#allocation5 + $0x580] sm:$0xff]
    %v260 = vld [vmem:[#allocation5 + $0x588] sm:$0xff]
    %v261 = vld [vmem:[#allocation5 + $0x590] sm:$0xff]
    %v262 = vld [vmem:[#allocation5 + $0x598] sm:$0xff]
    %v263 = vld [vmem:[#allocation5 + $0x5a0] sm:$0xff]
    %v264 = vld [vmem:[#allocation5 + $0x5a8] sm:$0xff]
    %v265 = vld [vmem:[#allocation5 + $0x5b0] sm:$0xff]
    %v266 = vld [vmem:[#allocation5 + $0x5b8] sm:$0xff]
    %v267 = vld [vmem:[#allocation5 + $0x5c0] sm:$0xff]
    %v268 = vld [vmem:[#allocation5 + $0x5c8] sm:$0xff]
    %v269 = vld [vmem:[#allocation5 + $0x5d0] sm:$0xff]
    %v270 = vld [vmem:[#allocation5 + $0x5d8] sm:$0xff]
    %v271 = vld [vmem:[#allocation5 + $0x5e0] sm:$0xff]
    %v272 = vld [vmem:[#allocation5 + $0x5e8] sm:$0xff]
    %v273 = vld [vmem:[#allocation5 + $0x5f0] sm:$0xff]
    %v274 = vld [vmem:[#allocation5 + $0x5f8] sm:$0xff]
    %v275 = vld [vmem:[#allocation5 + $0x600] sm:$0xff]
    %v276 = vld [vmem:[#allocation5 + $0x608] sm:$0xff]
    %v277 = vld [vmem:[#allocation5 + $0x610] sm:$0xff]
    %v278 = vld [vmem:[#allocation5 + $0x618] sm:$0xff]
    %v279 = vld [vmem:[#allocation5 + $0x620] sm:$0xff]
    %v280 = vld [vmem:[#allocation5 + $0x628] sm:$0xff]
    %v281 = vld [vmem:[#allocation5 + $0x630] sm:$0xff]
    %v282 = vld [vmem:[#allocation5 + $0x638] sm:$0xff]
    %v283 = vld [vmem:[#allocation5 + $0x640] sm:$0xff]
    %v284 = vld [vmem:[#allocation5 + $0x648] sm:$0xff]
    %v285 = vld [vmem:[#allocation5 + $0x650] sm:$0xff]
    %v286 = vld [vmem:[#allocation5 + $0x658] sm:$0xff]
    %v287 = vld [vmem:[#allocation5 + $0x660] sm:$0xff]
    %v288 = vld [vmem:[#allocation5 + $0x668] sm:$0xff]
    %v289 = vld [vmem:[#allocation5 + $0x670] sm:$0xff]
    %v290 = vld [vmem:[#allocation5 + $0x678] sm:$0xff]
    %v291 = vld [vmem:[#allocation5 + $0x680] sm:$0xff]
    %v292 = vld [vmem:[#allocation5 + $0x688] sm:$0xff]
    %v293 = vld [vmem:[#allocation5 + $0x690] sm:$0xff]
    %v294 = vld [vmem:[#allocation5 + $0x698] sm:$0xff]
    %v295 = vld [vmem:[#allocation5 + $0x6a0] sm:$0xff]
    %v296 = vld [vmem:[#allocation5 + $0x6a8] sm:$0xff]
    %v297 = vld [vmem:[#allocation5 + $0x6b0] sm:$0xff]
    %v298 = vld [vmem:[#allocation5 + $0x6b8] sm:$0xff]
    %v299 = vld [vmem:[#allocation5 + $0x6c0] sm:$0xff]
    %v300 = vld [vmem:[#allocation5 + $0x6c8] sm:$0xff]
    %v301 = vld [vmem:[#allocation5 + $0x6d0] sm:$0xff]
    %v302 = vld [vmem:[#allocation5 + $0x6d8] sm:$0xff]
    %v303 = vld [vmem:[#allocation5 + $0x6e0] sm:$0xff]
    %v304 = vld [vmem:[#allocation5 + $0x6e8] sm:$0xff]
    %v305 = vld [vmem:[#allocation5 + $0x6f0] sm:$0xff]
    %v306 = vld [vmem:[#allocation5 + $0x6f8] sm:$0xff]
    %v307 = vld [vmem:[#allocation5 + $0x700] sm:$0xff]
    %v308 = vld [vmem:[#allocation5 + $0x708] sm:$0xff]
    %v309 = vld [vmem:[#allocation5 + $0x710] sm:$0xff]
    %v310 = vld [vmem:[#allocation5 + $0x718] sm:$0xff]
    %v311 = vld [vmem:[#allocation5 + $0x720] sm:$0xff]
    %v312 = vld [vmem:[#allocation5 + $0x728] sm:$0xff]
    %v313 = vld [vmem:[#allocation5 + $0x730] sm:$0xff]
    %v314 = vld [vmem:[#allocation5 + $0x738] sm:$0xff]
    %v315 = vld [vmem:[#allocation5 + $0x740] sm:$0xff]
    %v316 = vld [vmem:[#allocation5 + $0x748] sm:$0xff]
    %v317 = vld [vmem:[#allocation5 + $0x750] sm:$0xff]
    %v318 = vld [vmem:[#allocation5 + $0x758] sm:$0xff]
    %v319 = vld [vmem:[#allocation5 + $0x760] sm:$0xff]
    %v320 = vld [vmem:[#allocation5 + $0x768] sm:$0xff]
    %v321 = vld [vmem:[#allocation5 + $0x770] sm:$0xff]
    %v322 = vld [vmem:[#allocation5 + $0x778] sm:$0xff]
    %v323 = vld [vmem:[#allocation5 + $0x780] sm:$0xff]
    %v324 = vld [vmem:[#allocation5 + $0x788] sm:$0xff]
    %v325 = vld [vmem:[#allocation5 + $0x790] sm:$0xff]
    %v326 = vld [vmem:[#allocation5 + $0x798] sm:$0xff]
    %v327 = vld [vmem:[#allocation5 + $0x7a0] sm:$0xff]
    %v328 = vld [vmem:[#allocation5 + $0x7a8] sm:$0xff]
    %v329 = vld [vmem:[#allocation5 + $0x7b0] sm:$0xff]
    %v330 = vld [vmem:[#allocation5 + $0x7b8] sm:$0xff]
    %v331 = vld [vmem:[#allocation5 + $0x7c0] sm:$0xff]
    %v332 = vld [vmem:[#allocation5 + $0x7c8] sm:$0xff]
    %v333 = vld [vmem:[#allocation5 + $0x7d0] sm:$0xff]
    %v334 = vld [vmem:[#allocation5 + $0x7d8] sm:$0xff]
    %v335 = vld [vmem:[#allocation5 + $0x7e0] sm:$0xff]
    %v336 = vld [vmem:[#allocation5 + $0x7e8] sm:$0xff]
    %v337 = vld [vmem:[#allocation5 + $0x7f0] sm:$0xff]
    %v338 = vld [vmem:[#allocation5 + $0x7f8] sm:$0xff]
    %v339 = vld [vmem:[#allocation5 + $0x800] sm:$0xff]
    %v340 = vld [vmem:[#allocation5 + $0x808] sm:$0xff]
    %v341 = vld [vmem:[#allocation5 + $0x810] sm:$0xff]
    %v342 = vld [vmem:[#allocation5 + $0x818] sm:$0xff]
    %v343 = vld [vmem:[#allocation5 + $0x820] sm:$0xff]
    %v344 = vld [vmem:[#allocation5 + $0x828] sm:$0xff]
    %v345 = vld [vmem:[#allocation5 + $0x830] sm:$0xff]
    %v346 = vld [vmem:[#allocation5 + $0x838] sm:$0xff]
    %v347 = vld [vmem:[#allocation5 + $0x840] sm:$0xff]
    %v348 = vld [vmem:[#allocation5 + $0x848] sm:$0xff]
    %v349 = vld [vmem:[#allocation5 + $0x850] sm:$0xff]
    %v350 = vld [vmem:[#allocation5 + $0x858] sm:$0xff]
    %v351 = vld [vmem:[#allocation5 + $0x860] sm:$0xff]
    %v352 = vld [vmem:[#allocation5 + $0x868] sm:$0xff]
    %v353 = vld [vmem:[#allocation5 + $0x870] sm:$0xff]
    %v354 = vld [vmem:[#allocation5 + $0x878] sm:$0xff]
    %v355 = vld [vmem:[#allocation5 + $0x880] sm:$0xff]
    %v356 = vld [vmem:[#allocation5 + $0x888] sm:$0xff]
    %v357 = vld [vmem:[#allocation5 + $0x890] sm:$0xff]
    %v358 = vld [vmem:[#allocation5 + $0x898] sm:$0xff]
    %v359 = vld [vmem:[#allocation5 + $0x8a0] sm:$0xff]
    %v360 = vld [vmem:[#allocation5 + $0x8a8] sm:$0xff]
    %v361 = vld [vmem:[#allocation5 + $0x8b0] sm:$0xff]
    %v362 = vld [vmem:[#allocation5 + $0x8b8] sm:$0xff]
    %v363 = vld [vmem:[#allocation5 + $0x8c0] sm:$0xff]
    %v364 = vld [vmem:[#allocation5 + $0x8c8] sm:$0xff]
    %v365 = vld [vmem:[#allocation5 + $0x8d0] sm:$0xff]
    %v366 = vld [vmem:[#allocation5 + $0x8d8] sm:$0xff]
    %v367 = vld [vmem:[#allocation5 + $0x8e0] sm:$0xff]
    %v368 = vld [vmem:[#allocation5 + $0x8e8] sm:$0xff]
    %v369 = vld [vmem:[#allocation5 + $0x8f0] sm:$0xff]
    %v370 = vld [vmem:[#allocation5 + $0x8f8] sm:$0xff]
    %v395 = vunpack.c.l.b16 %v59
    %v396 = vunpack.c.h.b16 %v59
    %v397 = vunpack.c.l.b16 %v60
    %v398 = vunpack.c.h.b16 %v60
    %v399 = vunpack.c.l.b16 %v61
    %v400 = vunpack.c.h.b16 %v61
    %v401 = vunpack.c.l.b16 %v62
    %v402 = vunpack.c.h.b16 %v62
    %v403 = vunpack.c.l.b16 %v63
    %v404 = vunpack.c.h.b16 %v63
    %v405 = vunpack.c.l.b16 %v64
    %v406 = vunpack.c.h.b16 %v64
    %v407 = vunpack.c.l.b16 %v65
    %v408 = vunpack.c.h.b16 %v65
    %v409 = vunpack.c.l.b16 %v66
    %v410 = vunpack.c.h.b16 %v66
    %v411 = vunpack.c.l.b16 %v67
    %v412 = vunpack.c.h.b16 %v67
    %v413 = vunpack.c.l.b16 %v68
    %v414 = vunpack.c.h.b16 %v68
    %v415 = vunpack.c.l.b16 %v69
    %v416 = vunpack.c.h.b16 %v69
    %v417 = vunpack.c.l.b16 %v70
    %v418 = vunpack.c.h.b16 %v70
    %v419 = vunpack.c.l.b16 %v71
    %v420 = vunpack.c.h.b16 %v71
    %v421 = vunpack.c.l.b16 %v72
    %v422 = vunpack.c.h.b16 %v72
    %v423 = vunpack.c.l.b16 %v73
    %v424 = vunpack.c.h.b16 %v73
    %v425 = vunpack.c.l.b16 %v74
    %v426 = vunpack.c.h.b16 %v74
    %v427 = vunpack.c.l.b16 %v75
    %v428 = vunpack.c.h.b16 %v75
    %v429 = vunpack.c.l.b16 %v76
    %v430 = vunpack.c.h.b16 %v76
    %v431 = vunpack.c.l.b16 %v77
    %v432 = vunpack.c.h.b16 %v77
    %v433 = vunpack.c.l.b16 %v78
    %v434 = vunpack.c.h.b16 %v78
    %v435 = vunpack.c.l.b16 %v79
    %v436 = vunpack.c.h.b16 %v79
    %v437 = vunpack.c.l.b16 %v80
    %v438 = vunpack.c.h.b16 %v80
    %v439 = vunpack.c.l.b16 %v81
    %v440 = vunpack.c.h.b16 %v81
    %v441 = vunpack.c.l.b16 %v82
    %v442 = vunpack.c.h.b16 %v82
    %v443 = vpack.c.b16 %v395, %v395
    %v444 = vpack.c.b16 %v396, %v396
    %v445 = vpack.c.b16 %v397, %v397
    %v446 = vpack.c.b16 %v398, %v398
    %v447 = vpack.c.b16 %v399, %v399
    %v448 = vpack.c.b16 %v400, %v400
    %v449 = vpack.c.b16 %v401, %v401
    %v450 = vpack.c.b16 %v402, %v402
    %v451 = vpack.c.b16 %v403, %v403
    %v452 = vpack.c.b16 %v404, %v404
    %v453 = vpack.c.b16 %v405, %v405
    %v454 = vpack.c.b16 %v406, %v406
    %v455 = vpack.c.b16 %v407, %v407
    %v456 = vpack.c.b16 %v408, %v408
    %v457 = vpack.c.b16 %v409, %v409
    %v458 = vpack.c.b16 %v410, %v410
    %v459 = vpack.c.b16 %v411, %v411
    %v460 = vpack.c.b16 %v412, %v412
    %v461 = vpack.c.b16 %v413, %v413
    %v462 = vpack.c.b16 %v414, %v414
    %v463 = vpack.c.b16 %v415, %v415
    %v464 = vpack.c.b16 %v416, %v416
    %v465 = vpack.c.b16 %v417, %v417
    %v466 = vpack.c.b16 %v418, %v418
    %v467 = vpack.c.b16 %v419, %v419
    %v468 = vpack.c.b16 %v420, %v420
    %v469 = vpack.c.b16 %v421, %v421
    %v470 = vpack.c.b16 %v422, %v422
    %v471 = vpack.c.b16 %v423, %v423
    %v472 = vpack.c.b16 %v424, %v424
    %v473 = vpack.c.b16 %v425, %v425
    %v474 = vpack.c.b16 %v426, %v426
    %v475 = vpack.c.b16 %v427, %v427
    %v476 = vpack.c.b16 %v428, %v428
    %v477 = vpack.c.b16 %v429, %v429
    %v478 = vpack.c.b16 %v430, %v430
    %v479 = vpack.c.b16 %v431, %v431
    %v480 = vpack.c.b16 %v432, %v432
    %v481 = vpack.c.b16 %v433, %v433
    %v482 = vpack.c.b16 %v434, %v434
    %v483 = vpack.c.b16 %v435, %v435
    %v484 = vpack.c.b16 %v436, %v436
    %v485 = vpack.c.b16 %v437, %v437
    %v486 = vpack.c.b16 %v438, %v438
    %v487 = vpack.c.b16 %v439, %v439
    %v488 = vpack.c.b16 %v440, %v440
    %v489 = vpack.c.b16 %v441, %v441
    %v490 = vpack.c.b16 %v442, %v442
    %v491 = vunpack.c.l.b16 %v443
    %v492 = vunpack.c.l.b16 %v444
    %v493 = vunpack.c.l.b16 %v445
    %v494 = vunpack.c.l.b16 %v446
    %v495 = vunpack.c.l.b16 %v447
    %v496 = vunpack.c.l.b16 %v448
    %v497 = vunpack.c.l.b16 %v449
    %v498 = vunpack.c.l.b16 %v450
    %v499 = vunpack.c.l.b16 %v451
    %v500 = vunpack.c.l.b16 %v452
    %v501 = vunpack.c.l.b16 %v453
    %v502 = vunpack.c.l.b16 %v454
    %v503 = vunpack.c.l.b16 %v455
    %v504 = vunpack.c.l.b16 %v456
    %v505 = vunpack.c.l.b16 %v457
    %v506 = vunpack.c.l.b16 %v458
    %v507 = vunpack.c.l.b16 %v459
    %v508 = vunpack.c.l.b16 %v460
    %v509 = vunpack.c.l.b16 %v461
    %v510 = vunpack.c.l.b16 %v462
    %v511 = vunpack.c.l.b16 %v463
    %v512 = vunpack.c.l.b16 %v464
    %v513 = vunpack.c.l.b16 %v465
    %v514 = vunpack.c.l.b16 %v466
    %v515 = vunpack.c.l.b16 %v467
    %v516 = vunpack.c.l.b16 %v468
    %v517 = vunpack.c.l.b16 %v469
    %v518 = vunpack.c.l.b16 %v470
    %v519 = vunpack.c.l.b16 %v471
    %v520 = vunpack.c.l.b16 %v472
    %v521 = vunpack.c.l.b16 %v473
    %v522 = vunpack.c.l.b16 %v474
    %v523 = vunpack.c.l.b16 %v475
    %v524 = vunpack.c.l.b16 %v476
    %v525 = vunpack.c.l.b16 %v477
    %v526 = vunpack.c.l.b16 %v478
    %v527 = vunpack.c.l.b16 %v479
    %v528 = vunpack.c.l.b16 %v480
    %v529 = vunpack.c.l.b16 %v481
    %v530 = vunpack.c.l.b16 %v482
    %v531 = vunpack.c.l.b16 %v483
    %v532 = vunpack.c.l.b16 %v484
    %v533 = vunpack.c.l.b16 %v485
    %v534 = vunpack.c.l.b16 %v486
    %v535 = vunpack.c.l.b16 %v487
    %v536 = vunpack.c.l.b16 %v488
    %v537 = vunpack.c.l.b16 %v489
    %v538 = vunpack.c.l.b16 %v490
    %v539 = vrot.slane %v497, 7
    %vm540 = vcmask 1041409
    %v541 = vsel %vm540, %v539, %v491
    %v542 = vrot.slane %v503, 6
    %vm543 = vcmask 1042434
    %v544 = vsel %vm543, %v542, %v541
    %v545 = vrot.slane %v509, 5
    %vm546 = vcmask 1043459
    %v547 = vsel %vm546, %v545, %v544
    %v548 = vrot.slane %v515, 4
    %vm549 = vcmask 1044484
    %v550 = vsel %vm549, %v548, %v547
    %v551 = vrot.slane %v521, 3
    %vm552 = vcmask 1045509
    %v553 = vsel %vm552, %v551, %v550
    %v554 = vrot.slane %v527, 2
    %vm555 = vcmask 1046534
    %v556 = vsel %vm555, %v554, %v553
    %v557 = vrot.slane %v533, 1
    %vm558 = vcmask 1047559
    %v559 = vsel %vm558, %v557, %v556
    %v560 = vrot.slane %v498, 7
    %v561 = vsel %vm540, %v560, %v492
    %v562 = vrot.slane %v504, 6
    %v563 = vsel %vm543, %v562, %v561
    %v564 = vrot.slane %v510, 5
    %v565 = vsel %vm546, %v564, %v563
    %v566 = vrot.slane %v516, 4
    %v567 = vsel %vm549, %v566, %v565
    %v568 = vrot.slane %v522, 3
    %v569 = vsel %vm552, %v568, %v567
    %v570 = vrot.slane %v528, 2
    %v571 = vsel %vm555, %v570, %v569
    %v572 = vrot.slane %v534, 1
    %v573 = vsel %vm558, %v572, %v571
    %v574 = vrot.slane %v499, 7
    %v575 = vsel %vm540, %v574, %v493
    %v576 = vrot.slane %v505, 6
    %v577 = vsel %vm543, %v576, %v575
    %v578 = vrot.slane %v511, 5
    %v579 = vsel %vm546, %v578, %v577
    %v580 = vrot.slane %v517, 4
    %v581 = vsel %vm549, %v580, %v579
    %v582 = vrot.slane %v523, 3
    %v583 = vsel %vm552, %v582, %v581
    %v584 = vrot.slane %v529, 2
    %v585 = vsel %vm555, %v584, %v583
    %v586 = vrot.slane %v535, 1
    %v587 = vsel %vm558, %v586, %v585
    %v588 = vrot.slane %v500, 7
    %v589 = vsel %vm540, %v588, %v494
    %v590 = vrot.slane %v506, 6
    %v591 = vsel %vm543, %v590, %v589
    %v592 = vrot.slane %v512, 5
    %v593 = vsel %vm546, %v592, %v591
    %v594 = vrot.slane %v518, 4
    %v595 = vsel %vm549, %v594, %v593
    %v596 = vrot.slane %v524, 3
    %v597 = vsel %vm552, %v596, %v595
    %v598 = vrot.slane %v530, 2
    %v599 = vsel %vm555, %v598, %v597
    %v600 = vrot.slane %v536, 1
    %v601 = vsel %vm558, %v600, %v599
    %v602 = vrot.slane %v501, 7
    %v603 = vsel %vm540, %v602, %v495
    %v604 = vrot.slane %v507, 6
    %v605 = vsel %vm543, %v604, %v603
    %v606 = vrot.slane %v513, 5
    %v607 = vsel %vm546, %v606, %v605
    %v608 = vrot.slane %v519, 4
    %v609 = vsel %vm549, %v608, %v607
    %v610 = vrot.slane %v525, 3
    %v611 = vsel %vm552, %v610, %v609
    %v612 = vrot.slane %v531, 2
    %v613 = vsel %vm555, %v612, %v611
    %v614 = vrot.slane %v537, 1
    %v615 = vsel %vm558, %v614, %v613
    %v616 = vrot.slane %v502, 7
    %v617 = vsel %vm540, %v616, %v496
    %v618 = vrot.slane %v508, 6
    %v619 = vsel %vm543, %v618, %v617
    %v620 = vrot.slane %v514, 5
    %v621 = vsel %vm546, %v620, %v619
    %v622 = vrot.slane %v520, 4
    %v623 = vsel %vm549, %v622, %v621
    %v624 = vrot.slane %v526, 3
    %v625 = vsel %vm552, %v624, %v623
    %v626 = vrot.slane %v532, 2
    %v627 = vsel %vm555, %v626, %v625
    %v628 = vrot.slane %v538, 1
    %v629 = vsel %vm558, %v628, %v627
    %v630 = vpack.c.b16 %v559, %v559
    %v631 = vpack.c.b16 %v573, %v573
    %v632 = vpack.c.b16 %v587, %v587
    %v633 = vpack.c.b16 %v601, %v601
    %v634 = vpack.c.b16 %v615, %v615
    %v635 = vpack.c.b16 %v629, %v629
    %v930 = vunpack.c.l.b16 %v83
    %v931 = vunpack.c.h.b16 %v83
    %v932 = vunpack.c.l.b16 %v84
    %v933 = vunpack.c.h.b16 %v84
    %v934 = vunpack.c.l.b16 %v85
    %v935 = vunpack.c.h.b16 %v85
    %v936 = vunpack.c.l.b16 %v86
    %v937 = vunpack.c.h.b16 %v86
    %v938 = vunpack.c.l.b16 %v87
    %v939 = vunpack.c.h.b16 %v87
    %v940 = vunpack.c.l.b16 %v88
    %v941 = vunpack.c.h.b16 %v88
    %v942 = vunpack.c.l.b16 %v89
    %v943 = vunpack.c.h.b16 %v89
    %v944 = vunpack.c.l.b16 %v90
    %v945 = vunpack.c.h.b16 %v90
    %v946 = vunpack.c.l.b16 %v91
    %v947 = vunpack.c.h.b16 %v91
    %v948 = vunpack.c.l.b16 %v92
    %v949 = vunpack.c.h.b16 %v92
    %v950 = vunpack.c.l.b16 %v93
    %v951 = vunpack.c.h.b16 %v93
    %v952 = vunpack.c.l.b16 %v94
    %v953 = vunpack.c.h.b16 %v94
    %v954 = vunpack.c.l.b16 %v95
    %v955 = vunpack.c.h.b16 %v95
    %v956 = vunpack.c.l.b16 %v96
    %v957 = vunpack.c.h.b16 %v96
    %v958 = vunpack.c.l.b16 %v97
    %v959 = vunpack.c.h.b16 %v97
    %v960 = vunpack.c.l.b16 %v98
    %v961 = vunpack.c.h.b16 %v98
    %v962 = vunpack.c.l.b16 %v99
    %v963 = vunpack.c.h.b16 %v99
    %v964 = vunpack.c.l.b16 %v100
    %v965 = vunpack.c.h.b16 %v100
    %v966 = vunpack.c.l.b16 %v101
    %v967 = vunpack.c.h.b16 %v101
    %v968 = vunpack.c.l.b16 %v102
    %v969 = vunpack.c.h.b16 %v102
    %v970 = vunpack.c.l.b16 %v103
    %v971 = vunpack.c.h.b16 %v103
    %v972 = vunpack.c.l.b16 %v104
    %v973 = vunpack.c.h.b16 %v104
    %v974 = vunpack.c.l.b16 %v105
    %v975 = vunpack.c.h.b16 %v105
    %v976 = vunpack.c.l.b16 %v106
    %v977 = vunpack.c.h.b16 %v106
    %v978 = vunpack.c.l.b16 %v107
    %v979 = vunpack.c.h.b16 %v107
    %v980 = vunpack.c.l.b16 %v108
    %v981 = vunpack.c.h.b16 %v108
    %v982 = vunpack.c.l.b16 %v109
    %v983 = vunpack.c.h.b16 %v109
    %v984 = vunpack.c.l.b16 %v110
    %v985 = vunpack.c.h.b16 %v110
    %v986 = vunpack.c.l.b16 %v111
    %v987 = vunpack.c.h.b16 %v111
    %v988 = vunpack.c.l.b16 %v112
    %v989 = vunpack.c.h.b16 %v112
    %v990 = vunpack.c.l.b16 %v113
    %v991 = vunpack.c.h.b16 %v113
    %v992 = vunpack.c.l.b16 %v114
    %v993 = vunpack.c.h.b16 %v114
    %v994 = vunpack.c.l.b16 %v115
    %v995 = vunpack.c.h.b16 %v115
    %v996 = vunpack.c.l.b16 %v116
    %v997 = vunpack.c.h.b16 %v116
    %v998 = vunpack.c.l.b16 %v117
    %v999 = vunpack.c.h.b16 %v117
    %v1000 = vunpack.c.l.b16 %v118
    %v1001 = vunpack.c.h.b16 %v118
    %v1002 = vunpack.c.l.b16 %v119
    %v1003 = vunpack.c.h.b16 %v119
    %v1004 = vunpack.c.l.b16 %v120
    %v1005 = vunpack.c.h.b16 %v120
    %v1006 = vunpack.c.l.b16 %v121
    %v1007 = vunpack.c.h.b16 %v121
    %v1008 = vunpack.c.l.b16 %v122
    %v1009 = vunpack.c.h.b16 %v122
    %v1010 = vunpack.c.l.b16 %v123
    %v1011 = vunpack.c.h.b16 %v123
    %v1012 = vunpack.c.l.b16 %v124
    %v1013 = vunpack.c.h.b16 %v124
    %v1014 = vunpack.c.l.b16 %v125
    %v1015 = vunpack.c.h.b16 %v125
    %v1016 = vunpack.c.l.b16 %v126
    %v1017 = vunpack.c.h.b16 %v126
    %v1018 = vunpack.c.l.b16 %v127
    %v1019 = vunpack.c.h.b16 %v127
    %v1020 = vunpack.c.l.b16 %v128
    %v1021 = vunpack.c.h.b16 %v128
    %v1022 = vunpack.c.l.b16 %v129
    %v1023 = vunpack.c.h.b16 %v129
    %v1024 = vunpack.c.l.b16 %v130
    %v1025 = vunpack.c.h.b16 %v130
    %v1026 = vunpack.c.l.b16 %v131
    %v1027 = vunpack.c.h.b16 %v131
    %v1028 = vunpack.c.l.b16 %v132
    %v1029 = vunpack.c.h.b16 %v132
    %v1030 = vunpack.c.l.b16 %v133
    %v1031 = vunpack.c.h.b16 %v133
    %v1032 = vunpack.c.l.b16 %v134
    %v1033 = vunpack.c.h.b16 %v134
    %v1034 = vunpack.c.l.b16 %v135
    %v1035 = vunpack.c.h.b16 %v135
    %v1036 = vunpack.c.l.b16 %v136
    %v1037 = vunpack.c.h.b16 %v136
    %v1038 = vunpack.c.l.b16 %v137
    %v1039 = vunpack.c.h.b16 %v137
    %v1040 = vunpack.c.l.b16 %v138
    %v1041 = vunpack.c.h.b16 %v138
    %v1042 = vunpack.c.l.b16 %v139
    %v1043 = vunpack.c.h.b16 %v139
    %v1044 = vunpack.c.l.b16 %v140
    %v1045 = vunpack.c.h.b16 %v140
    %v1046 = vunpack.c.l.b16 %v141
    %v1047 = vunpack.c.h.b16 %v141
    %v1048 = vunpack.c.l.b16 %v142
    %v1049 = vunpack.c.h.b16 %v142
    %v1050 = vunpack.c.l.b16 %v143
    %v1051 = vunpack.c.h.b16 %v143
    %v1052 = vunpack.c.l.b16 %v144
    %v1053 = vunpack.c.h.b16 %v144
    %v1054 = vunpack.c.l.b16 %v145
    %v1055 = vunpack.c.h.b16 %v145
    %v1056 = vunpack.c.l.b16 %v146
    %v1057 = vunpack.c.h.b16 %v146
    %v1058 = vunpack.c.l.b16 %v147
    %v1059 = vunpack.c.h.b16 %v147
    %v1060 = vunpack.c.l.b16 %v148
    %v1061 = vunpack.c.h.b16 %v148
    %v1062 = vunpack.c.l.b16 %v149
    %v1063 = vunpack.c.h.b16 %v149
    %v1064 = vunpack.c.l.b16 %v150
    %v1065 = vunpack.c.h.b16 %v150
    %v1066 = vunpack.c.l.b16 %v151
    %v1067 = vunpack.c.h.b16 %v151
    %v1068 = vunpack.c.l.b16 %v152
    %v1069 = vunpack.c.h.b16 %v152
    %v1070 = vunpack.c.l.b16 %v153
    %v1071 = vunpack.c.h.b16 %v153
    %v1072 = vunpack.c.l.b16 %v154
    %v1073 = vunpack.c.h.b16 %v154
    %v1074 = vunpack.c.l.b16 %v155
    %v1075 = vunpack.c.h.b16 %v155
    %v1076 = vunpack.c.l.b16 %v156
    %v1077 = vunpack.c.h.b16 %v156
    %v1078 = vunpack.c.l.b16 %v157
    %v1079 = vunpack.c.h.b16 %v157
    %v1080 = vunpack.c.l.b16 %v158
    %v1081 = vunpack.c.h.b16 %v158
    %v1082 = vunpack.c.l.b16 %v159
    %v1083 = vunpack.c.h.b16 %v159
    %v1084 = vunpack.c.l.b16 %v160
    %v1085 = vunpack.c.h.b16 %v160
    %v1086 = vunpack.c.l.b16 %v161
    %v1087 = vunpack.c.h.b16 %v161
    %v1088 = vunpack.c.l.b16 %v162
    %v1089 = vunpack.c.h.b16 %v162
    %v1090 = vunpack.c.l.b16 %v163
    %v1091 = vunpack.c.h.b16 %v163
    %v1092 = vunpack.c.l.b16 %v164
    %v1093 = vunpack.c.h.b16 %v164
    %v1094 = vunpack.c.l.b16 %v165
    %v1095 = vunpack.c.h.b16 %v165
    %v1096 = vunpack.c.l.b16 %v166
    %v1097 = vunpack.c.h.b16 %v166
    %v1098 = vunpack.c.l.b16 %v167
    %v1099 = vunpack.c.h.b16 %v167
    %v1100 = vunpack.c.l.b16 %v168
    %v1101 = vunpack.c.h.b16 %v168
    %v1102 = vunpack.c.l.b16 %v169
    %v1103 = vunpack.c.h.b16 %v169
    %v1104 = vunpack.c.l.b16 %v170
    %v1105 = vunpack.c.h.b16 %v170
    %v1106 = vunpack.c.l.b16 %v171
    %v1107 = vunpack.c.h.b16 %v171
    %v1108 = vunpack.c.l.b16 %v172
    %v1109 = vunpack.c.h.b16 %v172
    %v1110 = vunpack.c.l.b16 %v173
    %v1111 = vunpack.c.h.b16 %v173
    %v1112 = vunpack.c.l.b16 %v174
    %v1113 = vunpack.c.h.b16 %v174
    %v1114 = vunpack.c.l.b16 %v175
    %v1115 = vunpack.c.h.b16 %v175
    %v1116 = vunpack.c.l.b16 %v176
    %v1117 = vunpack.c.h.b16 %v176
    %v1118 = vunpack.c.l.b16 %v177
    %v1119 = vunpack.c.h.b16 %v177
    %v1120 = vunpack.c.l.b16 %v178
    %v1121 = vunpack.c.h.b16 %v178
    %v1122 = vunpack.c.l.b16 %v179
    %v1123 = vunpack.c.h.b16 %v179
    %v1124 = vunpack.c.l.b16 %v180
    %v1125 = vunpack.c.h.b16 %v180
    %v1126 = vunpack.c.l.b16 %v181
    %v1127 = vunpack.c.h.b16 %v181
    %v1128 = vunpack.c.l.b16 %v182
    %v1129 = vunpack.c.h.b16 %v182
    %v1130 = vunpack.c.l.b16 %v183
    %v1131 = vunpack.c.h.b16 %v183
    %v1132 = vunpack.c.l.b16 %v184
    %v1133 = vunpack.c.h.b16 %v184
    %v1134 = vunpack.c.l.b16 %v185
    %v1135 = vunpack.c.h.b16 %v185
    %v1136 = vunpack.c.l.b16 %v186
    %v1137 = vunpack.c.h.b16 %v186
    %v1138 = vunpack.c.l.b16 %v187
    %v1139 = vunpack.c.h.b16 %v187
    %v1140 = vunpack.c.l.b16 %v188
    %v1141 = vunpack.c.h.b16 %v188
    %v1142 = vunpack.c.l.b16 %v189
    %v1143 = vunpack.c.h.b16 %v189
    %v1144 = vunpack.c.l.b16 %v190
    %v1145 = vunpack.c.h.b16 %v190
    %v1146 = vunpack.c.l.b16 %v191
    %v1147 = vunpack.c.h.b16 %v191
    %v1148 = vunpack.c.l.b16 %v192
    %v1149 = vunpack.c.h.b16 %v192
    %v1150 = vunpack.c.l.b16 %v193
    %v1151 = vunpack.c.h.b16 %v193
    %v1152 = vunpack.c.l.b16 %v194
    %v1153 = vunpack.c.h.b16 %v194
    %v1154 = vunpack.c.l.b16 %v195
    %v1155 = vunpack.c.h.b16 %v195
    %v1156 = vunpack.c.l.b16 %v196
    %v1157 = vunpack.c.h.b16 %v196
    %v1158 = vunpack.c.l.b16 %v197
    %v1159 = vunpack.c.h.b16 %v197
    %v1160 = vunpack.c.l.b16 %v198
    %v1161 = vunpack.c.h.b16 %v198
    %v1162 = vunpack.c.l.b16 %v199
    %v1163 = vunpack.c.h.b16 %v199
    %v1164 = vunpack.c.l.b16 %v200
    %v1165 = vunpack.c.h.b16 %v200
    %v1166 = vunpack.c.l.b16 %v201
    %v1167 = vunpack.c.h.b16 %v201
    %v1168 = vunpack.c.l.b16 %v202
    %v1169 = vunpack.c.h.b16 %v202
    %v1170 = vunpack.c.l.b16 %v203
    %v1171 = vunpack.c.h.b16 %v203
    %v1172 = vunpack.c.l.b16 %v204
    %v1173 = vunpack.c.h.b16 %v204
    %v1174 = vunpack.c.l.b16 %v205
    %v1175 = vunpack.c.h.b16 %v205
    %v1176 = vunpack.c.l.b16 %v206
    %v1177 = vunpack.c.h.b16 %v206
    %v1178 = vunpack.c.l.b16 %v207
    %v1179 = vunpack.c.h.b16 %v207
    %v1180 = vunpack.c.l.b16 %v208
    %v1181 = vunpack.c.h.b16 %v208
    %v1182 = vunpack.c.l.b16 %v209
    %v1183 = vunpack.c.h.b16 %v209
    %v1184 = vunpack.c.l.b16 %v210
    %v1185 = vunpack.c.h.b16 %v210
    %v1186 = vunpack.c.l.b16 %v211
    %v1187 = vunpack.c.h.b16 %v211
    %v1188 = vunpack.c.l.b16 %v212
    %v1189 = vunpack.c.h.b16 %v212
    %v1190 = vunpack.c.l.b16 %v213
    %v1191 = vunpack.c.h.b16 %v213
    %v1192 = vunpack.c.l.b16 %v214
    %v1193 = vunpack.c.h.b16 %v214
    %v1194 = vunpack.c.l.b16 %v215
    %v1195 = vunpack.c.h.b16 %v215
    %v1196 = vunpack.c.l.b16 %v216
    %v1197 = vunpack.c.h.b16 %v216
    %v1198 = vunpack.c.l.b16 %v217
    %v1199 = vunpack.c.h.b16 %v217
    %v1200 = vunpack.c.l.b16 %v218
    %v1201 = vunpack.c.h.b16 %v218
    %v1202 = vunpack.c.l.b16 %v219
    %v1203 = vunpack.c.h.b16 %v219
    %v1204 = vunpack.c.l.b16 %v220
    %v1205 = vunpack.c.h.b16 %v220
    %v1206 = vunpack.c.l.b16 %v221
    %v1207 = vunpack.c.h.b16 %v221
    %v1208 = vunpack.c.l.b16 %v222
    %v1209 = vunpack.c.h.b16 %v222
    %v1210 = vunpack.c.l.b16 %v223
    %v1211 = vunpack.c.h.b16 %v223
    %v1212 = vunpack.c.l.b16 %v224
    %v1213 = vunpack.c.h.b16 %v224
    %v1214 = vunpack.c.l.b16 %v225
    %v1215 = vunpack.c.h.b16 %v225
    %v1216 = vunpack.c.l.b16 %v226
    %v1217 = vunpack.c.h.b16 %v226
    %v1218 = vunpack.c.l.b16 %v227
    %v1219 = vunpack.c.h.b16 %v227
    %v1220 = vunpack.c.l.b16 %v228
    %v1221 = vunpack.c.h.b16 %v228
    %v1222 = vunpack.c.l.b16 %v229
    %v1223 = vunpack.c.h.b16 %v229
    %v1224 = vunpack.c.l.b16 %v230
    %v1225 = vunpack.c.h.b16 %v230
    %v1226 = vunpack.c.l.b16 %v231
    %v1227 = vunpack.c.h.b16 %v231
    %v1228 = vunpack.c.l.b16 %v232
    %v1229 = vunpack.c.h.b16 %v232
    %v1230 = vunpack.c.l.b16 %v233
    %v1231 = vunpack.c.h.b16 %v233
    %v1232 = vunpack.c.l.b16 %v234
    %v1233 = vunpack.c.h.b16 %v234
    %v1234 = vunpack.c.l.b16 %v235
    %v1235 = vunpack.c.h.b16 %v235
    %v1236 = vunpack.c.l.b16 %v236
    %v1237 = vunpack.c.h.b16 %v236
    %v1238 = vunpack.c.l.b16 %v237
    %v1239 = vunpack.c.h.b16 %v237
    %v1240 = vunpack.c.l.b16 %v238
    %v1241 = vunpack.c.h.b16 %v238
    %v1242 = vunpack.c.l.b16 %v239
    %v1243 = vunpack.c.h.b16 %v239
    %v1244 = vunpack.c.l.b16 %v240
    %v1245 = vunpack.c.h.b16 %v240
    %v1246 = vunpack.c.l.b16 %v241
    %v1247 = vunpack.c.h.b16 %v241
    %v1248 = vunpack.c.l.b16 %v242
    %v1249 = vunpack.c.h.b16 %v242
    %v1250 = vunpack.c.l.b16 %v243
    %v1251 = vunpack.c.h.b16 %v243
    %v1252 = vunpack.c.l.b16 %v244
    %v1253 = vunpack.c.h.b16 %v244
    %v1254 = vunpack.c.l.b16 %v245
    %v1255 = vunpack.c.h.b16 %v245
    %v1256 = vunpack.c.l.b16 %v246
    %v1257 = vunpack.c.h.b16 %v246
    %v1258 = vunpack.c.l.b16 %v247
    %v1259 = vunpack.c.h.b16 %v247
    %v1260 = vunpack.c.l.b16 %v248
    %v1261 = vunpack.c.h.b16 %v248
    %v1262 = vunpack.c.l.b16 %v249
    %v1263 = vunpack.c.h.b16 %v249
    %v1264 = vunpack.c.l.b16 %v250
    %v1265 = vunpack.c.h.b16 %v250
    %v1266 = vunpack.c.l.b16 %v251
    %v1267 = vunpack.c.h.b16 %v251
    %v1268 = vunpack.c.l.b16 %v252
    %v1269 = vunpack.c.h.b16 %v252
    %v1270 = vunpack.c.l.b16 %v253
    %v1271 = vunpack.c.h.b16 %v253
    %v1272 = vunpack.c.l.b16 %v254
    %v1273 = vunpack.c.h.b16 %v254
    %v1274 = vunpack.c.l.b16 %v255
    %v1275 = vunpack.c.h.b16 %v255
    %v1276 = vunpack.c.l.b16 %v256
    %v1277 = vunpack.c.h.b16 %v256
    %v1278 = vunpack.c.l.b16 %v257
    %v1279 = vunpack.c.h.b16 %v257
    %v1280 = vunpack.c.l.b16 %v258
    %v1281 = vunpack.c.h.b16 %v258
    %v1282 = vunpack.c.l.b16 %v259
    %v1283 = vunpack.c.h.b16 %v259
    %v1284 = vunpack.c.l.b16 %v260
    %v1285 = vunpack.c.h.b16 %v260
    %v1286 = vunpack.c.l.b16 %v261
    %v1287 = vunpack.c.h.b16 %v261
    %v1288 = vunpack.c.l.b16 %v262
    %v1289 = vunpack.c.h.b16 %v262
    %v1290 = vunpack.c.l.b16 %v263
    %v1291 = vunpack.c.h.b16 %v263
    %v1292 = vunpack.c.l.b16 %v264
    %v1293 = vunpack.c.h.b16 %v264
    %v1294 = vunpack.c.l.b16 %v265
    %v1295 = vunpack.c.h.b16 %v265
    %v1296 = vunpack.c.l.b16 %v266
    %v1297 = vunpack.c.h.b16 %v266
    %v1298 = vunpack.c.l.b16 %v267
    %v1299 = vunpack.c.h.b16 %v267
    %v1300 = vunpack.c.l.b16 %v268
    %v1301 = vunpack.c.h.b16 %v268
    %v1302 = vunpack.c.l.b16 %v269
    %v1303 = vunpack.c.h.b16 %v269
    %v1304 = vunpack.c.l.b16 %v270
    %v1305 = vunpack.c.h.b16 %v270
    %v1306 = vunpack.c.l.b16 %v271
    %v1307 = vunpack.c.h.b16 %v271
    %v1308 = vunpack.c.l.b16 %v272
    %v1309 = vunpack.c.h.b16 %v272
    %v1310 = vunpack.c.l.b16 %v273
    %v1311 = vunpack.c.h.b16 %v273
    %v1312 = vunpack.c.l.b16 %v274
    %v1313 = vunpack.c.h.b16 %v274
    %v1314 = vunpack.c.l.b16 %v275
    %v1315 = vunpack.c.h.b16 %v275
    %v1316 = vunpack.c.l.b16 %v276
    %v1317 = vunpack.c.h.b16 %v276
    %v1318 = vunpack.c.l.b16 %v277
    %v1319 = vunpack.c.h.b16 %v277
    %v1320 = vunpack.c.l.b16 %v278
    %v1321 = vunpack.c.h.b16 %v278
    %v1322 = vunpack.c.l.b16 %v279
    %v1323 = vunpack.c.h.b16 %v279
    %v1324 = vunpack.c.l.b16 %v280
    %v1325 = vunpack.c.h.b16 %v280
    %v1326 = vunpack.c.l.b16 %v281
    %v1327 = vunpack.c.h.b16 %v281
    %v1328 = vunpack.c.l.b16 %v282
    %v1329 = vunpack.c.h.b16 %v282
    %v1330 = vunpack.c.l.b16 %v283
    %v1331 = vunpack.c.h.b16 %v283
    %v1332 = vunpack.c.l.b16 %v284
    %v1333 = vunpack.c.h.b16 %v284
    %v1334 = vunpack.c.l.b16 %v285
    %v1335 = vunpack.c.h.b16 %v285
    %v1336 = vunpack.c.l.b16 %v286
    %v1337 = vunpack.c.h.b16 %v286
    %v1338 = vunpack.c.l.b16 %v287
    %v1339 = vunpack.c.h.b16 %v287
    %v1340 = vunpack.c.l.b16 %v288
    %v1341 = vunpack.c.h.b16 %v288
    %v1342 = vunpack.c.l.b16 %v289
    %v1343 = vunpack.c.h.b16 %v289
    %v1344 = vunpack.c.l.b16 %v290
    %v1345 = vunpack.c.h.b16 %v290
    %v1346 = vunpack.c.l.b16 %v291
    %v1347 = vunpack.c.h.b16 %v291
    %v1348 = vunpack.c.l.b16 %v292
    %v1349 = vunpack.c.h.b16 %v292
    %v1350 = vunpack.c.l.b16 %v293
    %v1351 = vunpack.c.h.b16 %v293
    %v1352 = vunpack.c.l.b16 %v294
    %v1353 = vunpack.c.h.b16 %v294
    %v1354 = vunpack.c.l.b16 %v295
    %v1355 = vunpack.c.h.b16 %v295
    %v1356 = vunpack.c.l.b16 %v296
    %v1357 = vunpack.c.h.b16 %v296
    %v1358 = vunpack.c.l.b16 %v297
    %v1359 = vunpack.c.h.b16 %v297
    %v1360 = vunpack.c.l.b16 %v298
    %v1361 = vunpack.c.h.b16 %v298
    %v1362 = vunpack.c.l.b16 %v299
    %v1363 = vunpack.c.h.b16 %v299
    %v1364 = vunpack.c.l.b16 %v300
    %v1365 = vunpack.c.h.b16 %v300
    %v1366 = vunpack.c.l.b16 %v301
    %v1367 = vunpack.c.h.b16 %v301
    %v1368 = vunpack.c.l.b16 %v302
    %v1369 = vunpack.c.h.b16 %v302
    %v1370 = vunpack.c.l.b16 %v303
    %v1371 = vunpack.c.h.b16 %v303
    %v1372 = vunpack.c.l.b16 %v304
    %v1373 = vunpack.c.h.b16 %v304
    %v1374 = vunpack.c.l.b16 %v305
    %v1375 = vunpack.c.h.b16 %v305
    %v1376 = vunpack.c.l.b16 %v306
    %v1377 = vunpack.c.h.b16 %v306
    %v1378 = vunpack.c.l.b16 %v307
    %v1379 = vunpack.c.h.b16 %v307
    %v1380 = vunpack.c.l.b16 %v308
    %v1381 = vunpack.c.h.b16 %v308
    %v1382 = vunpack.c.l.b16 %v309
    %v1383 = vunpack.c.h.b16 %v309
    %v1384 = vunpack.c.l.b16 %v310
    %v1385 = vunpack.c.h.b16 %v310
    %v1386 = vunpack.c.l.b16 %v311
    %v1387 = vunpack.c.h.b16 %v311
    %v1388 = vunpack.c.l.b16 %v312
    %v1389 = vunpack.c.h.b16 %v312
    %v1390 = vunpack.c.l.b16 %v313
    %v1391 = vunpack.c.h.b16 %v313
    %v1392 = vunpack.c.l.b16 %v314
    %v1393 = vunpack.c.h.b16 %v314
    %v1394 = vunpack.c.l.b16 %v315
    %v1395 = vunpack.c.h.b16 %v315
    %v1396 = vunpack.c.l.b16 %v316
    %v1397 = vunpack.c.h.b16 %v316
    %v1398 = vunpack.c.l.b16 %v317
    %v1399 = vunpack.c.h.b16 %v317
    %v1400 = vunpack.c.l.b16 %v318
    %v1401 = vunpack.c.h.b16 %v318
    %v1402 = vunpack.c.l.b16 %v319
    %v1403 = vunpack.c.h.b16 %v319
    %v1404 = vunpack.c.l.b16 %v320
    %v1405 = vunpack.c.h.b16 %v320
    %v1406 = vunpack.c.l.b16 %v321
    %v1407 = vunpack.c.h.b16 %v321
    %v1408 = vunpack.c.l.b16 %v322
    %v1409 = vunpack.c.h.b16 %v322
    %v1410 = vunpack.c.l.b16 %v323
    %v1411 = vunpack.c.h.b16 %v323
    %v1412 = vunpack.c.l.b16 %v324
    %v1413 = vunpack.c.h.b16 %v324
    %v1414 = vunpack.c.l.b16 %v325
    %v1415 = vunpack.c.h.b16 %v325
    %v1416 = vunpack.c.l.b16 %v326
    %v1417 = vunpack.c.h.b16 %v326
    %v1418 = vunpack.c.l.b16 %v327
    %v1419 = vunpack.c.h.b16 %v327
    %v1420 = vunpack.c.l.b16 %v328
    %v1421 = vunpack.c.h.b16 %v328
    %v1422 = vunpack.c.l.b16 %v329
    %v1423 = vunpack.c.h.b16 %v329
    %v1424 = vunpack.c.l.b16 %v330
    %v1425 = vunpack.c.h.b16 %v330
    %v1426 = vunpack.c.l.b16 %v331
    %v1427 = vunpack.c.h.b16 %v331
    %v1428 = vunpack.c.l.b16 %v332
    %v1429 = vunpack.c.h.b16 %v332
    %v1430 = vunpack.c.l.b16 %v333
    %v1431 = vunpack.c.h.b16 %v333
    %v1432 = vunpack.c.l.b16 %v334
    %v1433 = vunpack.c.h.b16 %v334
    %v1434 = vunpack.c.l.b16 %v335
    %v1435 = vunpack.c.h.b16 %v335
    %v1436 = vunpack.c.l.b16 %v336
    %v1437 = vunpack.c.h.b16 %v336
    %v1438 = vunpack.c.l.b16 %v337
    %v1439 = vunpack.c.h.b16 %v337
    %v1440 = vunpack.c.l.b16 %v338
    %v1441 = vunpack.c.h.b16 %v338
    %v1442 = vunpack.c.l.b16 %v339
    %v1443 = vunpack.c.h.b16 %v339
    %v1444 = vunpack.c.l.b16 %v340
    %v1445 = vunpack.c.h.b16 %v340
    %v1446 = vunpack.c.l.b16 %v341
    %v1447 = vunpack.c.h.b16 %v341
    %v1448 = vunpack.c.l.b16 %v342
    %v1449 = vunpack.c.h.b16 %v342
    %v1450 = vunpack.c.l.b16 %v343
    %v1451 = vunpack.c.h.b16 %v343
    %v1452 = vunpack.c.l.b16 %v344
    %v1453 = vunpack.c.h.b16 %v344
    %v1454 = vunpack.c.l.b16 %v345
    %v1455 = vunpack.c.h.b16 %v345
    %v1456 = vunpack.c.l.b16 %v346
    %v1457 = vunpack.c.h.b16 %v346
    %v1458 = vunpack.c.l.b16 %v347
    %v1459 = vunpack.c.h.b16 %v347
    %v1460 = vunpack.c.l.b16 %v348
    %v1461 = vunpack.c.h.b16 %v348
    %v1462 = vunpack.c.l.b16 %v349
    %v1463 = vunpack.c.h.b16 %v349
    %v1464 = vunpack.c.l.b16 %v350
    %v1465 = vunpack.c.h.b16 %v350
    %v1466 = vunpack.c.l.b16 %v351
    %v1467 = vunpack.c.h.b16 %v351
    %v1468 = vunpack.c.l.b16 %v352
    %v1469 = vunpack.c.h.b16 %v352
    %v1470 = vunpack.c.l.b16 %v353
    %v1471 = vunpack.c.h.b16 %v353
    %v1472 = vunpack.c.l.b16 %v354
    %v1473 = vunpack.c.h.b16 %v354
    %v1474 = vunpack.c.l.b16 %v355
    %v1475 = vunpack.c.h.b16 %v355
    %v1476 = vunpack.c.l.b16 %v356
    %v1477 = vunpack.c.h.b16 %v356
    %v1478 = vunpack.c.l.b16 %v357
    %v1479 = vunpack.c.h.b16 %v357
    %v1480 = vunpack.c.l.b16 %v358
    %v1481 = vunpack.c.h.b16 %v358
    %v1482 = vunpack.c.l.b16 %v359
    %v1483 = vunpack.c.h.b16 %v359
    %v1484 = vunpack.c.l.b16 %v360
    %v1485 = vunpack.c.h.b16 %v360
    %v1486 = vunpack.c.l.b16 %v361
    %v1487 = vunpack.c.h.b16 %v361
    %v1488 = vunpack.c.l.b16 %v362
    %v1489 = vunpack.c.h.b16 %v362
    %v1490 = vunpack.c.l.b16 %v363
    %v1491 = vunpack.c.h.b16 %v363
    %v1492 = vunpack.c.l.b16 %v364
    %v1493 = vunpack.c.h.b16 %v364
    %v1494 = vunpack.c.l.b16 %v365
    %v1495 = vunpack.c.h.b16 %v365
    %v1496 = vunpack.c.l.b16 %v366
    %v1497 = vunpack.c.h.b16 %v366
    %v1498 = vunpack.c.l.b16 %v367
    %v1499 = vunpack.c.h.b16 %v367
    %v1500 = vunpack.c.l.b16 %v368
    %v1501 = vunpack.c.h.b16 %v368
    %v1502 = vunpack.c.l.b16 %v369
    %v1503 = vunpack.c.h.b16 %v369
    %v1504 = vunpack.c.l.b16 %v370
    %v1505 = vunpack.c.h.b16 %v370
    %v1506 = vpack.c.b16 %v936, %v930
    %v1507 = vpack.c.b16 %v937, %v931
    %v1508 = vpack.c.b16 %v938, %v932
    %v1509 = vpack.c.b16 %v939, %v933
    %v1510 = vpack.c.b16 %v940, %v934
    %v1511 = vpack.c.b16 %v941, %v935
    %v1512 = vpack.c.b16 %v948, %v942
    %v1513 = vpack.c.b16 %v949, %v943
    %v1514 = vpack.c.b16 %v950, %v944
    %v1515 = vpack.c.b16 %v951, %v945
    %v1516 = vpack.c.b16 %v952, %v946
    %v1517 = vpack.c.b16 %v953, %v947
    %v1518 = vpack.c.b16 %v960, %v954
    %v1519 = vpack.c.b16 %v961, %v955
    %v1520 = vpack.c.b16 %v962, %v956
    %v1521 = vpack.c.b16 %v963, %v957
    %v1522 = vpack.c.b16 %v964, %v958
    %v1523 = vpack.c.b16 %v965, %v959
    %v1524 = vpack.c.b16 %v972, %v966
    %v1525 = vpack.c.b16 %v973, %v967
    %v1526 = vpack.c.b16 %v974, %v968
    %v1527 = vpack.c.b16 %v975, %v969
    %v1528 = vpack.c.b16 %v976, %v970
    %v1529 = vpack.c.b16 %v977, %v971
    %v1530 = vpack.c.b16 %v984, %v978
    %v1531 = vpack.c.b16 %v985, %v979
    %v1532 = vpack.c.b16 %v986, %v980
    %v1533 = vpack.c.b16 %v987, %v981
    %v1534 = vpack.c.b16 %v988, %v982
    %v1535 = vpack.c.b16 %v989, %v983
    %v1536 = vpack.c.b16 %v996, %v990
    %v1537 = vpack.c.b16 %v997, %v991
    %v1538 = vpack.c.b16 %v998, %v992
    %v1539 = vpack.c.b16 %v999, %v993
    %v1540 = vpack.c.b16 %v1000, %v994
    %v1541 = vpack.c.b16 %v1001, %v995
    %v1542 = vpack.c.b16 %v1008, %v1002
    %v1543 = vpack.c.b16 %v1009, %v1003
    %v1544 = vpack.c.b16 %v1010, %v1004
    %v1545 = vpack.c.b16 %v1011, %v1005
    %v1546 = vpack.c.b16 %v1012, %v1006
    %v1547 = vpack.c.b16 %v1013, %v1007
    %v1548 = vpack.c.b16 %v1020, %v1014
    %v1549 = vpack.c.b16 %v1021, %v1015
    %v1550 = vpack.c.b16 %v1022, %v1016
    %v1551 = vpack.c.b16 %v1023, %v1017
    %v1552 = vpack.c.b16 %v1024, %v1018
    %v1553 = vpack.c.b16 %v1025, %v1019
    %v1554 = vpack.c.b16 %v1032, %v1026
    %v1555 = vpack.c.b16 %v1033, %v1027
    %v1556 = vpack.c.b16 %v1034, %v1028
    %v1557 = vpack.c.b16 %v1035, %v1029
    %v1558 = vpack.c.b16 %v1036, %v1030
    %v1559 = vpack.c.b16 %v1037, %v1031
    %v1560 = vpack.c.b16 %v1044, %v1038
    %v1561 = vpack.c.b16 %v1045, %v1039
    %v1562 = vpack.c.b16 %v1046, %v1040
    %v1563 = vpack.c.b16 %v1047, %v1041
    %v1564 = vpack.c.b16 %v1048, %v1042
    %v1565 = vpack.c.b16 %v1049, %v1043
    %v1566 = vpack.c.b16 %v1056, %v1050
    %v1567 = vpack.c.b16 %v1057, %v1051
    %v1568 = vpack.c.b16 %v1058, %v1052
    %v1569 = vpack.c.b16 %v1059, %v1053
    %v1570 = vpack.c.b16 %v1060, %v1054
    %v1571 = vpack.c.b16 %v1061, %v1055
    %v1572 = vpack.c.b16 %v1068, %v1062
    %v1573 = vpack.c.b16 %v1069, %v1063
    %v1574 = vpack.c.b16 %v1070, %v1064
    %v1575 = vpack.c.b16 %v1071, %v1065
    %v1576 = vpack.c.b16 %v1072, %v1066
    %v1577 = vpack.c.b16 %v1073, %v1067
    %v1578 = vpack.c.b16 %v1080, %v1074
    %v1579 = vpack.c.b16 %v1081, %v1075
    %v1580 = vpack.c.b16 %v1082, %v1076
    %v1581 = vpack.c.b16 %v1083, %v1077
    %v1582 = vpack.c.b16 %v1084, %v1078
    %v1583 = vpack.c.b16 %v1085, %v1079
    %v1584 = vpack.c.b16 %v1092, %v1086
    %v1585 = vpack.c.b16 %v1093, %v1087
    %v1586 = vpack.c.b16 %v1094, %v1088
    %v1587 = vpack.c.b16 %v1095, %v1089
    %v1588 = vpack.c.b16 %v1096, %v1090
    %v1589 = vpack.c.b16 %v1097, %v1091
    %v1590 = vpack.c.b16 %v1104, %v1098
    %v1591 = vpack.c.b16 %v1105, %v1099
    %v1592 = vpack.c.b16 %v1106, %v1100
    %v1593 = vpack.c.b16 %v1107, %v1101
    %v1594 = vpack.c.b16 %v1108, %v1102
    %v1595 = vpack.c.b16 %v1109, %v1103
    %v1596 = vpack.c.b16 %v1116, %v1110
    %v1597 = vpack.c.b16 %v1117, %v1111
    %v1598 = vpack.c.b16 %v1118, %v1112
    %v1599 = vpack.c.b16 %v1119, %v1113
    %v1600 = vpack.c.b16 %v1120, %v1114
    %v1601 = vpack.c.b16 %v1121, %v1115
    %v1602 = vpack.c.b16 %v1128, %v1122
    %v1603 = vpack.c.b16 %v1129, %v1123
    %v1604 = vpack.c.b16 %v1130, %v1124
    %v1605 = vpack.c.b16 %v1131, %v1125
    %v1606 = vpack.c.b16 %v1132, %v1126
    %v1607 = vpack.c.b16 %v1133, %v1127
    %v1608 = vpack.c.b16 %v1140, %v1134
    %v1609 = vpack.c.b16 %v1141, %v1135
    %v1610 = vpack.c.b16 %v1142, %v1136
    %v1611 = vpack.c.b16 %v1143, %v1137
    %v1612 = vpack.c.b16 %v1144, %v1138
    %v1613 = vpack.c.b16 %v1145, %v1139
    %v1614 = vpack.c.b16 %v1152, %v1146
    %v1615 = vpack.c.b16 %v1153, %v1147
    %v1616 = vpack.c.b16 %v1154, %v1148
    %v1617 = vpack.c.b16 %v1155, %v1149
    %v1618 = vpack.c.b16 %v1156, %v1150
    %v1619 = vpack.c.b16 %v1157, %v1151
    %v1620 = vpack.c.b16 %v1164, %v1158
    %v1621 = vpack.c.b16 %v1165, %v1159
    %v1622 = vpack.c.b16 %v1166, %v1160
    %v1623 = vpack.c.b16 %v1167, %v1161
    %v1624 = vpack.c.b16 %v1168, %v1162
    %v1625 = vpack.c.b16 %v1169, %v1163
    %v1626 = vpack.c.b16 %v1176, %v1170
    %v1627 = vpack.c.b16 %v1177, %v1171
    %v1628 = vpack.c.b16 %v1178, %v1172
    %v1629 = vpack.c.b16 %v1179, %v1173
    %v1630 = vpack.c.b16 %v1180, %v1174
    %v1631 = vpack.c.b16 %v1181, %v1175
    %v1632 = vpack.c.b16 %v1188, %v1182
    %v1633 = vpack.c.b16 %v1189, %v1183
    %v1634 = vpack.c.b16 %v1190, %v1184
    %v1635 = vpack.c.b16 %v1191, %v1185
    %v1636 = vpack.c.b16 %v1192, %v1186
    %v1637 = vpack.c.b16 %v1193, %v1187
    %v1638 = vpack.c.b16 %v1200, %v1194
    %v1639 = vpack.c.b16 %v1201, %v1195
    %v1640 = vpack.c.b16 %v1202, %v1196
    %v1641 = vpack.c.b16 %v1203, %v1197
    %v1642 = vpack.c.b16 %v1204, %v1198
    %v1643 = vpack.c.b16 %v1205, %v1199
    %v1644 = vpack.c.b16 %v1212, %v1206
    %v1645 = vpack.c.b16 %v1213, %v1207
    %v1646 = vpack.c.b16 %v1214, %v1208
    %v1647 = vpack.c.b16 %v1215, %v1209
    %v1648 = vpack.c.b16 %v1216, %v1210
    %v1649 = vpack.c.b16 %v1217, %v1211
    %v1650 = vpack.c.b16 %v1224, %v1218
    %v1651 = vpack.c.b16 %v1225, %v1219
    %v1652 = vpack.c.b16 %v1226, %v1220
    %v1653 = vpack.c.b16 %v1227, %v1221
    %v1654 = vpack.c.b16 %v1228, %v1222
    %v1655 = vpack.c.b16 %v1229, %v1223
    %v1656 = vpack.c.b16 %v1236, %v1230
    %v1657 = vpack.c.b16 %v1237, %v1231
    %v1658 = vpack.c.b16 %v1238, %v1232
    %v1659 = vpack.c.b16 %v1239, %v1233
    %v1660 = vpack.c.b16 %v1240, %v1234
    %v1661 = vpack.c.b16 %v1241, %v1235
    %v1662 = vpack.c.b16 %v1248, %v1242
    %v1663 = vpack.c.b16 %v1249, %v1243
    %v1664 = vpack.c.b16 %v1250, %v1244
    %v1665 = vpack.c.b16 %v1251, %v1245
    %v1666 = vpack.c.b16 %v1252, %v1246
    %v1667 = vpack.c.b16 %v1253, %v1247
    %v1668 = vpack.c.b16 %v1260, %v1254
    %v1669 = vpack.c.b16 %v1261, %v1255
    %v1670 = vpack.c.b16 %v1262, %v1256
    %v1671 = vpack.c.b16 %v1263, %v1257
    %v1672 = vpack.c.b16 %v1264, %v1258
    %v1673 = vpack.c.b16 %v1265, %v1259
    %v1674 = vpack.c.b16 %v1272, %v1266
    %v1675 = vpack.c.b16 %v1273, %v1267
    %v1676 = vpack.c.b16 %v1274, %v1268
    %v1677 = vpack.c.b16 %v1275, %v1269
    %v1678 = vpack.c.b16 %v1276, %v1270
    %v1679 = vpack.c.b16 %v1277, %v1271
    %v1680 = vpack.c.b16 %v1284, %v1278
    %v1681 = vpack.c.b16 %v1285, %v1279
    %v1682 = vpack.c.b16 %v1286, %v1280
    %v1683 = vpack.c.b16 %v1287, %v1281
    %v1684 = vpack.c.b16 %v1288, %v1282
    %v1685 = vpack.c.b16 %v1289, %v1283
    %v1686 = vpack.c.b16 %v1296, %v1290
    %v1687 = vpack.c.b16 %v1297, %v1291
    %v1688 = vpack.c.b16 %v1298, %v1292
    %v1689 = vpack.c.b16 %v1299, %v1293
    %v1690 = vpack.c.b16 %v1300, %v1294
    %v1691 = vpack.c.b16 %v1301, %v1295
    %v1692 = vpack.c.b16 %v1308, %v1302
    %v1693 = vpack.c.b16 %v1309, %v1303
    %v1694 = vpack.c.b16 %v1310, %v1304
    %v1695 = vpack.c.b16 %v1311, %v1305
    %v1696 = vpack.c.b16 %v1312, %v1306
    %v1697 = vpack.c.b16 %v1313, %v1307
    %v1698 = vpack.c.b16 %v1320, %v1314
    %v1699 = vpack.c.b16 %v1321, %v1315
    %v1700 = vpack.c.b16 %v1322, %v1316
    %v1701 = vpack.c.b16 %v1323, %v1317
    %v1702 = vpack.c.b16 %v1324, %v1318
    %v1703 = vpack.c.b16 %v1325, %v1319
    %v1704 = vpack.c.b16 %v1332, %v1326
    %v1705 = vpack.c.b16 %v1333, %v1327
    %v1706 = vpack.c.b16 %v1334, %v1328
    %v1707 = vpack.c.b16 %v1335, %v1329
    %v1708 = vpack.c.b16 %v1336, %v1330
    %v1709 = vpack.c.b16 %v1337, %v1331
    %v1710 = vpack.c.b16 %v1344, %v1338
    %v1711 = vpack.c.b16 %v1345, %v1339
    %v1712 = vpack.c.b16 %v1346, %v1340
    %v1713 = vpack.c.b16 %v1347, %v1341
    %v1714 = vpack.c.b16 %v1348, %v1342
    %v1715 = vpack.c.b16 %v1349, %v1343
    %v1716 = vpack.c.b16 %v1356, %v1350
    %v1717 = vpack.c.b16 %v1357, %v1351
    %v1718 = vpack.c.b16 %v1358, %v1352
    %v1719 = vpack.c.b16 %v1359, %v1353
    %v1720 = vpack.c.b16 %v1360, %v1354
    %v1721 = vpack.c.b16 %v1361, %v1355
    %v1722 = vpack.c.b16 %v1368, %v1362
    %v1723 = vpack.c.b16 %v1369, %v1363
    %v1724 = vpack.c.b16 %v1370, %v1364
    %v1725 = vpack.c.b16 %v1371, %v1365
    %v1726 = vpack.c.b16 %v1372, %v1366
    %v1727 = vpack.c.b16 %v1373, %v1367
    %v1728 = vpack.c.b16 %v1380, %v1374
    %v1729 = vpack.c.b16 %v1381, %v1375
    %v1730 = vpack.c.b16 %v1382, %v1376
    %v1731 = vpack.c.b16 %v1383, %v1377
    %v1732 = vpack.c.b16 %v1384, %v1378
    %v1733 = vpack.c.b16 %v1385, %v1379
    %v1734 = vpack.c.b16 %v1392, %v1386
    %v1735 = vpack.c.b16 %v1393, %v1387
    %v1736 = vpack.c.b16 %v1394, %v1388
    %v1737 = vpack.c.b16 %v1395, %v1389
    %v1738 = vpack.c.b16 %v1396, %v1390
    %v1739 = vpack.c.b16 %v1397, %v1391
    %v1740 = vpack.c.b16 %v1404, %v1398
    %v1741 = vpack.c.b16 %v1405, %v1399
    %v1742 = vpack.c.b16 %v1406, %v1400
    %v1743 = vpack.c.b16 %v1407, %v1401
    %v1744 = vpack.c.b16 %v1408, %v1402
    %v1745 = vpack.c.b16 %v1409, %v1403
    %v1746 = vpack.c.b16 %v1416, %v1410
    %v1747 = vpack.c.b16 %v1417, %v1411
    %v1748 = vpack.c.b16 %v1418, %v1412
    %v1749 = vpack.c.b16 %v1419, %v1413
    %v1750 = vpack.c.b16 %v1420, %v1414
    %v1751 = vpack.c.b16 %v1421, %v1415
    %v1752 = vpack.c.b16 %v1428, %v1422
    %v1753 = vpack.c.b16 %v1429, %v1423
    %v1754 = vpack.c.b16 %v1430, %v1424
    %v1755 = vpack.c.b16 %v1431, %v1425
    %v1756 = vpack.c.b16 %v1432, %v1426
    %v1757 = vpack.c.b16 %v1433, %v1427
    %v1758 = vpack.c.b16 %v1440, %v1434
    %v1759 = vpack.c.b16 %v1441, %v1435
    %v1760 = vpack.c.b16 %v1442, %v1436
    %v1761 = vpack.c.b16 %v1443, %v1437
    %v1762 = vpack.c.b16 %v1444, %v1438
    %v1763 = vpack.c.b16 %v1445, %v1439
    %v1764 = vpack.c.b16 %v1452, %v1446
    %v1765 = vpack.c.b16 %v1453, %v1447
    %v1766 = vpack.c.b16 %v1454, %v1448
    %v1767 = vpack.c.b16 %v1455, %v1449
    %v1768 = vpack.c.b16 %v1456, %v1450
    %v1769 = vpack.c.b16 %v1457, %v1451
    %v1770 = vpack.c.b16 %v1464, %v1458
    %v1771 = vpack.c.b16 %v1465, %v1459
    %v1772 = vpack.c.b16 %v1466, %v1460
    %v1773 = vpack.c.b16 %v1467, %v1461
    %v1774 = vpack.c.b16 %v1468, %v1462
    %v1775 = vpack.c.b16 %v1469, %v1463
    %v1776 = vpack.c.b16 %v1476, %v1470
    %v1777 = vpack.c.b16 %v1477, %v1471
    %v1778 = vpack.c.b16 %v1478, %v1472
    %v1779 = vpack.c.b16 %v1479, %v1473
    %v1780 = vpack.c.b16 %v1480, %v1474
    %v1781 = vpack.c.b16 %v1481, %v1475
    %v1782 = vpack.c.b16 %v1488, %v1482
    %v1783 = vpack.c.b16 %v1489, %v1483
    %v1784 = vpack.c.b16 %v1490, %v1484
    %v1785 = vpack.c.b16 %v1491, %v1485
    %v1786 = vpack.c.b16 %v1492, %v1486
    %v1787 = vpack.c.b16 %v1493, %v1487
    %v1788 = vpack.c.b16 %v1500, %v1494
    %v1789 = vpack.c.b16 %v1501, %v1495
    %v1790 = vpack.c.b16 %v1502, %v1496
    %v1791 = vpack.c.b16 %v1503, %v1497
    %v1792 = vpack.c.b16 %v1504, %v1498
    %v1793 = vpack.c.b16 %v1505, %v1499
    %2082 = vmatprep.subr.bf16.mxu0 %v1549
    %2083 = vmatpush1.bf16.msra.mxu0 %v1548
    %2084 = vmatprep.subr.bf16.mxu0 %v1543
    %2085 = vmatpush1.bf16.msra.mxu0 %v1542
    %2086 = vmatprep.subr.bf16.mxu0 %v1537
    %2087 = vmatpush1.bf16.msra.mxu0 %v1536
    %2088 = vmatprep.subr.bf16.mxu0 %v1531
    %2089 = vmatpush1.bf16.msra.mxu0 %v1530
    %2090 = vmatprep.subr.bf16.mxu0 %v1525
    %2091 = vmatpush1.bf16.msra.mxu0 %v1524
    %2092 = vmatprep.subr.bf16.mxu0 %v1519
    %2093 = vmatpush1.bf16.msra.mxu0 %v1518
    %2094 = vmatprep.subr.bf16.mxu0 %v1513
    %2095 = vmatpush1.bf16.msra.mxu0 %v1512
    %2096 = vmatprep.subr.bf16.mxu0 %v1507
    %2097 = vmatpush1.bf16.msra.mxu0 %v1506
    %2098 = vmatprep.subr.bf16.mxu0 %v1597
    %2099 = vmatpush2.bf16.msra.mxu0 %v1596
    %2100 = vmatprep.subr.bf16.mxu0 %v1591
    %2101 = vmatpush2.bf16.msra.mxu0 %v1590
    %2102 = vmatprep.subr.bf16.mxu0 %v1585
    %2103 = vmatpush2.bf16.msra.mxu0 %v1584
    %2104 = vmatprep.subr.bf16.mxu0 %v1579
    %2105 = vmatpush2.bf16.msra.mxu0 %v1578
    %2106 = vmatprep.subr.bf16.mxu0 %v1573
    %2107 = vmatpush2.bf16.msra.mxu0 %v1572
    %2108 = vmatprep.subr.bf16.mxu0 %v1567
    %2109 = vmatpush2.bf16.msra.mxu0 %v1566
    %2110 = vmatprep.subr.bf16.mxu0 %v1561
    %2111 = vmatpush2.bf16.msra.mxu0 %v1560
    %2112 = vmatprep.subr.bf16.mxu0 %v1555
    %2113 = vmatpush2.bf16.msra.mxu0 %v1554
    %2114 = vmatprep.mubr.bf16.mxu0 %v631
    %2115 = vmatmul.mubr.bf16.gmra.mxu0 %v630
    %v2116 = vpop.f32.mrf.mxu0
    %v2117 = vadd.f32 0.0, %v2116
    %v2118 = vpop.f32.mrf.mxu0
    %v2119 = vadd.f32 0.0, %v2118
    %v2120 = vpop.f32.mrf.mxu0
    %v2121 = vpop.f32.mrf.mxu0
    %2122 = vdwg.mxu0
    %2123 = vmatprep.subr.bf16.mxu0 %v1645
    %2124 = vmatpush1.bf16.msra.mxu0 %v1644
    %2125 = vmatprep.subr.bf16.mxu0 %v1639
    %2126 = vmatpush1.bf16.msra.mxu0 %v1638
    %2127 = vmatprep.subr.bf16.mxu0 %v1633
    %2128 = vmatpush1.bf16.msra.mxu0 %v1632
    %2129 = vmatprep.subr.bf16.mxu0 %v1627
    %2130 = vmatpush1.bf16.msra.mxu0 %v1626
    %2131 = vmatprep.subr.bf16.mxu0 %v1621
    %2132 = vmatpush1.bf16.msra.mxu0 %v1620
    %2133 = vmatprep.subr.bf16.mxu0 %v1615
    %2134 = vmatpush1.bf16.msra.mxu0 %v1614
    %2135 = vmatprep.subr.bf16.mxu0 %v1609
    %2136 = vmatpush1.bf16.msra.mxu0 %v1608
    %2137 = vmatprep.subr.bf16.mxu0 %v1603
    %2138 = vmatpush1.bf16.msra.mxu0 %v1602
    %2139 = vmatprep.subr.bf16.mxu0 %v1693
    %2140 = vmatpush2.bf16.msra.mxu0 %v1692
    %2141 = vmatprep.subr.bf16.mxu0 %v1687
    %2142 = vmatpush2.bf16.msra.mxu0 %v1686
    %2143 = vmatprep.subr.bf16.mxu0 %v1681
    %2144 = vmatpush2.bf16.msra.mxu0 %v1680
    %2145 = vmatprep.subr.bf16.mxu0 %v1675
    %2146 = vmatpush2.bf16.msra.mxu0 %v1674
    %2147 = vmatprep.subr.bf16.mxu0 %v1669
    %2148 = vmatpush2.bf16.msra.mxu0 %v1668
    %2149 = vmatprep.subr.bf16.mxu0 %v1663
    %2150 = vmatpush2.bf16.msra.mxu0 %v1662
    %2151 = vmatprep.subr.bf16.mxu0 %v1657
    %2152 = vmatpush2.bf16.msra.mxu0 %v1656
    %2153 = vmatprep.subr.bf16.mxu0 %v1651
    %2154 = vmatpush2.bf16.msra.mxu0 %v1650
    %2155 = vmatprep.mubr.bf16.mxu0 %v633
    %2156 = vmatmul.mubr.bf16.gmra.mxu0 %v632
    %v2157 = vpop.f32.mrf.mxu0
    %v2158 = vadd.f32 %v2117, %v2157
    %v2159 = vpop.f32.mrf.mxu0
    %v2160 = vadd.f32 %v2119, %v2159
    %v2161 = vpop.f32.mrf.mxu0
    %v2162 = vpop.f32.mrf.mxu0
    %2163 = vdwg.mxu0
    %2164 = vmatprep.subr.bf16.mxu0 %v1741
    %2165 = vmatpush1.bf16.msra.mxu0 %v1740
    %2166 = vmatprep.subr.bf16.mxu0 %v1735
    %2167 = vmatpush1.bf16.msra.mxu0 %v1734
    %2168 = vmatprep.subr.bf16.mxu0 %v1729
    %2169 = vmatpush1.bf16.msra.mxu0 %v1728
    %2170 = vmatprep.subr.bf16.mxu0 %v1723
    %2171 = vmatpush1.bf16.msra.mxu0 %v1722
    %2172 = vmatprep.subr.bf16.mxu0 %v1717
    %2173 = vmatpush1.bf16.msra.mxu0 %v1716
    %2174 = vmatprep.subr.bf16.mxu0 %v1711
    %2175 = vmatpush1.bf16.msra.mxu0 %v1710
    %2176 = vmatprep.subr.bf16.mxu0 %v1705
    %2177 = vmatpush1.bf16.msra.mxu0 %v1704
    %2178 = vmatprep.subr.bf16.mxu0 %v1699
    %2179 = vmatpush1.bf16.msra.mxu0 %v1698
    %2180 = vmatprep.subr.bf16.mxu0 %v1789
    %2181 = vmatpush2.bf16.msra.mxu0 %v1788
    %2182 = vmatprep.subr.bf16.mxu0 %v1783
    %2183 = vmatpush2.bf16.msra.mxu0 %v1782
    %2184 = vmatprep.subr.bf16.mxu0 %v1777
    %2185 = vmatpush2.bf16.msra.mxu0 %v1776
    %2186 = vmatprep.subr.bf16.mxu0 %v1771
    %2187 = vmatpush2.bf16.msra.mxu0 %v1770
    %2188 = vmatprep.subr.bf16.mxu0 %v1765
    %2189 = vmatpush2.bf16.msra.mxu0 %v1764
    %2190 = vmatprep.subr.bf16.mxu0 %v1759
    %2191 = vmatpush2.bf16.msra.mxu0 %v1758
    %2192 = vmatprep.subr.bf16.mxu0 %v1753
    %2193 = vmatpush2.bf16.msra.mxu0 %v1752
    %2194 = vmatprep.subr.bf16.mxu0 %v1747
    %2195 = vmatpush2.bf16.msra.mxu0 %v1746
    %2196 = vmatprep.mubr.bf16.mxu0 %v635
    %2197 = vmatmul.mubr.bf16.gmra.mxu0 %v634
    %v2198 = vpop.f32.mrf.mxu0
    %v2199 = vadd.f32 %v2158, %v2198
    %v2200 = vpop.f32.mrf.mxu0
    %v2201 = vadd.f32 %v2160, %v2200
    %v2202 = vpop.f32.mrf.mxu0
    %v2203 = vpop.f32.mrf.mxu0
    %2204 = vdwg.mxu0
    %2205 = vmatprep.subr.bf16.mxu0 %v1551
    %2206 = vmatpush1.bf16.msra.mxu0 %v1550
    %2207 = vmatprep.subr.bf16.mxu0 %v1545
    %2208 = vmatpush1.bf16.msra.mxu0 %v1544
    %2209 = vmatprep.subr.bf16.mxu0 %v1539
    %2210 = vmatpush1.bf16.msra.mxu0 %v1538
    %2211 = vmatprep.subr.bf16.mxu0 %v1533
    %2212 = vmatpush1.bf16.msra.mxu0 %v1532
    %2213 = vmatprep.subr.bf16.mxu0 %v1527
    %2214 = vmatpush1.bf16.msra.mxu0 %v1526
    %2215 = vmatprep.subr.bf16.mxu0 %v1521
    %2216 = vmatpush1.bf16.msra.mxu0 %v1520
    %2217 = vmatprep.subr.bf16.mxu0 %v1515
    %2218 = vmatpush1.bf16.msra.mxu0 %v1514
    %2219 = vmatprep.subr.bf16.mxu0 %v1509
    %2220 = vmatpush1.bf16.msra.mxu0 %v1508
    %2221 = vmatprep.subr.bf16.mxu0 %v1599
    %2222 = vmatpush2.bf16.msra.mxu0 %v1598
    %2223 = vmatprep.subr.bf16.mxu0 %v1593
    %2224 = vmatpush2.bf16.msra.mxu0 %v1592
    %2225 = vmatprep.subr.bf16.mxu0 %v1587
    %2226 = vmatpush2.bf16.msra.mxu0 %v1586
    %2227 = vmatprep.subr.bf16.mxu0 %v1581
    %2228 = vmatpush2.bf16.msra.mxu0 %v1580
    %2229 = vmatprep.subr.bf16.mxu0 %v1575
    %2230 = vmatpush2.bf16.msra.mxu0 %v1574
    %2231 = vmatprep.subr.bf16.mxu0 %v1569
    %2232 = vmatpush2.bf16.msra.mxu0 %v1568
    %2233 = vmatprep.subr.bf16.mxu0 %v1563
    %2234 = vmatpush2.bf16.msra.mxu0 %v1562
    %2235 = vmatprep.subr.bf16.mxu0 %v1557
    %2236 = vmatpush2.bf16.msra.mxu0 %v1556
    %2237 = vmatprep.mubr.bf16.mxu0 %v631
    %2238 = vmatmul.mubr.bf16.gmra.mxu0 %v630
    %v2239 = vpop.f32.mrf.mxu0
    %v2240 = vadd.f32 0.0, %v2239
    %v2241 = vpop.f32.mrf.mxu0
    %v2242 = vadd.f32 0.0, %v2241
    %v2243 = vpop.f32.mrf.mxu0
    %v2244 = vpop.f32.mrf.mxu0
    %2245 = vdwg.mxu0
    %2246 = vmatprep.subr.bf16.mxu0 %v1647
    %2247 = vmatpush1.bf16.msra.mxu0 %v1646
    %2248 = vmatprep.subr.bf16.mxu0 %v1641
    %2249 = vmatpush1.bf16.msra.mxu0 %v1640
    %2250 = vmatprep.subr.bf16.mxu0 %v1635
    %2251 = vmatpush1.bf16.msra.mxu0 %v1634
    %2252 = vmatprep.subr.bf16.mxu0 %v1629
    %2253 = vmatpush1.bf16.msra.mxu0 %v1628
    %2254 = vmatprep.subr.bf16.mxu0 %v1623
    %2255 = vmatpush1.bf16.msra.mxu0 %v1622
    %2256 = vmatprep.subr.bf16.mxu0 %v1617
    %2257 = vmatpush1.bf16.msra.mxu0 %v1616
    %2258 = vmatprep.subr.bf16.mxu0 %v1611
    %2259 = vmatpush1.bf16.msra.mxu0 %v1610
    %2260 = vmatprep.subr.bf16.mxu0 %v1605
    %2261 = vmatpush1.bf16.msra.mxu0 %v1604
    %2262 = vmatprep.subr.bf16.mxu0 %v1695
    %2263 = vmatpush2.bf16.msra.mxu0 %v1694
    %2264 = vmatprep.subr.bf16.mxu0 %v1689
    %2265 = vmatpush2.bf16.msra.mxu0 %v1688
    %2266 = vmatprep.subr.bf16.mxu0 %v1683
    %2267 = vmatpush2.bf16.msra.mxu0 %v1682
    %2268 = vmatprep.subr.bf16.mxu0 %v1677
    %2269 = vmatpush2.bf16.msra.mxu0 %v1676
    %2270 = vmatprep.subr.bf16.mxu0 %v1671
    %2271 = vmatpush2.bf16.msra.mxu0 %v1670
    %2272 = vmatprep.subr.bf16.mxu0 %v1665
    %2273 = vmatpush2.bf16.msra.mxu0 %v1664
    %2274 = vmatprep.subr.bf16.mxu0 %v1659
    %2275 = vmatpush2.bf16.msra.mxu0 %v1658
    %2276 = vmatprep.subr.bf16.mxu0 %v1653
    %2277 = vmatpush2.bf16.msra.mxu0 %v1652
    %2278 = vmatprep.mubr.bf16.mxu0 %v633
    %2279 = vmatmul.mubr.bf16.gmra.mxu0 %v632
    %v2280 = vpop.f32.mrf.mxu0
    %v2281 = vadd.f32 %v2240, %v2280
    %v2282 = vpop.f32.mrf.mxu0
    %v2283 = vadd.f32 %v2242, %v2282
    %v2284 = vpop.f32.mrf.mxu0
    %v2285 = vpop.f32.mrf.mxu0
    %2286 = vdwg.mxu0
    %2287 = vmatprep.subr.bf16.mxu0 %v1743
    %2288 = vmatpush1.bf16.msra.mxu0 %v1742
    %2289 = vmatprep.subr.bf16.mxu0 %v1737
    %2290 = vmatpush1.bf16.msra.mxu0 %v1736
    %2291 = vmatprep.subr.bf16.mxu0 %v1731
    %2292 = vmatpush1.bf16.msra.mxu0 %v1730
    %2293 = vmatprep.subr.bf16.mxu0 %v1725
    %2294 = vmatpush1.bf16.msra.mxu0 %v1724
    %2295 = vmatprep.subr.bf16.mxu0 %v1719
    %2296 = vmatpush1.bf16.msra.mxu0 %v1718
    %2297 = vmatprep.subr.bf16.mxu0 %v1713
    %2298 = vmatpush1.bf16.msra.mxu0 %v1712
    %2299 = vmatprep.subr.bf16.mxu0 %v1707
    %2300 = vmatpush1.bf16.msra.mxu0 %v1706
    %2301 = vmatprep.subr.bf16.mxu0 %v1701
    %2302 = vmatpush1.bf16.msra.mxu0 %v1700
    %2303 = vmatprep.subr.bf16.mxu0 %v1791
    %2304 = vmatpush2.bf16.msra.mxu0 %v1790
    %2305 = vmatprep.subr.bf16.mxu0 %v1785
    %2306 = vmatpush2.bf16.msra.mxu0 %v1784
    %2307 = vmatprep.subr.bf16.mxu0 %v1779
    %2308 = vmatpush2.bf16.msra.mxu0 %v1778
    %2309 = vmatprep.subr.bf16.mxu0 %v1773
    %2310 = vmatpush2.bf16.msra.mxu0 %v1772
    %2311 = vmatprep.subr.bf16.mxu0 %v1767
    %2312 = vmatpush2.bf16.msra.mxu0 %v1766
    %2313 = vmatprep.subr.bf16.mxu0 %v1761
    %2314 = vmatpush2.bf16.msra.mxu0 %v1760
    %2315 = vmatprep.subr.bf16.mxu0 %v1755
    %2316 = vmatpush2.bf16.msra.mxu0 %v1754
    %2317 = vmatprep.subr.bf16.mxu0 %v1749
    %2318 = vmatpush2.bf16.msra.mxu0 %v1748
    %2319 = vmatprep.mubr.bf16.mxu0 %v635
    %2320 = vmatmul.mubr.bf16.gmra.mxu0 %v634
    %v2321 = vpop.f32.mrf.mxu0
    %v2322 = vadd.f32 %v2281, %v2321
    %v2323 = vpop.f32.mrf.mxu0
    %v2324 = vadd.f32 %v2283, %v2323
    %v2325 = vpop.f32.mrf.mxu0
    %v2326 = vpop.f32.mrf.mxu0
    %2327 = vdwg.mxu0
    %2328 = vmatprep.subr.bf16.mxu0 %v1553
    %2329 = vmatpush1.bf16.msra.mxu0 %v1552
    %2330 = vmatprep.subr.bf16.mxu0 %v1547
    %2331 = vmatpush1.bf16.msra.mxu0 %v1546
    %2332 = vmatprep.subr.bf16.mxu0 %v1541
    %2333 = vmatpush1.bf16.msra.mxu0 %v1540
    %2334 = vmatprep.subr.bf16.mxu0 %v1535
    %2335 = vmatpush1.bf16.msra.mxu0 %v1534
    %2336 = vmatprep.subr.bf16.mxu0 %v1529
    %2337 = vmatpush1.bf16.msra.mxu0 %v1528
    %2338 = vmatprep.subr.bf16.mxu0 %v1523
    %2339 = vmatpush1.bf16.msra.mxu0 %v1522
    %2340 = vmatprep.subr.bf16.mxu0 %v1517
    %2341 = vmatpush1.bf16.msra.mxu0 %v1516
    %2342 = vmatprep.subr.bf16.mxu0 %v1511
    %2343 = vmatpush1.bf16.msra.mxu0 %v1510
    %2344 = vmatprep.subr.bf16.mxu0 %v1601
    %2345 = vmatpush2.bf16.msra.mxu0 %v1600
    %2346 = vmatprep.subr.bf16.mxu0 %v1595
    %2347 = vmatpush2.bf16.msra.mxu0 %v1594
    %2348 = vmatprep.subr.bf16.mxu0 %v1589
    %2349 = vmatpush2.bf16.msra.mxu0 %v1588
    %2350 = vmatprep.subr.bf16.mxu0 %v1583
    %2351 = vmatpush2.bf16.msra.mxu0 %v1582
    %2352 = vmatprep.subr.bf16.mxu0 %v1577
    %2353 = vmatpush2.bf16.msra.mxu0 %v1576
    %2354 = vmatprep.subr.bf16.mxu0 %v1571
    %2355 = vmatpush2.bf16.msra.mxu0 %v1570
    %2356 = vmatprep.subr.bf16.mxu0 %v1565
    %2357 = vmatpush2.bf16.msra.mxu0 %v1564
    %2358 = vmatprep.subr.bf16.mxu0 %v1559
    %2359 = vmatpush2.bf16.msra.mxu0 %v1558
    %2360 = vmatprep.mubr.bf16.mxu0 %v631
    %2361 = vmatmul.mubr.bf16.gmra.mxu0 %v630
    %v2362 = vpop.f32.mrf.mxu0
    %v2363 = vadd.f32 0.0, %v2362
    %v2364 = vpop.f32.mrf.mxu0
    %v2365 = vadd.f32 0.0, %v2364
    %v2366 = vpop.f32.mrf.mxu0
    %v2367 = vpop.f32.mrf.mxu0
    %2368 = vdwg.mxu0
    %2369 = vmatprep.subr.bf16.mxu0 %v1649
    %2370 = vmatpush1.bf16.msra.mxu0 %v1648
    %2371 = vmatprep.subr.bf16.mxu0 %v1643
    %2372 = vmatpush1.bf16.msra.mxu0 %v1642
    %2373 = vmatprep.subr.bf16.mxu0 %v1637
    %2374 = vmatpush1.bf16.msra.mxu0 %v1636
    %2375 = vmatprep.subr.bf16.mxu0 %v1631
    %2376 = vmatpush1.bf16.msra.mxu0 %v1630
    %2377 = vmatprep.subr.bf16.mxu0 %v1625
    %2378 = vmatpush1.bf16.msra.mxu0 %v1624
    %2379 = vmatprep.subr.bf16.mxu0 %v1619
    %2380 = vmatpush1.bf16.msra.mxu0 %v1618
    %2381 = vmatprep.subr.bf16.mxu0 %v1613
    %2382 = vmatpush1.bf16.msra.mxu0 %v1612
    %2383 = vmatprep.subr.bf16.mxu0 %v1607
    %2384 = vmatpush1.bf16.msra.mxu0 %v1606
    %2385 = vmatprep.subr.bf16.mxu0 %v1697
    %2386 = vmatpush2.bf16.msra.mxu0 %v1696
    %2387 = vmatprep.subr.bf16.mxu0 %v1691
    %2388 = vmatpush2.bf16.msra.mxu0 %v1690
    %2389 = vmatprep.subr.bf16.mxu0 %v1685
    %2390 = vmatpush2.bf16.msra.mxu0 %v1684
    %2391 = vmatprep.subr.bf16.mxu0 %v1679
    %2392 = vmatpush2.bf16.msra.mxu0 %v1678
    %2393 = vmatprep.subr.bf16.mxu0 %v1673
    %2394 = vmatpush2.bf16.msra.mxu0 %v1672
    %2395 = vmatprep.subr.bf16.mxu0 %v1667
    %2396 = vmatpush2.bf16.msra.mxu0 %v1666
    %2397 = vmatprep.subr.bf16.mxu0 %v1661
    %2398 = vmatpush2.bf16.msra.mxu0 %v1660
    %2399 = vmatprep.subr.bf16.mxu0 %v1655
    %2400 = vmatpush2.bf16.msra.mxu0 %v1654
    %2401 = vmatprep.mubr.bf16.mxu0 %v633
    %2402 = vmatmul.mubr.bf16.gmra.mxu0 %v632
    %v2403 = vpop.f32.mrf.mxu0
    %v2404 = vadd.f32 %v2363, %v2403
    %v2405 = vpop.f32.mrf.mxu0
    %v2406 = vadd.f32 %v2365, %v2405
    %v2407 = vpop.f32.mrf.mxu0
    %v2408 = vpop.f32.mrf.mxu0
    %2409 = vdwg.mxu0
    %2410 = vmatprep.subr.bf16.mxu0 %v1745
    %2411 = vmatpush1.bf16.msra.mxu0 %v1744
    %2412 = vmatprep.subr.bf16.mxu0 %v1739
    %2413 = vmatpush1.bf16.msra.mxu0 %v1738
    %2414 = vmatprep.subr.bf16.mxu0 %v1733
    %2415 = vmatpush1.bf16.msra.mxu0 %v1732
    %2416 = vmatprep.subr.bf16.mxu0 %v1727
    %2417 = vmatpush1.bf16.msra.mxu0 %v1726
    %2418 = vmatprep.subr.bf16.mxu0 %v1721
    %2419 = vmatpush1.bf16.msra.mxu0 %v1720
    %2420 = vmatprep.subr.bf16.mxu0 %v1715
    %2421 = vmatpush1.bf16.msra.mxu0 %v1714
    %2422 = vmatprep.subr.bf16.mxu0 %v1709
    %2423 = vmatpush1.bf16.msra.mxu0 %v1708
    %2424 = vmatprep.subr.bf16.mxu0 %v1703
    %2425 = vmatpush1.bf16.msra.mxu0 %v1702
    %2426 = vmatprep.subr.bf16.mxu0 %v1793
    %2427 = vmatpush2.bf16.msra.mxu0 %v1792
    %2428 = vmatprep.subr.bf16.mxu0 %v1787
    %2429 = vmatpush2.bf16.msra.mxu0 %v1786
    %2430 = vmatprep.subr.bf16.mxu0 %v1781
    %2431 = vmatpush2.bf16.msra.mxu0 %v1780
    %2432 = vmatprep.subr.bf16.mxu0 %v1775
    %2433 = vmatpush2.bf16.msra.mxu0 %v1774
    %2434 = vmatprep.subr.bf16.mxu0 %v1769
    %2435 = vmatpush2.bf16.msra.mxu0 %v1768
    %2436 = vmatprep.subr.bf16.mxu0 %v1763
    %2437 = vmatpush2.bf16.msra.mxu0 %v1762
    %2438 = vmatprep.subr.bf16.mxu0 %v1757
    %2439 = vmatpush2.bf16.msra.mxu0 %v1756
    %2440 = vmatprep.subr.bf16.mxu0 %v1751
    %2441 = vmatpush2.bf16.msra.mxu0 %v1750
    %2442 = vmatprep.mubr.bf16.mxu0 %v635
    %2443 = vmatmul.mubr.bf16.gmra.mxu0 %v634
    %v2444 = vpop.f32.mrf.mxu0
    %v2445 = vadd.f32 %v2404, %v2444
    %v2446 = vpop.f32.mrf.mxu0
    %v2447 = vadd.f32 %v2406, %v2446
    %v2448 = vpop.f32.mrf.mxu0
    %v2449 = vpop.f32.mrf.mxu0
    %2450 = vdwg.mxu0
    %v2451 = vunpack.c.l.bf16 %v59
    %v2452 = vunpack.c.h.bf16 %v59
    %v2453 = vunpack.c.l.bf16 %v60
    %v2454 = vunpack.c.h.bf16 %v60
    %v2455 = vunpack.c.l.bf16 %v61
    %v2456 = vunpack.c.h.bf16 %v61
    %v2457 = vunpack.c.l.bf16 %v62
    %v2458 = vunpack.c.h.bf16 %v62
    %v2459 = vunpack.c.l.bf16 %v63
    %v2460 = vunpack.c.h.bf16 %v63
    %v2461 = vunpack.c.l.bf16 %v64
    %v2462 = vunpack.c.h.bf16 %v64
    %v2463 = vunpack.c.l.bf16 %v65
    %v2464 = vunpack.c.h.bf16 %v65
    %v2465 = vunpack.c.l.bf16 %v66
    %v2466 = vunpack.c.h.bf16 %v66
    %v2467 = vunpack.c.l.bf16 %v67
    %v2468 = vunpack.c.h.bf16 %v67
    %v2469 = vunpack.c.l.bf16 %v68
    %v2470 = vunpack.c.h.bf16 %v68
    %v2471 = vunpack.c.l.bf16 %v69
    %v2472 = vunpack.c.h.bf16 %v69
    %v2473 = vunpack.c.l.bf16 %v70
    %v2474 = vunpack.c.h.bf16 %v70
    %v2475 = vunpack.c.l.bf16 %v71
    %v2476 = vunpack.c.h.bf16 %v71
    %v2477 = vunpack.c.l.bf16 %v72
    %v2478 = vunpack.c.h.bf16 %v72
    %v2479 = vunpack.c.l.bf16 %v73
    %v2480 = vunpack.c.h.bf16 %v73
    %v2481 = vunpack.c.l.bf16 %v74
    %v2482 = vunpack.c.h.bf16 %v74
    %v2483 = vunpack.c.l.bf16 %v75
    %v2484 = vunpack.c.h.bf16 %v75
    %v2485 = vunpack.c.l.bf16 %v76
    %v2486 = vunpack.c.h.bf16 %v76
    %v2487 = vunpack.c.l.bf16 %v77
    %v2488 = vunpack.c.h.bf16 %v77
    %v2489 = vunpack.c.l.bf16 %v78
    %v2490 = vunpack.c.h.bf16 %v78
    %v2491 = vunpack.c.l.bf16 %v79
    %v2492 = vunpack.c.h.bf16 %v79
    %v2493 = vunpack.c.l.bf16 %v80
    %v2494 = vunpack.c.h.bf16 %v80
    %v2495 = vunpack.c.l.bf16 %v81
    %v2496 = vunpack.c.h.bf16 %v81
    %v2497 = vunpack.c.l.bf16 %v82
    %v2498 = vunpack.c.h.bf16 %v82
    %v2505 = vcombine.low %v2199, %v2201
    %v2506 = vcombine.high %v2199, %v2201
    %v2507 = vcombine.low %v2322, %v2324
    %v2508 = vcombine.high %v2322, %v2324
    %v2509 = vcombine.low %v2445, %v2447
    %v2510 = vcombine.high %v2445, %v2447
    %v2512 = vunpack.c.l.s4 1966171168
    %v2513 = vunpack.c.0.s8 %v2512
    %v2514 = vlaneseq
    %v2515 = vshrl.u32 %v2514, 7
    %v2516 = vsub.s32 %v2513, %v2515
    %v2517 = vrot.slane %v2505, %v2516
    %v2519 = vunpack.c.l.s4 1966171168
    %v2520 = vunpack.c.0.s8 %v2519
    %v2521 = vlaneseq
    %v2522 = vshrl.u32 %v2521, 7
    %v2523 = vsub.s32 %v2520, %v2522
    %v2524 = vrot.slane %v2506, %v2523
    %v2526 = vunpack.c.l.s4 1966171168
    %v2527 = vunpack.c.0.s8 %v2526
    %v2528 = vlaneseq
    %v2529 = vshrl.u32 %v2528, 7
    %v2530 = vsub.s32 %v2527, %v2529
    %v2531 = vrot.slane %v2507, %v2530
    %v2533 = vunpack.c.l.s4 1966171168
    %v2534 = vunpack.c.0.s8 %v2533
    %v2535 = vlaneseq
    %v2536 = vshrl.u32 %v2535, 7
    %v2537 = vsub.s32 %v2534, %v2536
    %v2538 = vrot.slane %v2508, %v2537
    %v2540 = vunpack.c.l.s4 1966171168
    %v2541 = vunpack.c.0.s8 %v2540
    %v2542 = vlaneseq
    %v2543 = vshrl.u32 %v2542, 7
    %v2544 = vsub.s32 %v2541, %v2543
    %v2545 = vrot.slane %v2509, %v2544
    %v2547 = vunpack.c.l.s4 1966171168
    %v2548 = vunpack.c.0.s8 %v2547
    %v2549 = vlaneseq
    %v2550 = vshrl.u32 %v2549, 7
    %v2551 = vsub.s32 %v2548, %v2550
    %v2552 = vrot.slane %v2510, %v2551
    %v2553 = vcombine.low %v2517, %v2531
    %v2554 = vcombine.high %v2517, %v2531
    %v2555 = vcombine.low %v2524, %v2538
    %v2556 = vcombine.high %v2524, %v2538
    %v2557 = vcombine.high %v2545, %v2545
    %v2558 = vcombine.high %v2552, %v2552
    %v2560 = vunpack.c.l.s4 1966171168
    %v2561 = vunpack.c.0.s8 %v2560
    %v2562 = vlaneseq
    %v2563 = vshrl.u32 %v2562, 7
    %v2564 = vsub.s32 %v2561, %v2563
    %v2565 = vrot.slane %v2553, %v2564
    %v2567 = vunpack.c.l.s4 1966171168
    %v2568 = vunpack.c.0.s8 %v2567
    %v2569 = vlaneseq
    %v2570 = vshrl.u32 %v2569, 7
    %v2571 = vsub.s32 %v2568, %v2570
    %v2572 = vrot.slane %v2555, %v2571
    %v2574 = vunpack.c.l.s4 1966171168
    %v2575 = vunpack.c.0.s8 %v2574
    %v2576 = vlaneseq
    %v2577 = vshrl.u32 %v2576, 7
    %v2578 = vsub.s32 %v2575, %v2577
    %v2579 = vrot.slane %v2554, %v2578
    %v2581 = vunpack.c.l.s4 1966171168
    %v2582 = vunpack.c.0.s8 %v2581
    %v2583 = vlaneseq
    %v2584 = vshrl.u32 %v2583, 7
    %v2585 = vsub.s32 %v2582, %v2584
    %v2586 = vrot.slane %v2556, %v2585
    %v2588 = vunpack.c.l.s4 1966171168
    %v2589 = vunpack.c.0.s8 %v2588
    %v2590 = vlaneseq
    %v2591 = vshrl.u32 %v2590, 7
    %v2592 = vsub.s32 %v2589, %v2591
    %v2593 = vrot.slane %v2545, %v2592
    %v2595 = vunpack.c.l.s4 1966171168
    %v2596 = vunpack.c.0.s8 %v2595
    %v2597 = vlaneseq
    %v2598 = vshrl.u32 %v2597, 7
    %v2599 = vsub.s32 %v2596, %v2598
    %v2600 = vrot.slane %v2552, %v2599
    %v2602 = vunpack.c.l.s4 1966171168
    %v2603 = vunpack.c.0.s8 %v2602
    %v2604 = vlaneseq
    %v2605 = vshrl.u32 %v2604, 7
    %v2606 = vsub.s32 %v2603, %v2605
    %v2607 = vrot.slane %v2557, %v2606
    %v2609 = vunpack.c.l.s4 1966171168
    %v2610 = vunpack.c.0.s8 %v2609
    %v2611 = vlaneseq
    %v2612 = vshrl.u32 %v2611, 7
    %v2613 = vsub.s32 %v2610, %v2612
    %v2614 = vrot.slane %v2558, %v2613
    %v2615 = vcombine.low %v2565, %v2593
    %v2616 = vcombine.high %v2565, %v2593
    %v2617 = vcombine.low %v2572, %v2600
    %v2618 = vcombine.high %v2572, %v2600
    %v2619 = vcombine.low %v2579, %v2607
    %v2620 = vcombine.high %v2579, %v2607
    %v2621 = vcombine.low %v2586, %v2614
    %v2622 = vcombine.high %v2586, %v2614
    %v2623 = vlaneseq
    %v2624 = vshrl.u32 %v2623, 7
    %v2625 = vsub.s32 0, %v2624
    %v2626 = vrot.slane %v2615, %v2625
    %v2627 = vlaneseq
    %v2628 = vshrl.u32 %v2627, 7
    %v2629 = vsub.s32 1, %v2628
    %v2630 = vrot.slane %v2615, %v2629
    %v2631 = vlaneseq
    %v2632 = vshrl.u32 %v2631, 7
    %v2633 = vsub.s32 2, %v2632
    %v2634 = vrot.slane %v2615, %v2633
    %v2635 = vlaneseq
    %v2636 = vshrl.u32 %v2635, 7
    %v2637 = vsub.s32 3, %v2636
    %v2638 = vrot.slane %v2615, %v2637
    %v2639 = vlaneseq
    %v2640 = vshrl.u32 %v2639, 7
    %v2641 = vsub.s32 4, %v2640
    %v2642 = vrot.slane %v2615, %v2641
    %v2643 = vlaneseq
    %v2644 = vshrl.u32 %v2643, 7
    %v2645 = vsub.s32 5, %v2644
    %v2646 = vrot.slane %v2615, %v2645
    %v2647 = vlaneseq
    %v2648 = vshrl.u32 %v2647, 7
    %v2649 = vsub.s32 0, %v2648
    %v2650 = vrot.slane %v2619, %v2649
    %v2651 = vlaneseq
    %v2652 = vshrl.u32 %v2651, 7
    %v2653 = vsub.s32 1, %v2652
    %v2654 = vrot.slane %v2619, %v2653
    %v2655 = vlaneseq
    %v2656 = vshrl.u32 %v2655, 7
    %v2657 = vsub.s32 2, %v2656
    %v2658 = vrot.slane %v2619, %v2657
    %v2659 = vlaneseq
    %v2660 = vshrl.u32 %v2659, 7
    %v2661 = vsub.s32 3, %v2660
    %v2662 = vrot.slane %v2619, %v2661
    %v2663 = vlaneseq
    %v2664 = vshrl.u32 %v2663, 7
    %v2665 = vsub.s32 4, %v2664
    %v2666 = vrot.slane %v2619, %v2665
    %v2667 = vlaneseq
    %v2668 = vshrl.u32 %v2667, 7
    %v2669 = vsub.s32 5, %v2668
    %v2670 = vrot.slane %v2619, %v2669
    %v2671 = vlaneseq
    %v2672 = vshrl.u32 %v2671, 7
    %v2673 = vsub.s32 0, %v2672
    %v2674 = vrot.slane %v2616, %v2673
    %v2675 = vlaneseq
    %v2676 = vshrl.u32 %v2675, 7
    %v2677 = vsub.s32 1, %v2676
    %v2678 = vrot.slane %v2616, %v2677
    %v2679 = vlaneseq
    %v2680 = vshrl.u32 %v2679, 7
    %v2681 = vsub.s32 2, %v2680
    %v2682 = vrot.slane %v2616, %v2681
    %v2683 = vlaneseq
    %v2684 = vshrl.u32 %v2683, 7
    %v2685 = vsub.s32 3, %v2684
    %v2686 = vrot.slane %v2616, %v2685
    %v2687 = vlaneseq
    %v2688 = vshrl.u32 %v2687, 7
    %v2689 = vsub.s32 4, %v2688
    %v2690 = vrot.slane %v2616, %v2689
    %v2691 = vlaneseq
    %v2692 = vshrl.u32 %v2691, 7
    %v2693 = vsub.s32 5, %v2692
    %v2694 = vrot.slane %v2616, %v2693
    %v2695 = vlaneseq
    %v2696 = vshrl.u32 %v2695, 7
    %v2697 = vsub.s32 0, %v2696
    %v2698 = vrot.slane %v2620, %v2697
    %v2699 = vlaneseq
    %v2700 = vshrl.u32 %v2699, 7
    %v2701 = vsub.s32 1, %v2700
    %v2702 = vrot.slane %v2620, %v2701
    %v2703 = vlaneseq
    %v2704 = vshrl.u32 %v2703, 7
    %v2705 = vsub.s32 2, %v2704
    %v2706 = vrot.slane %v2620, %v2705
    %v2707 = vlaneseq
    %v2708 = vshrl.u32 %v2707, 7
    %v2709 = vsub.s32 3, %v2708
    %v2710 = vrot.slane %v2620, %v2709
    %v2711 = vlaneseq
    %v2712 = vshrl.u32 %v2711, 7
    %v2713 = vsub.s32 4, %v2712
    %v2714 = vrot.slane %v2620, %v2713
    %v2715 = vlaneseq
    %v2716 = vshrl.u32 %v2715, 7
    %v2717 = vsub.s32 5, %v2716
    %v2718 = vrot.slane %v2620, %v2717
    %v2719 = vlaneseq
    %v2720 = vshrl.u32 %v2719, 7
    %v2721 = vsub.s32 0, %v2720
    %v2722 = vrot.slane %v2617, %v2721
    %v2723 = vlaneseq
    %v2724 = vshrl.u32 %v2723, 7
    %v2725 = vsub.s32 1, %v2724
    %v2726 = vrot.slane %v2617, %v2725
    %v2727 = vlaneseq
    %v2728 = vshrl.u32 %v2727, 7
    %v2729 = vsub.s32 2, %v2728
    %v2730 = vrot.slane %v2617, %v2729
    %v2731 = vlaneseq
    %v2732 = vshrl.u32 %v2731, 7
    %v2733 = vsub.s32 3, %v2732
    %v2734 = vrot.slane %v2617, %v2733
    %v2735 = vlaneseq
    %v2736 = vshrl.u32 %v2735, 7
    %v2737 = vsub.s32 4, %v2736
    %v2738 = vrot.slane %v2617, %v2737
    %v2739 = vlaneseq
    %v2740 = vshrl.u32 %v2739, 7
    %v2741 = vsub.s32 5, %v2740
    %v2742 = vrot.slane %v2617, %v2741
    %v2743 = vlaneseq
    %v2744 = vshrl.u32 %v2743, 7
    %v2745 = vsub.s32 0, %v2744
    %v2746 = vrot.slane %v2621, %v2745
    %v2747 = vlaneseq
    %v2748 = vshrl.u32 %v2747, 7
    %v2749 = vsub.s32 1, %v2748
    %v2750 = vrot.slane %v2621, %v2749
    %v2751 = vlaneseq
    %v2752 = vshrl.u32 %v2751, 7
    %v2753 = vsub.s32 2, %v2752
    %v2754 = vrot.slane %v2621, %v2753
    %v2755 = vlaneseq
    %v2756 = vshrl.u32 %v2755, 7
    %v2757 = vsub.s32 3, %v2756
    %v2758 = vrot.slane %v2621, %v2757
    %v2759 = vlaneseq
    %v2760 = vshrl.u32 %v2759, 7
    %v2761 = vsub.s32 4, %v2760
    %v2762 = vrot.slane %v2621, %v2761
    %v2763 = vlaneseq
    %v2764 = vshrl.u32 %v2763, 7
    %v2765 = vsub.s32 5, %v2764
    %v2766 = vrot.slane %v2621, %v2765
    %v2767 = vlaneseq
    %v2768 = vshrl.u32 %v2767, 7
    %v2769 = vsub.s32 0, %v2768
    %v2770 = vrot.slane %v2618, %v2769
    %v2771 = vlaneseq
    %v2772 = vshrl.u32 %v2771, 7
    %v2773 = vsub.s32 1, %v2772
    %v2774 = vrot.slane %v2618, %v2773
    %v2775 = vlaneseq
    %v2776 = vshrl.u32 %v2775, 7
    %v2777 = vsub.s32 2, %v2776
    %v2778 = vrot.slane %v2618, %v2777
    %v2779 = vlaneseq
    %v2780 = vshrl.u32 %v2779, 7
    %v2781 = vsub.s32 3, %v2780
    %v2782 = vrot.slane %v2618, %v2781
    %v2783 = vlaneseq
    %v2784 = vshrl.u32 %v2783, 7
    %v2785 = vsub.s32 4, %v2784
    %v2786 = vrot.slane %v2618, %v2785
    %v2787 = vlaneseq
    %v2788 = vshrl.u32 %v2787, 7
    %v2789 = vsub.s32 5, %v2788
    %v2790 = vrot.slane %v2618, %v2789
    %v2791 = vlaneseq
    %v2792 = vshrl.u32 %v2791, 7
    %v2793 = vsub.s32 0, %v2792
    %v2794 = vrot.slane %v2622, %v2793
    %v2795 = vlaneseq
    %v2796 = vshrl.u32 %v2795, 7
    %v2797 = vsub.s32 1, %v2796
    %v2798 = vrot.slane %v2622, %v2797
    %v2799 = vlaneseq
    %v2800 = vshrl.u32 %v2799, 7
    %v2801 = vsub.s32 2, %v2800
    %v2802 = vrot.slane %v2622, %v2801
    %v2803 = vlaneseq
    %v2804 = vshrl.u32 %v2803, 7
    %v2805 = vsub.s32 3, %v2804
    %v2806 = vrot.slane %v2622, %v2805
    %v2807 = vlaneseq
    %v2808 = vshrl.u32 %v2807, 7
    %v2809 = vsub.s32 4, %v2808
    %v2810 = vrot.slane %v2622, %v2809
    %v2811 = vlaneseq
    %v2812 = vshrl.u32 %v2811, 7
    %v2813 = vsub.s32 5, %v2812
    %v2814 = vrot.slane %v2622, %v2813
    %v2863 = vmul.f32 %v2626, %v2451
    %v2864 = vmul.f32 %v2630, %v2452
    %v2865 = vmul.f32 %v2634, %v2453
    %v2866 = vmul.f32 %v2638, %v2454
    %v2867 = vmul.f32 %v2642, %v2455
    %v2868 = vmul.f32 %v2646, %v2456
    %v2869 = vmul.f32 %v2650, %v2457
    %v2870 = vmul.f32 %v2654, %v2458
    %v2871 = vmul.f32 %v2658, %v2459
    %v2872 = vmul.f32 %v2662, %v2460
    %v2873 = vmul.f32 %v2666, %v2461
    %v2874 = vmul.f32 %v2670, %v2462
    %v2875 = vmul.f32 %v2674, %v2463
    %v2876 = vmul.f32 %v2678, %v2464
    %v2877 = vmul.f32 %v2682, %v2465
    %v2878 = vmul.f32 %v2686, %v2466
    %v2879 = vmul.f32 %v2690, %v2467
    %v2880 = vmul.f32 %v2694, %v2468
    %v2881 = vmul.f32 %v2698, %v2469
    %v2882 = vmul.f32 %v2702, %v2470
    %v2883 = vmul.f32 %v2706, %v2471
    %v2884 = vmul.f32 %v2710, %v2472
    %v2885 = vmul.f32 %v2714, %v2473
    %v2886 = vmul.f32 %v2718, %v2474
    %v2887 = vmul.f32 %v2722, %v2475
    %v2888 = vmul.f32 %v2726, %v2476
    %v2889 = vmul.f32 %v2730, %v2477
    %v2890 = vmul.f32 %v2734, %v2478
    %v2891 = vmul.f32 %v2738, %v2479
    %v2892 = vmul.f32 %v2742, %v2480
    %v2893 = vmul.f32 %v2746, %v2481
    %v2894 = vmul.f32 %v2750, %v2482
    %v2895 = vmul.f32 %v2754, %v2483
    %v2896 = vmul.f32 %v2758, %v2484
    %v2897 = vmul.f32 %v2762, %v2485
    %v2898 = vmul.f32 %v2766, %v2486
    %v2899 = vmul.f32 %v2770, %v2487
    %v2900 = vmul.f32 %v2774, %v2488
    %v2901 = vmul.f32 %v2778, %v2489
    %v2902 = vmul.f32 %v2782, %v2490
    %v2903 = vmul.f32 %v2786, %v2491
    %v2904 = vmul.f32 %v2790, %v2492
    %v2905 = vmul.f32 %v2794, %v2493
    %v2906 = vmul.f32 %v2798, %v2494
    %v2907 = vmul.f32 %v2802, %v2495
    %v2908 = vmul.f32 %v2806, %v2496
    %v2909 = vmul.f32 %v2810, %v2497
    %v2910 = vmul.f32 %v2814, %v2498
    %v2911 = vadd.f32 %v2863, %v2864
    %v2912 = vadd.f32 %v2911, %v2865
    %v2913 = vadd.f32 %v2912, %v2866
    %v2914 = vadd.f32 %v2913, %v2867
    %v2915 = vadd.f32 %v2914, %v2868
    %2916 = vadd.xlane.f32.xlu0 %v2915
    %v2917 = vpop.xlane.xlu0 %2916
    %v2918 = vadd.f32 %v2869, %v2870
    %v2919 = vadd.f32 %v2918, %v2871
    %v2920 = vadd.f32 %v2919, %v2872
    %v2921 = vadd.f32 %v2920, %v2873
    %v2922 = vadd.f32 %v2921, %v2874
    %2923 = vadd.xlane.f32.xlu0 %v2922
    %v2924 = vpop.xlane.xlu0 %2923
    %v2925 = vadd.f32 %v2875, %v2876
    %v2926 = vadd.f32 %v2925, %v2877
    %v2927 = vadd.f32 %v2926, %v2878
    %v2928 = vadd.f32 %v2927, %v2879
    %v2929 = vadd.f32 %v2928, %v2880
    %2930 = vadd.xlane.f32.xlu0 %v2929
    %v2931 = vpop.xlane.xlu0 %2930
    %v2932 = vadd.f32 %v2881, %v2882
    %v2933 = vadd.f32 %v2932, %v2883
    %v2934 = vadd.f32 %v2933, %v2884
    %v2935 = vadd.f32 %v2934, %v2885
    %v2936 = vadd.f32 %v2935, %v2886
    %2937 = vadd.xlane.f32.xlu0 %v2936
    %v2938 = vpop.xlane.xlu0 %2937
    %v2939 = vadd.f32 %v2887, %v2888
    %v2940 = vadd.f32 %v2939, %v2889
    %v2941 = vadd.f32 %v2940, %v2890
    %v2942 = vadd.f32 %v2941, %v2891
    %v2943 = vadd.f32 %v2942, %v2892
    %2944 = vadd.xlane.f32.xlu0 %v2943
    %v2945 = vpop.xlane.xlu0 %2944
    %v2946 = vadd.f32 %v2893, %v2894
    %v2947 = vadd.f32 %v2946, %v2895
    %v2948 = vadd.f32 %v2947, %v2896
    %v2949 = vadd.f32 %v2948, %v2897
    %v2950 = vadd.f32 %v2949, %v2898
    %2951 = vadd.xlane.f32.xlu0 %v2950
    %v2952 = vpop.xlane.xlu0 %2951
    %v2953 = vadd.f32 %v2899, %v2900
    %v2954 = vadd.f32 %v2953, %v2901
    %v2955 = vadd.f32 %v2954, %v2902
    %v2956 = vadd.f32 %v2955, %v2903
    %v2957 = vadd.f32 %v2956, %v2904
    %2958 = vadd.xlane.f32.xlu0 %v2957
    %v2959 = vpop.xlane.xlu0 %2958
    %v2960 = vadd.f32 %v2905, %v2906
    %v2961 = vadd.f32 %v2960, %v2907
    %v2962 = vadd.f32 %v2961, %v2908
    %v2963 = vadd.f32 %v2962, %v2909
    %v2964 = vadd.f32 %v2963, %v2910
    %2965 = vadd.xlane.f32.xlu0 %v2964
    %v2966 = vpop.xlane.xlu0 %2965
    %v2967 = vld [vmem:[%s1] sm:$0xff]
    %2969 = vset.pattern.permute.xlu0 0
    %2970 = vperm.xlu0 %2969, %v2967
    %v2971 = vpop.permute.xlu0 %2970
    %v2972 = vlaneseq
    %v2973 = vshrl.u32 %v2972, 7
    %v2974 = vsub.s32 0, %v2973
    %v2975 = vrot.slane %v2971, %v2974
    %v2976 = vlaneseq
    %v2977 = vshrl.u32 %v2976, 7
    %v2978 = vsub.s32 1, %v2977
    %v2979 = vrot.slane %v2971, %v2978
    %v2980 = vlaneseq
    %v2981 = vshrl.u32 %v2980, 7
    %v2982 = vsub.s32 2, %v2981
    %v2983 = vrot.slane %v2971, %v2982
    %v2984 = vlaneseq
    %v2985 = vshrl.u32 %v2984, 7
    %v2986 = vsub.s32 3, %v2985
    %v2987 = vrot.slane %v2971, %v2986
    %v2988 = vlaneseq
    %v2989 = vshrl.u32 %v2988, 7
    %v2990 = vsub.s32 4, %v2989
    %v2991 = vrot.slane %v2971, %v2990
    %v2992 = vlaneseq
    %v2993 = vshrl.u32 %v2992, 7
    %v2994 = vsub.s32 5, %v2993
    %v2995 = vrot.slane %v2971, %v2994
    %v2996 = vlaneseq
    %v2997 = vshrl.u32 %v2996, 7
    %v2998 = vsub.s32 6, %v2997
    %v2999 = vrot.slane %v2971, %v2998
    %v3000 = vlaneseq
    %v3001 = vshrl.u32 %v3000, 7
    %v3002 = vsub.s32 7, %v3001
    %v3003 = vrot.slane %v2971, %v3002
    %v3012 = vadd.f32 %v2917, %v2975
    %v3013 = vadd.f32 %v2924, %v2979
    %v3014 = vadd.f32 %v2931, %v2983
    %v3015 = vadd.f32 %v2938, %v2987
    %v3016 = vadd.f32 %v2945, %v2991
    %v3017 = vadd.f32 %v2952, %v2995
    %v3018 = vadd.f32 %v2959, %v2999
    %v3019 = vadd.f32 %v2966, %v3003
    %3028 = vset.pattern.permute.xlu0 0
    %3029 = vperm.xlu0 %3028, %v3012
    %v3030 = vpop.permute.xlu0 %3029
    %3031 = vset.pattern.permute.xlu0 0
    %3032 = vperm.xlu0 %3031, %v3013
    %v3033 = vpop.permute.xlu0 %3032
    %3034 = vset.pattern.permute.xlu0 0
    %3035 = vperm.xlu0 %3034, %v3014
    %v3036 = vpop.permute.xlu0 %3035
    %3037 = vset.pattern.permute.xlu0 0
    %3038 = vperm.xlu0 %3037, %v3015
    %v3039 = vpop.permute.xlu0 %3038
    %3040 = vset.pattern.permute.xlu0 0
    %3041 = vperm.xlu0 %3040, %v3016
    %v3042 = vpop.permute.xlu0 %3041
    %3043 = vset.pattern.permute.xlu0 0
    %3044 = vperm.xlu0 %3043, %v3017
    %v3045 = vpop.permute.xlu0 %3044
    %3046 = vset.pattern.permute.xlu0 0
    %3047 = vperm.xlu0 %3046, %v3018
    %v3048 = vpop.permute.xlu0 %3047
    %3049 = vset.pattern.permute.xlu0 0
    %3050 = vperm.xlu0 %3049, %v3019
    %v3051 = vpop.permute.xlu0 %3050
    %v3052 = vlaneseq
    %v3053 = vand.u32 %v3052, 127
    %v3054 = vlaneseq
    %v3055 = vshrl.u32 %v3054, 7
    %v3056 = vsub.s32 %v3053, %v3055
    %v3057 = vrot.slane %v3030, %v3056
    %v3058 = vlaneseq
    %v3059 = vshrl.u32 %v3058, 7
    %v3060 = vsub.s32 %v3053, %v3059
    %v3061 = vrot.slane %v3033, %v3060
    %v3062 = vlaneseq
    %v3063 = vshrl.u32 %v3062, 7
    %v3064 = vsub.s32 %v3053, %v3063
    %v3065 = vrot.slane %v3036, %v3064
    %v3066 = vlaneseq
    %v3067 = vshrl.u32 %v3066, 7
    %v3068 = vsub.s32 %v3053, %v3067
    %v3069 = vrot.slane %v3039, %v3068
    %v3070 = vlaneseq
    %v3071 = vshrl.u32 %v3070, 7
    %v3072 = vsub.s32 %v3053, %v3071
    %v3073 = vrot.slane %v3042, %v3072
    %v3074 = vlaneseq
    %v3075 = vshrl.u32 %v3074, 7
    %v3076 = vsub.s32 %v3053, %v3075
    %v3077 = vrot.slane %v3045, %v3076
    %v3078 = vlaneseq
    %v3079 = vshrl.u32 %v3078, 7
    %v3080 = vsub.s32 %v3053, %v3079
    %v3081 = vrot.slane %v3048, %v3080
    %v3082 = vlaneseq
    %v3083 = vshrl.u32 %v3082, 7
    %v3084 = vsub.s32 %v3053, %v3083
    %v3085 = vrot.slane %v3051, %v3084
    %v3086 = vsel %vm540, %v3061, %v3057
    %v3087 = vsel %vm543, %v3065, %v3086
    %v3088 = vsel %vm546, %v3069, %v3087
    %v3089 = vsel %vm549, %v3073, %v3088
    %v3090 = vsel %vm552, %v3077, %v3089
    %v3091 = vsel %vm555, %v3081, %v3090
    %v3092 = vsel %vm558, %v3085, %v3091
    %vm3094 = vcmask 64512
    %v3095 = vsel %vm3094, %v3092, -inf
    %3096 = vmax.xlane.f32.xlu0 %v3095
    %v3097 = vpop.xlane.xlu0 %3096
    %v3099 = vlaneseq
    %v3100 = vshrl.u32 %v3099, 7
    %v3101 = vsub.s32 0, %v3100
    %v3102 = vrot.slane %v3097, %v3101
    %v3103 = vlaneseq
    %v3104 = vshrl.u32 %v3103, 7
    %v3105 = vsub.s32 1, %v3104
    %v3106 = vrot.slane %v3097, %v3105
    %v3107 = vlaneseq
    %v3108 = vshrl.u32 %v3107, 7
    %v3109 = vsub.s32 2, %v3108
    %v3110 = vrot.slane %v3097, %v3109
    %v3111 = vlaneseq
    %v3112 = vshrl.u32 %v3111, 7
    %v3113 = vsub.s32 3, %v3112
    %v3114 = vrot.slane %v3097, %v3113
    %v3115 = vlaneseq
    %v3116 = vshrl.u32 %v3115, 7
    %v3117 = vsub.s32 4, %v3116
    %v3118 = vrot.slane %v3097, %v3117
    %v3119 = vlaneseq
    %v3120 = vshrl.u32 %v3119, 7
    %v3121 = vsub.s32 5, %v3120
    %v3122 = vrot.slane %v3097, %v3121
    %v3123 = vlaneseq
    %v3124 = vshrl.u32 %v3123, 7
    %v3125 = vsub.s32 6, %v3124
    %v3126 = vrot.slane %v3097, %v3125
    %v3127 = vlaneseq
    %v3128 = vshrl.u32 %v3127, 7
    %v3129 = vsub.s32 7, %v3128
    %v3130 = vrot.slane %v3097, %v3129
    %v3139 = vsub.f32 %v3012, %v3102
    %v3140 = vsub.f32 %v3013, %v3106
    %v3141 = vsub.f32 %v3014, %v3110
    %v3142 = vsub.f32 %v3015, %v3114
    %v3143 = vsub.f32 %v3016, %v3118
    %v3144 = vsub.f32 %v3017, %v3122
    %v3145 = vsub.f32 %v3018, %v3126
    %v3146 = vsub.f32 %v3019, %v3130
    %v3147 = vmul.f32 %v3139, 1.442695
    %v3148 = vpow.pop %v3147
    %v3149 = vmul.f32 %v3140, 1.442695
    %v3150 = vpow.pop %v3149
    %v3151 = vmul.f32 %v3141, 1.442695
    %v3152 = vpow.pop %v3151
    %v3153 = vmul.f32 %v3142, 1.442695
    %v3154 = vpow.pop %v3153
    %v3155 = vmul.f32 %v3143, 1.442695
    %v3156 = vpow.pop %v3155
    %v3157 = vmul.f32 %v3144, 1.442695
    %v3158 = vpow.pop %v3157
    %v3159 = vmul.f32 %v3145, 1.442695
    %v3160 = vpow.pop %v3159
    %v3161 = vmul.f32 %v3146, 1.442695
    %v3162 = vpow.pop %v3161
    %3171 = vset.pattern.permute.xlu0 0
    %3172 = vperm.xlu0 %3171, %v3148
    %v3173 = vpop.permute.xlu0 %3172
    %3174 = vset.pattern.permute.xlu0 0
    %3175 = vperm.xlu0 %3174, %v3150
    %v3176 = vpop.permute.xlu0 %3175
    %3177 = vset.pattern.permute.xlu0 0
    %3178 = vperm.xlu0 %3177, %v3152
    %v3179 = vpop.permute.xlu0 %3178
    %3180 = vset.pattern.permute.xlu0 0
    %3181 = vperm.xlu0 %3180, %v3154
    %v3182 = vpop.permute.xlu0 %3181
    %3183 = vset.pattern.permute.xlu0 0
    %3184 = vperm.xlu0 %3183, %v3156
    %v3185 = vpop.permute.xlu0 %3184
    %3186 = vset.pattern.permute.xlu0 0
    %3187 = vperm.xlu0 %3186, %v3158
    %v3188 = vpop.permute.xlu0 %3187
    %3189 = vset.pattern.permute.xlu0 0
    %3190 = vperm.xlu0 %3189, %v3160
    %v3191 = vpop.permute.xlu0 %3190
    %3192 = vset.pattern.permute.xlu0 0
    %3193 = vperm.xlu0 %3192, %v3162
    %v3194 = vpop.permute.xlu0 %3193
    %v3195 = vlaneseq
    %v3196 = vshrl.u32 %v3195, 7
    %v3197 = vsub.s32 %v3053, %v3196
    %v3198 = vrot.slane %v3173, %v3197
    %v3199 = vlaneseq
    %v3200 = vshrl.u32 %v3199, 7
    %v3201 = vsub.s32 %v3053, %v3200
    %v3202 = vrot.slane %v3176, %v3201
    %v3203 = vlaneseq
    %v3204 = vshrl.u32 %v3203, 7
    %v3205 = vsub.s32 %v3053, %v3204
    %v3206 = vrot.slane %v3179, %v3205
    %v3207 = vlaneseq
    %v3208 = vshrl.u32 %v3207, 7
    %v3209 = vsub.s32 %v3053, %v3208
    %v3210 = vrot.slane %v3182, %v3209
    %v3211 = vlaneseq
    %v3212 = vshrl.u32 %v3211, 7
    %v3213 = vsub.s32 %v3053, %v3212
    %v3214 = vrot.slane %v3185, %v3213
    %v3215 = vlaneseq
    %v3216 = vshrl.u32 %v3215, 7
    %v3217 = vsub.s32 %v3053, %v3216
    %v3218 = vrot.slane %v3188, %v3217
    %v3219 = vlaneseq
    %v3220 = vshrl.u32 %v3219, 7
    %v3221 = vsub.s32 %v3053, %v3220
    %v3222 = vrot.slane %v3191, %v3221
    %v3223 = vlaneseq
    %v3224 = vshrl.u32 %v3223, 7
    %v3225 = vsub.s32 %v3053, %v3224
    %v3226 = vrot.slane %v3194, %v3225
    %v3227 = vsel %vm540, %v3202, %v3198
    %v3228 = vsel %vm543, %v3206, %v3227
    %v3229 = vsel %vm546, %v3210, %v3228
    %v3230 = vsel %vm549, %v3214, %v3229
    %v3231 = vsel %vm552, %v3218, %v3230
    %v3232 = vsel %vm555, %v3222, %v3231
    %v3233 = vsel %vm558, %v3226, %v3232
    %v3235 = vsel %vm3094, %v3233, 0.0
    %3236 = vadd.xlane.f32.xlu0 %v3235
    %v3237 = vpop.xlane.xlu0 %3236
    %v3238 = vrcp.pop %v3237
    %v3240 = vlaneseq
    %v3241 = vshrl.u32 %v3240, 7
    %v3242 = vsub.s32 0, %v3241
    %v3243 = vrot.slane %v3238, %v3242
    %v3244 = vlaneseq
    %v3245 = vshrl.u32 %v3244, 7
    %v3246 = vsub.s32 1, %v3245
    %v3247 = vrot.slane %v3238, %v3246
    %v3248 = vlaneseq
    %v3249 = vshrl.u32 %v3248, 7
    %v3250 = vsub.s32 2, %v3249
    %v3251 = vrot.slane %v3238, %v3250
    %v3252 = vlaneseq
    %v3253 = vshrl.u32 %v3252, 7
    %v3254 = vsub.s32 3, %v3253
    %v3255 = vrot.slane %v3238, %v3254
    %v3256 = vlaneseq
    %v3257 = vshrl.u32 %v3256, 7
    %v3258 = vsub.s32 4, %v3257
    %v3259 = vrot.slane %v3238, %v3258
    %v3260 = vlaneseq
    %v3261 = vshrl.u32 %v3260, 7
    %v3262 = vsub.s32 5, %v3261
    %v3263 = vrot.slane %v3238, %v3262
    %v3264 = vlaneseq
    %v3265 = vshrl.u32 %v3264, 7
    %v3266 = vsub.s32 6, %v3265
    %v3267 = vrot.slane %v3238, %v3266
    %v3268 = vlaneseq
    %v3269 = vshrl.u32 %v3268, 7
    %v3270 = vsub.s32 7, %v3269
    %v3271 = vrot.slane %v3238, %v3270
    %v3280 = vmul.f32 %v3148, %v3243
    %v3281 = vmul.f32 %v3150, %v3247
    %v3282 = vmul.f32 %v3152, %v3251
    %v3283 = vmul.f32 %v3154, %v3255
    %v3284 = vmul.f32 %v3156, %v3259
    %v3285 = vmul.f32 %v3158, %v3263
    %v3286 = vmul.f32 %v3160, %v3267
    %v3287 = vmul.f32 %v3162, %v3271
    %3289 = vset.pattern.permute.xlu0 0
    %3290 = vperm.xlu0 %3289, %v3280
    %v3291 = vpop.permute.xlu0 %3290
    %3294 = vset.pattern.permute.xlu0 0
    %3295 = vperm.xlu0 %3294, %v3281
    %v3296 = vpop.permute.xlu0 %3295
    %3299 = vset.pattern.permute.xlu0 0
    %3300 = vperm.xlu0 %3299, %v3282
    %v3301 = vpop.permute.xlu0 %3300
    %3304 = vset.pattern.permute.xlu0 0
    %3305 = vperm.xlu0 %3304, %v3283
    %v3306 = vpop.permute.xlu0 %3305
    %3309 = vset.pattern.permute.xlu0 0
    %3310 = vperm.xlu0 %3309, %v3284
    %v3311 = vpop.permute.xlu0 %3310
    %3314 = vset.pattern.permute.xlu0 0
    %3315 = vperm.xlu0 %3314, %v3285
    %v3316 = vpop.permute.xlu0 %3315
    %3319 = vset.pattern.permute.xlu0 0
    %3320 = vperm.xlu0 %3319, %v3286
    %v3321 = vpop.permute.xlu0 %3320
    %3324 = vset.pattern.permute.xlu0 0
    %3325 = vperm.xlu0 %3324, %v3287
    %v3326 = vpop.permute.xlu0 %3325
    %v3328 = vmul.f32 %v3291, %v2451
    %v3329 = vmul.f32 %v3291, %v2452
    %v3330 = vmul.f32 %v3291, %v2453
    %v3331 = vmul.f32 %v3291, %v2454
    %v3332 = vmul.f32 %v3291, %v2455
    %v3333 = vmul.f32 %v3291, %v2456
    %v3334 = vmul.f32 %v3296, %v2457
    %v3335 = vmul.f32 %v3296, %v2458
    %v3336 = vmul.f32 %v3296, %v2459
    %v3337 = vmul.f32 %v3296, %v2460
    %v3338 = vmul.f32 %v3296, %v2461
    %v3339 = vmul.f32 %v3296, %v2462
    %v3340 = vmul.f32 %v3301, %v2463
    %v3341 = vmul.f32 %v3301, %v2464
    %v3342 = vmul.f32 %v3301, %v2465
    %v3343 = vmul.f32 %v3301, %v2466
    %v3344 = vmul.f32 %v3301, %v2467
    %v3345 = vmul.f32 %v3301, %v2468
    %v3346 = vmul.f32 %v3306, %v2469
    %v3347 = vmul.f32 %v3306, %v2470
    %v3348 = vmul.f32 %v3306, %v2471
    %v3349 = vmul.f32 %v3306, %v2472
    %v3350 = vmul.f32 %v3306, %v2473
    %v3351 = vmul.f32 %v3306, %v2474
    %v3352 = vmul.f32 %v3311, %v2475
    %v3353 = vmul.f32 %v3311, %v2476
    %v3354 = vmul.f32 %v3311, %v2477
    %v3355 = vmul.f32 %v3311, %v2478
    %v3356 = vmul.f32 %v3311, %v2479
    %v3357 = vmul.f32 %v3311, %v2480
    %v3358 = vmul.f32 %v3316, %v2481
    %v3359 = vmul.f32 %v3316, %v2482
    %v3360 = vmul.f32 %v3316, %v2483
    %v3361 = vmul.f32 %v3316, %v2484
    %v3362 = vmul.f32 %v3316, %v2485
    %v3363 = vmul.f32 %v3316, %v2486
    %v3364 = vmul.f32 %v3321, %v2487
    %v3365 = vmul.f32 %v3321, %v2488
    %v3366 = vmul.f32 %v3321, %v2489
    %v3367 = vmul.f32 %v3321, %v2490
    %v3368 = vmul.f32 %v3321, %v2491
    %v3369 = vmul.f32 %v3321, %v2492
    %v3370 = vmul.f32 %v3326, %v2493
    %v3371 = vmul.f32 %v3326, %v2494
    %v3372 = vmul.f32 %v3326, %v2495
    %v3373 = vmul.f32 %v3326, %v2496
    %v3374 = vmul.f32 %v3326, %v2497
    %v3375 = vmul.f32 %v3326, %v2498
    %v3376 = vrot.slane %v3328, 4
    %v3377 = vadd.f32 %v3328, %v3376
    %v3378 = vrot.slane %v3377, 2
    %v3379 = vadd.f32 %v3377, %v3378
    %v3380 = vrot.slane %v3379, 1
    %v3381 = vadd.f32 %v3379, %v3380
    %v3382 = vrot.slane %v3329, 4
    %v3383 = vadd.f32 %v3329, %v3382
    %v3384 = vrot.slane %v3383, 2
    %v3385 = vadd.f32 %v3383, %v3384
    %v3386 = vrot.slane %v3385, 1
    %v3387 = vadd.f32 %v3385, %v3386
    %v3388 = vrot.slane %v3330, 4
    %v3389 = vadd.f32 %v3330, %v3388
    %v3390 = vrot.slane %v3389, 2
    %v3391 = vadd.f32 %v3389, %v3390
    %v3392 = vrot.slane %v3391, 1
    %v3393 = vadd.f32 %v3391, %v3392
    %v3394 = vrot.slane %v3331, 4
    %v3395 = vadd.f32 %v3331, %v3394
    %v3396 = vrot.slane %v3395, 2
    %v3397 = vadd.f32 %v3395, %v3396
    %v3398 = vrot.slane %v3397, 1
    %v3399 = vadd.f32 %v3397, %v3398
    %v3400 = vrot.slane %v3332, 4
    %v3401 = vadd.f32 %v3332, %v3400
    %v3402 = vrot.slane %v3401, 2
    %v3403 = vadd.f32 %v3401, %v3402
    %v3404 = vrot.slane %v3403, 1
    %v3405 = vadd.f32 %v3403, %v3404
    %v3406 = vrot.slane %v3333, 4
    %v3407 = vadd.f32 %v3333, %v3406
    %v3408 = vrot.slane %v3407, 2
    %v3409 = vadd.f32 %v3407, %v3408
    %v3410 = vrot.slane %v3409, 1
    %v3411 = vadd.f32 %v3409, %v3410
    %v3412 = vrot.slane %v3334, 4
    %v3413 = vadd.f32 %v3334, %v3412
    %v3414 = vrot.slane %v3413, 2
    %v3415 = vadd.f32 %v3413, %v3414
    %v3416 = vrot.slane %v3415, 1
    %v3417 = vadd.f32 %v3415, %v3416
    %v3418 = vrot.slane %v3335, 4
    %v3419 = vadd.f32 %v3335, %v3418
    %v3420 = vrot.slane %v3419, 2
    %v3421 = vadd.f32 %v3419, %v3420
    %v3422 = vrot.slane %v3421, 1
    %v3423 = vadd.f32 %v3421, %v3422
    %v3424 = vrot.slane %v3336, 4
    %v3425 = vadd.f32 %v3336, %v3424
    %v3426 = vrot.slane %v3425, 2
    %v3427 = vadd.f32 %v3425, %v3426
    %v3428 = vrot.slane %v3427, 1
    %v3429 = vadd.f32 %v3427, %v3428
    %v3430 = vrot.slane %v3337, 4
    %v3431 = vadd.f32 %v3337, %v3430
    %v3432 = vrot.slane %v3431, 2
    %v3433 = vadd.f32 %v3431, %v3432
    %v3434 = vrot.slane %v3433, 1
    %v3435 = vadd.f32 %v3433, %v3434
    %v3436 = vrot.slane %v3338, 4
    %v3437 = vadd.f32 %v3338, %v3436
    %v3438 = vrot.slane %v3437, 2
    %v3439 = vadd.f32 %v3437, %v3438
    %v3440 = vrot.slane %v3439, 1
    %v3441 = vadd.f32 %v3439, %v3440
    %v3442 = vrot.slane %v3339, 4
    %v3443 = vadd.f32 %v3339, %v3442
    %v3444 = vrot.slane %v3443, 2
    %v3445 = vadd.f32 %v3443, %v3444
    %v3446 = vrot.slane %v3445, 1
    %v3447 = vadd.f32 %v3445, %v3446
    %v3448 = vrot.slane %v3340, 4
    %v3449 = vadd.f32 %v3340, %v3448
    %v3450 = vrot.slane %v3449, 2
    %v3451 = vadd.f32 %v3449, %v3450
    %v3452 = vrot.slane %v3451, 1
    %v3453 = vadd.f32 %v3451, %v3452
    %v3454 = vrot.slane %v3341, 4
    %v3455 = vadd.f32 %v3341, %v3454
    %v3456 = vrot.slane %v3455, 2
    %v3457 = vadd.f32 %v3455, %v3456
    %v3458 = vrot.slane %v3457, 1
    %v3459 = vadd.f32 %v3457, %v3458
    %v3460 = vrot.slane %v3342, 4
    %v3461 = vadd.f32 %v3342, %v3460
    %v3462 = vrot.slane %v3461, 2
    %v3463 = vadd.f32 %v3461, %v3462
    %v3464 = vrot.slane %v3463, 1
    %v3465 = vadd.f32 %v3463, %v3464
    %v3466 = vrot.slane %v3343, 4
    %v3467 = vadd.f32 %v3343, %v3466
    %v3468 = vrot.slane %v3467, 2
    %v3469 = vadd.f32 %v3467, %v3468
    %v3470 = vrot.slane %v3469, 1
    %v3471 = vadd.f32 %v3469, %v3470
    %v3472 = vrot.slane %v3344, 4
    %v3473 = vadd.f32 %v3344, %v3472
    %v3474 = vrot.slane %v3473, 2
    %v3475 = vadd.f32 %v3473, %v3474
    %v3476 = vrot.slane %v3475, 1
    %v3477 = vadd.f32 %v3475, %v3476
    %v3478 = vrot.slane %v3345, 4
    %v3479 = vadd.f32 %v3345, %v3478
    %v3480 = vrot.slane %v3479, 2
    %v3481 = vadd.f32 %v3479, %v3480
    %v3482 = vrot.slane %v3481, 1
    %v3483 = vadd.f32 %v3481, %v3482
    %v3484 = vrot.slane %v3346, 4
    %v3485 = vadd.f32 %v3346, %v3484
    %v3486 = vrot.slane %v3485, 2
    %v3487 = vadd.f32 %v3485, %v3486
    %v3488 = vrot.slane %v3487, 1
    %v3489 = vadd.f32 %v3487, %v3488
    %v3490 = vrot.slane %v3347, 4
    %v3491 = vadd.f32 %v3347, %v3490
    %v3492 = vrot.slane %v3491, 2
    %v3493 = vadd.f32 %v3491, %v3492
    %v3494 = vrot.slane %v3493, 1
    %v3495 = vadd.f32 %v3493, %v3494
    %v3496 = vrot.slane %v3348, 4
    %v3497 = vadd.f32 %v3348, %v3496
    %v3498 = vrot.slane %v3497, 2
    %v3499 = vadd.f32 %v3497, %v3498
    %v3500 = vrot.slane %v3499, 1
    %v3501 = vadd.f32 %v3499, %v3500
    %v3502 = vrot.slane %v3349, 4
    %v3503 = vadd.f32 %v3349, %v3502
    %v3504 = vrot.slane %v3503, 2
    %v3505 = vadd.f32 %v3503, %v3504
    %v3506 = vrot.slane %v3505, 1
    %v3507 = vadd.f32 %v3505, %v3506
    %v3508 = vrot.slane %v3350, 4
    %v3509 = vadd.f32 %v3350, %v3508
    %v3510 = vrot.slane %v3509, 2
    %v3511 = vadd.f32 %v3509, %v3510
    %v3512 = vrot.slane %v3511, 1
    %v3513 = vadd.f32 %v3511, %v3512
    %v3514 = vrot.slane %v3351, 4
    %v3515 = vadd.f32 %v3351, %v3514
    %v3516 = vrot.slane %v3515, 2
    %v3517 = vadd.f32 %v3515, %v3516
    %v3518 = vrot.slane %v3517, 1
    %v3519 = vadd.f32 %v3517, %v3518
    %v3520 = vrot.slane %v3352, 4
    %v3521 = vadd.f32 %v3352, %v3520
    %v3522 = vrot.slane %v3521, 2
    %v3523 = vadd.f32 %v3521, %v3522
    %v3524 = vrot.slane %v3523, 1
    %v3525 = vadd.f32 %v3523, %v3524
    %v3526 = vrot.slane %v3353, 4
    %v3527 = vadd.f32 %v3353, %v3526
    %v3528 = vrot.slane %v3527, 2
    %v3529 = vadd.f32 %v3527, %v3528
    %v3530 = vrot.slane %v3529, 1
    %v3531 = vadd.f32 %v3529, %v3530
    %v3532 = vrot.slane %v3354, 4
    %v3533 = vadd.f32 %v3354, %v3532
    %v3534 = vrot.slane %v3533, 2
    %v3535 = vadd.f32 %v3533, %v3534
    %v3536 = vrot.slane %v3535, 1
    %v3537 = vadd.f32 %v3535, %v3536
    %v3538 = vrot.slane %v3355, 4
    %v3539 = vadd.f32 %v3355, %v3538
    %v3540 = vrot.slane %v3539, 2
    %v3541 = vadd.f32 %v3539, %v3540
    %v3542 = vrot.slane %v3541, 1
    %v3543 = vadd.f32 %v3541, %v3542
    %v3544 = vrot.slane %v3356, 4
    %v3545 = vadd.f32 %v3356, %v3544
    %v3546 = vrot.slane %v3545, 2
    %v3547 = vadd.f32 %v3545, %v3546
    %v3548 = vrot.slane %v3547, 1
    %v3549 = vadd.f32 %v3547, %v3548
    %v3550 = vrot.slane %v3357, 4
    %v3551 = vadd.f32 %v3357, %v3550
    %v3552 = vrot.slane %v3551, 2
    %v3553 = vadd.f32 %v3551, %v3552
    %v3554 = vrot.slane %v3553, 1
    %v3555 = vadd.f32 %v3553, %v3554
    %v3556 = vrot.slane %v3358, 4
    %v3557 = vadd.f32 %v3358, %v3556
    %v3558 = vrot.slane %v3557, 2
    %v3559 = vadd.f32 %v3557, %v3558
    %v3560 = vrot.slane %v3559, 1
    %v3561 = vadd.f32 %v3559, %v3560
    %v3562 = vrot.slane %v3359, 4
    %v3563 = vadd.f32 %v3359, %v3562
    %v3564 = vrot.slane %v3563, 2
    %v3565 = vadd.f32 %v3563, %v3564
    %v3566 = vrot.slane %v3565, 1
    %v3567 = vadd.f32 %v3565, %v3566
    %v3568 = vrot.slane %v3360, 4
    %v3569 = vadd.f32 %v3360, %v3568
    %v3570 = vrot.slane %v3569, 2
    %v3571 = vadd.f32 %v3569, %v3570
    %v3572 = vrot.slane %v3571, 1
    %v3573 = vadd.f32 %v3571, %v3572
    %v3574 = vrot.slane %v3361, 4
    %v3575 = vadd.f32 %v3361, %v3574
    %v3576 = vrot.slane %v3575, 2
    %v3577 = vadd.f32 %v3575, %v3576
    %v3578 = vrot.slane %v3577, 1
    %v3579 = vadd.f32 %v3577, %v3578
    %v3580 = vrot.slane %v3362, 4
    %v3581 = vadd.f32 %v3362, %v3580
    %v3582 = vrot.slane %v3581, 2
    %v3583 = vadd.f32 %v3581, %v3582
    %v3584 = vrot.slane %v3583, 1
    %v3585 = vadd.f32 %v3583, %v3584
    %v3586 = vrot.slane %v3363, 4
    %v3587 = vadd.f32 %v3363, %v3586
    %v3588 = vrot.slane %v3587, 2
    %v3589 = vadd.f32 %v3587, %v3588
    %v3590 = vrot.slane %v3589, 1
    %v3591 = vadd.f32 %v3589, %v3590
    %v3592 = vrot.slane %v3364, 4
    %v3593 = vadd.f32 %v3364, %v3592
    %v3594 = vrot.slane %v3593, 2
    %v3595 = vadd.f32 %v3593, %v3594
    %v3596 = vrot.slane %v3595, 1
    %v3597 = vadd.f32 %v3595, %v3596
    %v3598 = vrot.slane %v3365, 4
    %v3599 = vadd.f32 %v3365, %v3598
    %v3600 = vrot.slane %v3599, 2
    %v3601 = vadd.f32 %v3599, %v3600
    %v3602 = vrot.slane %v3601, 1
    %v3603 = vadd.f32 %v3601, %v3602
    %v3604 = vrot.slane %v3366, 4
    %v3605 = vadd.f32 %v3366, %v3604
    %v3606 = vrot.slane %v3605, 2
    %v3607 = vadd.f32 %v3605, %v3606
    %v3608 = vrot.slane %v3607, 1
    %v3609 = vadd.f32 %v3607, %v3608
    %v3610 = vrot.slane %v3367, 4
    %v3611 = vadd.f32 %v3367, %v3610
    %v3612 = vrot.slane %v3611, 2
    %v3613 = vadd.f32 %v3611, %v3612
    %v3614 = vrot.slane %v3613, 1
    %v3615 = vadd.f32 %v3613, %v3614
    %v3616 = vrot.slane %v3368, 4
    %v3617 = vadd.f32 %v3368, %v3616
    %v3618 = vrot.slane %v3617, 2
    %v3619 = vadd.f32 %v3617, %v3618
    %v3620 = vrot.slane %v3619, 1
    %v3621 = vadd.f32 %v3619, %v3620
    %v3622 = vrot.slane %v3369, 4
    %v3623 = vadd.f32 %v3369, %v3622
    %v3624 = vrot.slane %v3623, 2
    %v3625 = vadd.f32 %v3623, %v3624
    %v3626 = vrot.slane %v3625, 1
    %v3627 = vadd.f32 %v3625, %v3626
    %v3628 = vrot.slane %v3370, 4
    %v3629 = vadd.f32 %v3370, %v3628
    %v3630 = vrot.slane %v3629, 2
    %v3631 = vadd.f32 %v3629, %v3630
    %v3632 = vrot.slane %v3631, 1
    %v3633 = vadd.f32 %v3631, %v3632
    %v3634 = vrot.slane %v3371, 4
    %v3635 = vadd.f32 %v3371, %v3634
    %v3636 = vrot.slane %v3635, 2
    %v3637 = vadd.f32 %v3635, %v3636
    %v3638 = vrot.slane %v3637, 1
    %v3639 = vadd.f32 %v3637, %v3638
    %v3640 = vrot.slane %v3372, 4
    %v3641 = vadd.f32 %v3372, %v3640
    %v3642 = vrot.slane %v3641, 2
    %v3643 = vadd.f32 %v3641, %v3642
    %v3644 = vrot.slane %v3643, 1
    %v3645 = vadd.f32 %v3643, %v3644
    %v3646 = vrot.slane %v3373, 4
    %v3647 = vadd.f32 %v3373, %v3646
    %v3648 = vrot.slane %v3647, 2
    %v3649 = vadd.f32 %v3647, %v3648
    %v3650 = vrot.slane %v3649, 1
    %v3651 = vadd.f32 %v3649, %v3650
    %v3652 = vrot.slane %v3374, 4
    %v3653 = vadd.f32 %v3374, %v3652
    %v3654 = vrot.slane %v3653, 2
    %v3655 = vadd.f32 %v3653, %v3654
    %v3656 = vrot.slane %v3655, 1
    %v3657 = vadd.f32 %v3655, %v3656
    %v3658 = vrot.slane %v3375, 4
    %v3659 = vadd.f32 %v3375, %v3658
    %v3660 = vrot.slane %v3659, 2
    %v3661 = vadd.f32 %v3659, %v3660
    %v3662 = vrot.slane %v3661, 1
    %v3663 = vadd.f32 %v3661, %v3662
    %v3664 = vpack.c.bf16 %v3381, %v3381
    %v3665 = vpack.c.bf16 %v3387, %v3387
    %v3666 = vpack.c.bf16 %v3393, %v3393
    %v3667 = vpack.c.bf16 %v3399, %v3399
    %v3668 = vpack.c.bf16 %v3405, %v3405
    %v3669 = vpack.c.bf16 %v3411, %v3411
    %v3670 = vpack.c.bf16 %v3417, %v3417
    %v3671 = vpack.c.bf16 %v3423, %v3423
    %v3672 = vpack.c.bf16 %v3429, %v3429
    %v3673 = vpack.c.bf16 %v3435, %v3435
    %v3674 = vpack.c.bf16 %v3441, %v3441
    %v3675 = vpack.c.bf16 %v3447, %v3447
    %v3676 = vpack.c.bf16 %v3453, %v3453
    %v3677 = vpack.c.bf16 %v3459, %v3459
    %v3678 = vpack.c.bf16 %v3465, %v3465
    %v3679 = vpack.c.bf16 %v3471, %v3471
    %v3680 = vpack.c.bf16 %v3477, %v3477
    %v3681 = vpack.c.bf16 %v3483, %v3483
    %v3682 = vpack.c.bf16 %v3489, %v3489
    %v3683 = vpack.c.bf16 %v3495, %v3495
    %v3684 = vpack.c.bf16 %v3501, %v3501
    %v3685 = vpack.c.bf16 %v3507, %v3507
    %v3686 = vpack.c.bf16 %v3513, %v3513
    %v3687 = vpack.c.bf16 %v3519, %v3519
    %v3688 = vpack.c.bf16 %v3525, %v3525
    %v3689 = vpack.c.bf16 %v3531, %v3531
    %v3690 = vpack.c.bf16 %v3537, %v3537
    %v3691 = vpack.c.bf16 %v3543, %v3543
    %v3692 = vpack.c.bf16 %v3549, %v3549
    %v3693 = vpack.c.bf16 %v3555, %v3555
    %v3694 = vpack.c.bf16 %v3561, %v3561
    %v3695 = vpack.c.bf16 %v3567, %v3567
    %v3696 = vpack.c.bf16 %v3573, %v3573
    %v3697 = vpack.c.bf16 %v3579, %v3579
    %v3698 = vpack.c.bf16 %v3585, %v3585
    %v3699 = vpack.c.bf16 %v3591, %v3591
    %v3700 = vpack.c.bf16 %v3597, %v3597
    %v3701 = vpack.c.bf16 %v3603, %v3603
    %v3702 = vpack.c.bf16 %v3609, %v3609
    %v3703 = vpack.c.bf16 %v3615, %v3615
    %v3704 = vpack.c.bf16 %v3621, %v3621
    %v3705 = vpack.c.bf16 %v3627, %v3627
    %v3706 = vpack.c.bf16 %v3633, %v3633
    %v3707 = vpack.c.bf16 %v3639, %v3639
    %v3708 = vpack.c.bf16 %v3645, %v3645
    %v3709 = vpack.c.bf16 %v3651, %v3651
    %v3710 = vpack.c.bf16 %v3657, %v3657
    %v3711 = vpack.c.bf16 %v3663, %v3663
    %v3712 = vld [vmem:[#allocation7] sm:$0xff]
    %v3713 = vld [vmem:[#allocation7 + $0x8] sm:$0xff]
    %v3714 = vld [vmem:[#allocation7 + $0x10] sm:$0xff]
    %v3715 = vld [vmem:[#allocation7 + $0x18] sm:$0xff]
    %v3716 = vld [vmem:[#allocation7 + $0x20] sm:$0xff]
    %v3717 = vld [vmem:[#allocation7 + $0x28] sm:$0xff]
    %v3718 = vld [vmem:[#allocation7 + $0x30] sm:$0xff]
    %v3719 = vld [vmem:[#allocation7 + $0x38] sm:$0xff]
    %v3720 = vld [vmem:[#allocation7 + $0x40] sm:$0xff]
    %v3721 = vld [vmem:[#allocation7 + $0x48] sm:$0xff]
    %v3722 = vld [vmem:[#allocation7 + $0x50] sm:$0xff]
    %v3723 = vld [vmem:[#allocation7 + $0x58] sm:$0xff]
    %v3724 = vld [vmem:[#allocation7 + $0x60] sm:$0xff]
    %v3725 = vld [vmem:[#allocation7 + $0x68] sm:$0xff]
    %v3726 = vld [vmem:[#allocation7 + $0x70] sm:$0xff]
    %v3727 = vld [vmem:[#allocation7 + $0x78] sm:$0xff]
    %v3728 = vld [vmem:[#allocation7 + $0x80] sm:$0xff]
    %v3729 = vld [vmem:[#allocation7 + $0x88] sm:$0xff]
    %v3730 = vld [vmem:[#allocation7 + $0x90] sm:$0xff]
    %v3731 = vld [vmem:[#allocation7 + $0x98] sm:$0xff]
    %v3732 = vld [vmem:[#allocation7 + $0xa0] sm:$0xff]
    %v3733 = vld [vmem:[#allocation7 + $0xa8] sm:$0xff]
    %v3734 = vld [vmem:[#allocation7 + $0xb0] sm:$0xff]
    %v3735 = vld [vmem:[#allocation7 + $0xb8] sm:$0xff]
    %v3736 = vld [vmem:[#allocation7 + $0xc0] sm:$0xff]
    %v3737 = vld [vmem:[#allocation7 + $0xc8] sm:$0xff]
    %v3738 = vld [vmem:[#allocation7 + $0xd0] sm:$0xff]
    %v3739 = vld [vmem:[#allocation7 + $0xd8] sm:$0xff]
    %v3740 = vld [vmem:[#allocation7 + $0xe0] sm:$0xff]
    %v3741 = vld [vmem:[#allocation7 + $0xe8] sm:$0xff]
    %v3742 = vld [vmem:[#allocation7 + $0xf0] sm:$0xff]
    %v3743 = vld [vmem:[#allocation7 + $0xf8] sm:$0xff]
    %v3744 = vld [vmem:[#allocation7 + $0x100] sm:$0xff]
    %v3745 = vld [vmem:[#allocation7 + $0x108] sm:$0xff]
    %v3746 = vld [vmem:[#allocation7 + $0x110] sm:$0xff]
    %v3747 = vld [vmem:[#allocation7 + $0x118] sm:$0xff]
    %v3748 = vld [vmem:[#allocation7 + $0x120] sm:$0xff]
    %v3749 = vld [vmem:[#allocation7 + $0x128] sm:$0xff]
    %v3750 = vld [vmem:[#allocation7 + $0x130] sm:$0xff]
    %v3751 = vld [vmem:[#allocation7 + $0x138] sm:$0xff]
    %v3752 = vld [vmem:[#allocation7 + $0x140] sm:$0xff]
    %v3753 = vld [vmem:[#allocation7 + $0x148] sm:$0xff]
    %v3754 = vld [vmem:[#allocation7 + $0x150] sm:$0xff]
    %v3755 = vld [vmem:[#allocation7 + $0x158] sm:$0xff]
    %v3756 = vld [vmem:[#allocation7 + $0x160] sm:$0xff]
    %v3757 = vld [vmem:[#allocation7 + $0x168] sm:$0xff]
    %v3758 = vld [vmem:[#allocation7 + $0x170] sm:$0xff]
    %v3759 = vld [vmem:[#allocation7 + $0x178] sm:$0xff]
    %v3760 = vld [vmem:[#allocation7 + $0x180] sm:$0xff]
    %v3761 = vld [vmem:[#allocation7 + $0x188] sm:$0xff]
    %v3762 = vld [vmem:[#allocation7 + $0x190] sm:$0xff]
    %v3763 = vld [vmem:[#allocation7 + $0x198] sm:$0xff]
    %v3764 = vld [vmem:[#allocation7 + $0x1a0] sm:$0xff]
    %v3765 = vld [vmem:[#allocation7 + $0x1a8] sm:$0xff]
    %v3766 = vld [vmem:[#allocation7 + $0x1b0] sm:$0xff]
    %v3767 = vld [vmem:[#allocation7 + $0x1b8] sm:$0xff]
    %v3768 = vld [vmem:[#allocation7 + $0x1c0] sm:$0xff]
    %v3769 = vld [vmem:[#allocation7 + $0x1c8] sm:$0xff]
    %v3770 = vld [vmem:[#allocation7 + $0x1d0] sm:$0xff]
    %v3771 = vld [vmem:[#allocation7 + $0x1d8] sm:$0xff]
    %v3772 = vld [vmem:[#allocation7 + $0x1e0] sm:$0xff]
    %v3773 = vld [vmem:[#allocation7 + $0x1e8] sm:$0xff]
    %v3774 = vld [vmem:[#allocation7 + $0x1f0] sm:$0xff]
    %v3775 = vld [vmem:[#allocation7 + $0x1f8] sm:$0xff]
    %v3776 = vld [vmem:[#allocation7 + $0x200] sm:$0xff]
    %v3777 = vld [vmem:[#allocation7 + $0x208] sm:$0xff]
    %v3778 = vld [vmem:[#allocation7 + $0x210] sm:$0xff]
    %v3779 = vld [vmem:[#allocation7 + $0x218] sm:$0xff]
    %v3780 = vld [vmem:[#allocation7 + $0x220] sm:$0xff]
    %v3781 = vld [vmem:[#allocation7 + $0x228] sm:$0xff]
    %v3782 = vld [vmem:[#allocation7 + $0x230] sm:$0xff]
    %v3783 = vld [vmem:[#allocation7 + $0x238] sm:$0xff]
    %v3784 = vld [vmem:[#allocation7 + $0x240] sm:$0xff]
    %v3785 = vld [vmem:[#allocation7 + $0x248] sm:$0xff]
    %v3786 = vld [vmem:[#allocation7 + $0x250] sm:$0xff]
    %v3787 = vld [vmem:[#allocation7 + $0x258] sm:$0xff]
    %v3788 = vld [vmem:[#allocation7 + $0x260] sm:$0xff]
    %v3789 = vld [vmem:[#allocation7 + $0x268] sm:$0xff]
    %v3790 = vld [vmem:[#allocation7 + $0x270] sm:$0xff]
    %v3791 = vld [vmem:[#allocation7 + $0x278] sm:$0xff]
    %v3792 = vld [vmem:[#allocation7 + $0x280] sm:$0xff]
    %v3793 = vld [vmem:[#allocation7 + $0x288] sm:$0xff]
    %v3794 = vld [vmem:[#allocation7 + $0x290] sm:$0xff]
    %v3795 = vld [vmem:[#allocation7 + $0x298] sm:$0xff]
    %v3796 = vld [vmem:[#allocation7 + $0x2a0] sm:$0xff]
    %v3797 = vld [vmem:[#allocation7 + $0x2a8] sm:$0xff]
    %v3798 = vld [vmem:[#allocation7 + $0x2b0] sm:$0xff]
    %v3799 = vld [vmem:[#allocation7 + $0x2b8] sm:$0xff]
    %v3800 = vld [vmem:[#allocation7 + $0x2c0] sm:$0xff]
    %v3801 = vld [vmem:[#allocation7 + $0x2c8] sm:$0xff]
    %v3802 = vld [vmem:[#allocation7 + $0x2d0] sm:$0xff]
    %v3803 = vld [vmem:[#allocation7 + $0x2d8] sm:$0xff]
    %v3804 = vld [vmem:[#allocation7 + $0x2e0] sm:$0xff]
    %v3805 = vld [vmem:[#allocation7 + $0x2e8] sm:$0xff]
    %v3806 = vld [vmem:[#allocation7 + $0x2f0] sm:$0xff]
    %v3807 = vld [vmem:[#allocation7 + $0x2f8] sm:$0xff]
    %v3808 = vld [vmem:[#allocation7 + $0x300] sm:$0xff]
    %v3809 = vld [vmem:[#allocation7 + $0x308] sm:$0xff]
    %v3810 = vld [vmem:[#allocation7 + $0x310] sm:$0xff]
    %v3811 = vld [vmem:[#allocation7 + $0x318] sm:$0xff]
    %v3812 = vld [vmem:[#allocation7 + $0x320] sm:$0xff]
    %v3813 = vld [vmem:[#allocation7 + $0x328] sm:$0xff]
    %v3814 = vld [vmem:[#allocation7 + $0x330] sm:$0xff]
    %v3815 = vld [vmem:[#allocation7 + $0x338] sm:$0xff]
    %v3816 = vld [vmem:[#allocation7 + $0x340] sm:$0xff]
    %v3817 = vld [vmem:[#allocation7 + $0x348] sm:$0xff]
    %v3818 = vld [vmem:[#allocation7 + $0x350] sm:$0xff]
    %v3819 = vld [vmem:[#allocation7 + $0x358] sm:$0xff]
    %v3820 = vld [vmem:[#allocation7 + $0x360] sm:$0xff]
    %v3821 = vld [vmem:[#allocation7 + $0x368] sm:$0xff]
    %v3822 = vld [vmem:[#allocation7 + $0x370] sm:$0xff]
    %v3823 = vld [vmem:[#allocation7 + $0x378] sm:$0xff]
    %v3824 = vld [vmem:[#allocation7 + $0x380] sm:$0xff]
    %v3825 = vld [vmem:[#allocation7 + $0x388] sm:$0xff]
    %v3826 = vld [vmem:[#allocation7 + $0x390] sm:$0xff]
    %v3827 = vld [vmem:[#allocation7 + $0x398] sm:$0xff]
    %v3828 = vld [vmem:[#allocation7 + $0x3a0] sm:$0xff]
    %v3829 = vld [vmem:[#allocation7 + $0x3a8] sm:$0xff]
    %v3830 = vld [vmem:[#allocation7 + $0x3b0] sm:$0xff]
    %v3831 = vld [vmem:[#allocation7 + $0x3b8] sm:$0xff]
    %v3832 = vld [vmem:[#allocation7 + $0x3c0] sm:$0xff]
    %v3833 = vld [vmem:[#allocation7 + $0x3c8] sm:$0xff]
    %v3834 = vld [vmem:[#allocation7 + $0x3d0] sm:$0xff]
    %v3835 = vld [vmem:[#allocation7 + $0x3d8] sm:$0xff]
    %v3836 = vld [vmem:[#allocation7 + $0x3e0] sm:$0xff]
    %v3837 = vld [vmem:[#allocation7 + $0x3e8] sm:$0xff]
    %v3838 = vld [vmem:[#allocation7 + $0x3f0] sm:$0xff]
    %v3839 = vld [vmem:[#allocation7 + $0x3f8] sm:$0xff]
    %v3840 = vld [vmem:[#allocation7 + $0x400] sm:$0xff]
    %v3841 = vld [vmem:[#allocation7 + $0x408] sm:$0xff]
    %v3842 = vld [vmem:[#allocation7 + $0x410] sm:$0xff]
    %v3843 = vld [vmem:[#allocation7 + $0x418] sm:$0xff]
    %v3844 = vld [vmem:[#allocation7 + $0x420] sm:$0xff]
    %v3845 = vld [vmem:[#allocation7 + $0x428] sm:$0xff]
    %v3846 = vld [vmem:[#allocation7 + $0x430] sm:$0xff]
    %v3847 = vld [vmem:[#allocation7 + $0x438] sm:$0xff]
    %v3848 = vld [vmem:[#allocation7 + $0x440] sm:$0xff]
    %v3849 = vld [vmem:[#allocation7 + $0x448] sm:$0xff]
    %v3850 = vld [vmem:[#allocation7 + $0x450] sm:$0xff]
    %v3851 = vld [vmem:[#allocation7 + $0x458] sm:$0xff]
    %v3852 = vld [vmem:[#allocation7 + $0x460] sm:$0xff]
    %v3853 = vld [vmem:[#allocation7 + $0x468] sm:$0xff]
    %v3854 = vld [vmem:[#allocation7 + $0x470] sm:$0xff]
    %v3855 = vld [vmem:[#allocation7 + $0x478] sm:$0xff]
    %v3856 = vld [vmem:[#allocation7 + $0x480] sm:$0xff]
    %v3857 = vld [vmem:[#allocation7 + $0x488] sm:$0xff]
    %v3858 = vld [vmem:[#allocation7 + $0x490] sm:$0xff]
    %v3859 = vld [vmem:[#allocation7 + $0x498] sm:$0xff]
    %v3860 = vld [vmem:[#allocation7 + $0x4a0] sm:$0xff]
    %v3861 = vld [vmem:[#allocation7 + $0x4a8] sm:$0xff]
    %v3862 = vld [vmem:[#allocation7 + $0x4b0] sm:$0xff]
    %v3863 = vld [vmem:[#allocation7 + $0x4b8] sm:$0xff]
    %v3864 = vld [vmem:[#allocation7 + $0x4c0] sm:$0xff]
    %v3865 = vld [vmem:[#allocation7 + $0x4c8] sm:$0xff]
    %v3866 = vld [vmem:[#allocation7 + $0x4d0] sm:$0xff]
    %v3867 = vld [vmem:[#allocation7 + $0x4d8] sm:$0xff]
    %v3868 = vld [vmem:[#allocation7 + $0x4e0] sm:$0xff]
    %v3869 = vld [vmem:[#allocation7 + $0x4e8] sm:$0xff]
    %v3870 = vld [vmem:[#allocation7 + $0x4f0] sm:$0xff]
    %v3871 = vld [vmem:[#allocation7 + $0x4f8] sm:$0xff]
    %v3872 = vld [vmem:[#allocation7 + $0x500] sm:$0xff]
    %v3873 = vld [vmem:[#allocation7 + $0x508] sm:$0xff]
    %v3874 = vld [vmem:[#allocation7 + $0x510] sm:$0xff]
    %v3875 = vld [vmem:[#allocation7 + $0x518] sm:$0xff]
    %v3876 = vld [vmem:[#allocation7 + $0x520] sm:$0xff]
    %v3877 = vld [vmem:[#allocation7 + $0x528] sm:$0xff]
    %v3878 = vld [vmem:[#allocation7 + $0x530] sm:$0xff]
    %v3879 = vld [vmem:[#allocation7 + $0x538] sm:$0xff]
    %v3880 = vld [vmem:[#allocation7 + $0x540] sm:$0xff]
    %v3881 = vld [vmem:[#allocation7 + $0x548] sm:$0xff]
    %v3882 = vld [vmem:[#allocation7 + $0x550] sm:$0xff]
    %v3883 = vld [vmem:[#allocation7 + $0x558] sm:$0xff]
    %v3884 = vld [vmem:[#allocation7 + $0x560] sm:$0xff]
    %v3885 = vld [vmem:[#allocation7 + $0x568] sm:$0xff]
    %v3886 = vld [vmem:[#allocation7 + $0x570] sm:$0xff]
    %v3887 = vld [vmem:[#allocation7 + $0x578] sm:$0xff]
    %v3888 = vld [vmem:[#allocation7 + $0x580] sm:$0xff]
    %v3889 = vld [vmem:[#allocation7 + $0x588] sm:$0xff]
    %v3890 = vld [vmem:[#allocation7 + $0x590] sm:$0xff]
    %v3891 = vld [vmem:[#allocation7 + $0x598] sm:$0xff]
    %v3892 = vld [vmem:[#allocation7 + $0x5a0] sm:$0xff]
    %v3893 = vld [vmem:[#allocation7 + $0x5a8] sm:$0xff]
    %v3894 = vld [vmem:[#allocation7 + $0x5b0] sm:$0xff]
    %v3895 = vld [vmem:[#allocation7 + $0x5b8] sm:$0xff]
    %v3896 = vld [vmem:[#allocation7 + $0x5c0] sm:$0xff]
    %v3897 = vld [vmem:[#allocation7 + $0x5c8] sm:$0xff]
    %v3898 = vld [vmem:[#allocation7 + $0x5d0] sm:$0xff]
    %v3899 = vld [vmem:[#allocation7 + $0x5d8] sm:$0xff]
    %v3900 = vld [vmem:[#allocation7 + $0x5e0] sm:$0xff]
    %v3901 = vld [vmem:[#allocation7 + $0x5e8] sm:$0xff]
    %v3902 = vld [vmem:[#allocation7 + $0x5f0] sm:$0xff]
    %v3903 = vld [vmem:[#allocation7 + $0x5f8] sm:$0xff]
    %v3904 = vld [vmem:[#allocation7 + $0x600] sm:$0xff]
    %v3905 = vld [vmem:[#allocation7 + $0x608] sm:$0xff]
    %v3906 = vld [vmem:[#allocation7 + $0x610] sm:$0xff]
    %v3907 = vld [vmem:[#allocation7 + $0x618] sm:$0xff]
    %v3908 = vld [vmem:[#allocation7 + $0x620] sm:$0xff]
    %v3909 = vld [vmem:[#allocation7 + $0x628] sm:$0xff]
    %v3910 = vld [vmem:[#allocation7 + $0x630] sm:$0xff]
    %v3911 = vld [vmem:[#allocation7 + $0x638] sm:$0xff]
    %v3912 = vld [vmem:[#allocation7 + $0x640] sm:$0xff]
    %v3913 = vld [vmem:[#allocation7 + $0x648] sm:$0xff]
    %v3914 = vld [vmem:[#allocation7 + $0x650] sm:$0xff]
    %v3915 = vld [vmem:[#allocation7 + $0x658] sm:$0xff]
    %v3916 = vld [vmem:[#allocation7 + $0x660] sm:$0xff]
    %v3917 = vld [vmem:[#allocation7 + $0x668] sm:$0xff]
    %v3918 = vld [vmem:[#allocation7 + $0x670] sm:$0xff]
    %v3919 = vld [vmem:[#allocation7 + $0x678] sm:$0xff]
    %v3920 = vld [vmem:[#allocation7 + $0x680] sm:$0xff]
    %v3921 = vld [vmem:[#allocation7 + $0x688] sm:$0xff]
    %v3922 = vld [vmem:[#allocation7 + $0x690] sm:$0xff]
    %v3923 = vld [vmem:[#allocation7 + $0x698] sm:$0xff]
    %v3924 = vld [vmem:[#allocation7 + $0x6a0] sm:$0xff]
    %v3925 = vld [vmem:[#allocation7 + $0x6a8] sm:$0xff]
    %v3926 = vld [vmem:[#allocation7 + $0x6b0] sm:$0xff]
    %v3927 = vld [vmem:[#allocation7 + $0x6b8] sm:$0xff]
    %v3928 = vld [vmem:[#allocation7 + $0x6c0] sm:$0xff]
    %v3929 = vld [vmem:[#allocation7 + $0x6c8] sm:$0xff]
    %v3930 = vld [vmem:[#allocation7 + $0x6d0] sm:$0xff]
    %v3931 = vld [vmem:[#allocation7 + $0x6d8] sm:$0xff]
    %v3932 = vld [vmem:[#allocation7 + $0x6e0] sm:$0xff]
    %v3933 = vld [vmem:[#allocation7 + $0x6e8] sm:$0xff]
    %v3934 = vld [vmem:[#allocation7 + $0x6f0] sm:$0xff]
    %v3935 = vld [vmem:[#allocation7 + $0x6f8] sm:$0xff]
    %v3936 = vld [vmem:[#allocation7 + $0x700] sm:$0xff]
    %v3937 = vld [vmem:[#allocation7 + $0x708] sm:$0xff]
    %v3938 = vld [vmem:[#allocation7 + $0x710] sm:$0xff]
    %v3939 = vld [vmem:[#allocation7 + $0x718] sm:$0xff]
    %v3940 = vld [vmem:[#allocation7 + $0x720] sm:$0xff]
    %v3941 = vld [vmem:[#allocation7 + $0x728] sm:$0xff]
    %v3942 = vld [vmem:[#allocation7 + $0x730] sm:$0xff]
    %v3943 = vld [vmem:[#allocation7 + $0x738] sm:$0xff]
    %v3944 = vld [vmem:[#allocation7 + $0x740] sm:$0xff]
    %v3945 = vld [vmem:[#allocation7 + $0x748] sm:$0xff]
    %v3946 = vld [vmem:[#allocation7 + $0x750] sm:$0xff]
    %v3947 = vld [vmem:[#allocation7 + $0x758] sm:$0xff]
    %v3948 = vld [vmem:[#allocation7 + $0x760] sm:$0xff]
    %v3949 = vld [vmem:[#allocation7 + $0x768] sm:$0xff]
    %v3950 = vld [vmem:[#allocation7 + $0x770] sm:$0xff]
    %v3951 = vld [vmem:[#allocation7 + $0x778] sm:$0xff]
    %v3952 = vld [vmem:[#allocation7 + $0x780] sm:$0xff]
    %v3953 = vld [vmem:[#allocation7 + $0x788] sm:$0xff]
    %v3954 = vld [vmem:[#allocation7 + $0x790] sm:$0xff]
    %v3955 = vld [vmem:[#allocation7 + $0x798] sm:$0xff]
    %v3956 = vld [vmem:[#allocation7 + $0x7a0] sm:$0xff]
    %v3957 = vld [vmem:[#allocation7 + $0x7a8] sm:$0xff]
    %v3958 = vld [vmem:[#allocation7 + $0x7b0] sm:$0xff]
    %v3959 = vld [vmem:[#allocation7 + $0x7b8] sm:$0xff]
    %v3960 = vld [vmem:[#allocation7 + $0x7c0] sm:$0xff]
    %v3961 = vld [vmem:[#allocation7 + $0x7c8] sm:$0xff]
    %v3962 = vld [vmem:[#allocation7 + $0x7d0] sm:$0xff]
    %v3963 = vld [vmem:[#allocation7 + $0x7d8] sm:$0xff]
    %v3964 = vld [vmem:[#allocation7 + $0x7e0] sm:$0xff]
    %v3965 = vld [vmem:[#allocation7 + $0x7e8] sm:$0xff]
    %v3966 = vld [vmem:[#allocation7 + $0x7f0] sm:$0xff]
    %v3967 = vld [vmem:[#allocation7 + $0x7f8] sm:$0xff]
    %v3968 = vld [vmem:[#allocation7 + $0x800] sm:$0xff]
    %v3969 = vld [vmem:[#allocation7 + $0x808] sm:$0xff]
    %v3970 = vld [vmem:[#allocation7 + $0x810] sm:$0xff]
    %v3971 = vld [vmem:[#allocation7 + $0x818] sm:$0xff]
    %v3972 = vld [vmem:[#allocation7 + $0x820] sm:$0xff]
    %v3973 = vld [vmem:[#allocation7 + $0x828] sm:$0xff]
    %v3974 = vld [vmem:[#allocation7 + $0x830] sm:$0xff]
    %v3975 = vld [vmem:[#allocation7 + $0x838] sm:$0xff]
    %v3976 = vld [vmem:[#allocation7 + $0x840] sm:$0xff]
    %v3977 = vld [vmem:[#allocation7 + $0x848] sm:$0xff]
    %v3978 = vld [vmem:[#allocation7 + $0x850] sm:$0xff]
    %v3979 = vld [vmem:[#allocation7 + $0x858] sm:$0xff]
    %v3980 = vld [vmem:[#allocation7 + $0x860] sm:$0xff]
    %v3981 = vld [vmem:[#allocation7 + $0x868] sm:$0xff]
    %v3982 = vld [vmem:[#allocation7 + $0x870] sm:$0xff]
    %v3983 = vld [vmem:[#allocation7 + $0x878] sm:$0xff]
    %v3984 = vld [vmem:[#allocation7 + $0x880] sm:$0xff]
    %v3985 = vld [vmem:[#allocation7 + $0x888] sm:$0xff]
    %v3986 = vld [vmem:[#allocation7 + $0x890] sm:$0xff]
    %v3987 = vld [vmem:[#allocation7 + $0x898] sm:$0xff]
    %v3988 = vld [vmem:[#allocation7 + $0x8a0] sm:$0xff]
    %v3989 = vld [vmem:[#allocation7 + $0x8a8] sm:$0xff]
    %v3990 = vld [vmem:[#allocation7 + $0x8b0] sm:$0xff]
    %v3991 = vld [vmem:[#allocation7 + $0x8b8] sm:$0xff]
    %v3992 = vld [vmem:[#allocation7 + $0x8c0] sm:$0xff]
    %v3993 = vld [vmem:[#allocation7 + $0x8c8] sm:$0xff]
    %v3994 = vld [vmem:[#allocation7 + $0x8d0] sm:$0xff]
    %v3995 = vld [vmem:[#allocation7 + $0x8d8] sm:$0xff]
    %v3996 = vld [vmem:[#allocation7 + $0x8e0] sm:$0xff]
    %v3997 = vld [vmem:[#allocation7 + $0x8e8] sm:$0xff]
    %v3998 = vld [vmem:[#allocation7 + $0x8f0] sm:$0xff]
    %v3999 = vld [vmem:[#allocation7 + $0x8f8] sm:$0xff]
    %v4048 = vunpack.c.l.b16 %v3664
    %v4049 = vunpack.c.l.b16 %v3665
    %v4050 = vunpack.c.l.b16 %v3666
    %v4051 = vunpack.c.l.b16 %v3667
    %v4052 = vunpack.c.l.b16 %v3668
    %v4053 = vunpack.c.l.b16 %v3669
    %v4054 = vunpack.c.l.b16 %v3670
    %v4055 = vunpack.c.l.b16 %v3671
    %v4056 = vunpack.c.l.b16 %v3672
    %v4057 = vunpack.c.l.b16 %v3673
    %v4058 = vunpack.c.l.b16 %v3674
    %v4059 = vunpack.c.l.b16 %v3675
    %v4060 = vunpack.c.l.b16 %v3676
    %v4061 = vunpack.c.l.b16 %v3677
    %v4062 = vunpack.c.l.b16 %v3678
    %v4063 = vunpack.c.l.b16 %v3679
    %v4064 = vunpack.c.l.b16 %v3680
    %v4065 = vunpack.c.l.b16 %v3681
    %v4066 = vunpack.c.l.b16 %v3682
    %v4067 = vunpack.c.l.b16 %v3683
    %v4068 = vunpack.c.l.b16 %v3684
    %v4069 = vunpack.c.l.b16 %v3685
    %v4070 = vunpack.c.l.b16 %v3686
    %v4071 = vunpack.c.l.b16 %v3687
    %v4072 = vunpack.c.l.b16 %v3688
    %v4073 = vunpack.c.l.b16 %v3689
    %v4074 = vunpack.c.l.b16 %v3690
    %v4075 = vunpack.c.l.b16 %v3691
    %v4076 = vunpack.c.l.b16 %v3692
    %v4077 = vunpack.c.l.b16 %v3693
    %v4078 = vunpack.c.l.b16 %v3694
    %v4079 = vunpack.c.l.b16 %v3695
    %v4080 = vunpack.c.l.b16 %v3696
    %v4081 = vunpack.c.l.b16 %v3697
    %v4082 = vunpack.c.l.b16 %v3698
    %v4083 = vunpack.c.l.b16 %v3699
    %v4084 = vunpack.c.l.b16 %v3700
    %v4085 = vunpack.c.l.b16 %v3701
    %v4086 = vunpack.c.l.b16 %v3702
    %v4087 = vunpack.c.l.b16 %v3703
    %v4088 = vunpack.c.l.b16 %v3704
    %v4089 = vunpack.c.l.b16 %v3705
    %v4090 = vunpack.c.l.b16 %v3706
    %v4091 = vunpack.c.l.b16 %v3707
    %v4092 = vunpack.c.l.b16 %v3708
    %v4093 = vunpack.c.l.b16 %v3709
    %v4094 = vunpack.c.l.b16 %v3710
    %v4095 = vunpack.c.l.b16 %v3711
    %v4096 = vsel %vm540, %v4054, %v4048
    %v4097 = vsel %vm543, %v4060, %v4096
    %v4098 = vsel %vm546, %v4066, %v4097
    %v4099 = vsel %vm549, %v4072, %v4098
    %v4100 = vsel %vm552, %v4078, %v4099
    %v4101 = vsel %vm555, %v4084, %v4100
    %v4102 = vsel %vm558, %v4090, %v4101
    %v4103 = vsel %vm540, %v4055, %v4049
    %v4104 = vsel %vm543, %v4061, %v4103
    %v4105 = vsel %vm546, %v4067, %v4104
    %v4106 = vsel %vm549, %v4073, %v4105
    %v4107 = vsel %vm552, %v4079, %v4106
    %v4108 = vsel %vm555, %v4085, %v4107
    %v4109 = vsel %vm558, %v4091, %v4108
    %v4110 = vsel %vm540, %v4056, %v4050
    %v4111 = vsel %vm543, %v4062, %v4110
    %v4112 = vsel %vm546, %v4068, %v4111
    %v4113 = vsel %vm549, %v4074, %v4112
    %v4114 = vsel %vm552, %v4080, %v4113
    %v4115 = vsel %vm555, %v4086, %v4114
    %v4116 = vsel %vm558, %v4092, %v4115
    %v4117 = vsel %vm540, %v4057, %v4051
    %v4118 = vsel %vm543, %v4063, %v4117
    %v4119 = vsel %vm546, %v4069, %v4118
    %v4120 = vsel %vm549, %v4075, %v4119
    %v4121 = vsel %vm552, %v4081, %v4120
    %v4122 = vsel %vm555, %v4087, %v4121
    %v4123 = vsel %vm558, %v4093, %v4122
    %v4124 = vsel %vm540, %v4058, %v4052
    %v4125 = vsel %vm543, %v4064, %v4124
    %v4126 = vsel %vm546, %v4070, %v4125
    %v4127 = vsel %vm549, %v4076, %v4126
    %v4128 = vsel %vm552, %v4082, %v4127
    %v4129 = vsel %vm555, %v4088, %v4128
    %v4130 = vsel %vm558, %v4094, %v4129
    %v4131 = vsel %vm540, %v4059, %v4053
    %v4132 = vsel %vm543, %v4065, %v4131
    %v4133 = vsel %vm546, %v4071, %v4132
    %v4134 = vsel %vm549, %v4077, %v4133
    %v4135 = vsel %vm552, %v4083, %v4134
    %v4136 = vsel %vm555, %v4089, %v4135
    %v4137 = vsel %vm558, %v4095, %v4136
    %v4138 = vpack.c.b16 %v4102, %v4102
    %v4139 = vpack.c.b16 %v4109, %v4109
    %v4140 = vpack.c.b16 %v4116, %v4116
    %v4141 = vpack.c.b16 %v4123, %v4123
    %v4142 = vpack.c.b16 %v4130, %v4130
    %v4143 = vpack.c.b16 %v4137, %v4137
    %v4438 = vunpack.c.l.b16 %v3712
    %v4439 = vunpack.c.h.b16 %v3712
    %v4440 = vunpack.c.l.b16 %v3713
    %v4441 = vunpack.c.h.b16 %v3713
    %v4442 = vunpack.c.l.b16 %v3714
    %v4443 = vunpack.c.h.b16 %v3714
    %v4444 = vunpack.c.l.b16 %v3715
    %v4445 = vunpack.c.h.b16 %v3715
    %v4446 = vunpack.c.l.b16 %v3716
    %v4447 = vunpack.c.h.b16 %v3716
    %v4448 = vunpack.c.l.b16 %v3717
    %v4449 = vunpack.c.h.b16 %v3717
    %v4450 = vunpack.c.l.b16 %v3718
    %v4451 = vunpack.c.h.b16 %v3718
    %v4452 = vunpack.c.l.b16 %v3719
    %v4453 = vunpack.c.h.b16 %v3719
    %v4454 = vunpack.c.l.b16 %v3720
    %v4455 = vunpack.c.h.b16 %v3720
    %v4456 = vunpack.c.l.b16 %v3721
    %v4457 = vunpack.c.h.b16 %v3721
    %v4458 = vunpack.c.l.b16 %v3722
    %v4459 = vunpack.c.h.b16 %v3722
    %v4460 = vunpack.c.l.b16 %v3723
    %v4461 = vunpack.c.h.b16 %v3723
    %v4462 = vunpack.c.l.b16 %v3724
    %v4463 = vunpack.c.h.b16 %v3724
    %v4464 = vunpack.c.l.b16 %v3725
    %v4465 = vunpack.c.h.b16 %v3725
    %v4466 = vunpack.c.l.b16 %v3726
    %v4467 = vunpack.c.h.b16 %v3726
    %v4468 = vunpack.c.l.b16 %v3727
    %v4469 = vunpack.c.h.b16 %v3727
    %v4470 = vunpack.c.l.b16 %v3728
    %v4471 = vunpack.c.h.b16 %v3728
    %v4472 = vunpack.c.l.b16 %v3729
    %v4473 = vunpack.c.h.b16 %v3729
    %v4474 = vunpack.c.l.b16 %v3730
    %v4475 = vunpack.c.h.b16 %v3730
    %v4476 = vunpack.c.l.b16 %v3731
    %v4477 = vunpack.c.h.b16 %v3731
    %v4478 = vunpack.c.l.b16 %v3732
    %v4479 = vunpack.c.h.b16 %v3732
    %v4480 = vunpack.c.l.b16 %v3733
    %v4481 = vunpack.c.h.b16 %v3733
    %v4482 = vunpack.c.l.b16 %v3734
    %v4483 = vunpack.c.h.b16 %v3734
    %v4484 = vunpack.c.l.b16 %v3735
    %v4485 = vunpack.c.h.b16 %v3735
    %v4486 = vunpack.c.l.b16 %v3736
    %v4487 = vunpack.c.h.b16 %v3736
    %v4488 = vunpack.c.l.b16 %v3737
    %v4489 = vunpack.c.h.b16 %v3737
    %v4490 = vunpack.c.l.b16 %v3738
    %v4491 = vunpack.c.h.b16 %v3738
    %v4492 = vunpack.c.l.b16 %v3739
    %v4493 = vunpack.c.h.b16 %v3739
    %v4494 = vunpack.c.l.b16 %v3740
    %v4495 = vunpack.c.h.b16 %v3740
    %v4496 = vunpack.c.l.b16 %v3741
    %v4497 = vunpack.c.h.b16 %v3741
    %v4498 = vunpack.c.l.b16 %v3742
    %v4499 = vunpack.c.h.b16 %v3742
    %v4500 = vunpack.c.l.b16 %v3743
    %v4501 = vunpack.c.h.b16 %v3743
    %v4502 = vunpack.c.l.b16 %v3744
    %v4503 = vunpack.c.h.b16 %v3744
    %v4504 = vunpack.c.l.b16 %v3745
    %v4505 = vunpack.c.h.b16 %v3745
    %v4506 = vunpack.c.l.b16 %v3746
    %v4507 = vunpack.c.h.b16 %v3746
    %v4508 = vunpack.c.l.b16 %v3747
    %v4509 = vunpack.c.h.b16 %v3747
    %v4510 = vunpack.c.l.b16 %v3748
    %v4511 = vunpack.c.h.b16 %v3748
    %v4512 = vunpack.c.l.b16 %v3749
    %v4513 = vunpack.c.h.b16 %v3749
    %v4514 = vunpack.c.l.b16 %v3750
    %v4515 = vunpack.c.h.b16 %v3750
    %v4516 = vunpack.c.l.b16 %v3751
    %v4517 = vunpack.c.h.b16 %v3751
    %v4518 = vunpack.c.l.b16 %v3752
    %v4519 = vunpack.c.h.b16 %v3752
    %v4520 = vunpack.c.l.b16 %v3753
    %v4521 = vunpack.c.h.b16 %v3753
    %v4522 = vunpack.c.l.b16 %v3754
    %v4523 = vunpack.c.h.b16 %v3754
    %v4524 = vunpack.c.l.b16 %v3755
    %v4525 = vunpack.c.h.b16 %v3755
    %v4526 = vunpack.c.l.b16 %v3756
    %v4527 = vunpack.c.h.b16 %v3756
    %v4528 = vunpack.c.l.b16 %v3757
    %v4529 = vunpack.c.h.b16 %v3757
    %v4530 = vunpack.c.l.b16 %v3758
    %v4531 = vunpack.c.h.b16 %v3758
    %v4532 = vunpack.c.l.b16 %v3759
    %v4533 = vunpack.c.h.b16 %v3759
    %v4534 = vunpack.c.l.b16 %v3760
    %v4535 = vunpack.c.h.b16 %v3760
    %v4536 = vunpack.c.l.b16 %v3761
    %v4537 = vunpack.c.h.b16 %v3761
    %v4538 = vunpack.c.l.b16 %v3762
    %v4539 = vunpack.c.h.b16 %v3762
    %v4540 = vunpack.c.l.b16 %v3763
    %v4541 = vunpack.c.h.b16 %v3763
    %v4542 = vunpack.c.l.b16 %v3764
    %v4543 = vunpack.c.h.b16 %v3764
    %v4544 = vunpack.c.l.b16 %v3765
    %v4545 = vunpack.c.h.b16 %v3765
    %v4546 = vunpack.c.l.b16 %v3766
    %v4547 = vunpack.c.h.b16 %v3766
    %v4548 = vunpack.c.l.b16 %v3767
    %v4549 = vunpack.c.h.b16 %v3767
    %v4550 = vunpack.c.l.b16 %v3768
    %v4551 = vunpack.c.h.b16 %v3768
    %v4552 = vunpack.c.l.b16 %v3769
    %v4553 = vunpack.c.h.b16 %v3769
    %v4554 = vunpack.c.l.b16 %v3770
    %v4555 = vunpack.c.h.b16 %v3770
    %v4556 = vunpack.c.l.b16 %v3771
    %v4557 = vunpack.c.h.b16 %v3771
    %v4558 = vunpack.c.l.b16 %v3772
    %v4559 = vunpack.c.h.b16 %v3772
    %v4560 = vunpack.c.l.b16 %v3773
    %v4561 = vunpack.c.h.b16 %v3773
    %v4562 = vunpack.c.l.b16 %v3774
    %v4563 = vunpack.c.h.b16 %v3774
    %v4564 = vunpack.c.l.b16 %v3775
    %v4565 = vunpack.c.h.b16 %v3775
    %v4566 = vunpack.c.l.b16 %v3776
    %v4567 = vunpack.c.h.b16 %v3776
    %v4568 = vunpack.c.l.b16 %v3777
    %v4569 = vunpack.c.h.b16 %v3777
    %v4570 = vunpack.c.l.b16 %v3778
    %v4571 = vunpack.c.h.b16 %v3778
    %v4572 = vunpack.c.l.b16 %v3779
    %v4573 = vunpack.c.h.b16 %v3779
    %v4574 = vunpack.c.l.b16 %v3780
    %v4575 = vunpack.c.h.b16 %v3780
    %v4576 = vunpack.c.l.b16 %v3781
    %v4577 = vunpack.c.h.b16 %v3781
    %v4578 = vunpack.c.l.b16 %v3782
    %v4579 = vunpack.c.h.b16 %v3782
    %v4580 = vunpack.c.l.b16 %v3783
    %v4581 = vunpack.c.h.b16 %v3783
    %v4582 = vunpack.c.l.b16 %v3784
    %v4583 = vunpack.c.h.b16 %v3784
    %v4584 = vunpack.c.l.b16 %v3785
    %v4585 = vunpack.c.h.b16 %v3785
    %v4586 = vunpack.c.l.b16 %v3786
    %v4587 = vunpack.c.h.b16 %v3786
    %v4588 = vunpack.c.l.b16 %v3787
    %v4589 = vunpack.c.h.b16 %v3787
    %v4590 = vunpack.c.l.b16 %v3788
    %v4591 = vunpack.c.h.b16 %v3788
    %v4592 = vunpack.c.l.b16 %v3789
    %v4593 = vunpack.c.h.b16 %v3789
    %v4594 = vunpack.c.l.b16 %v3790
    %v4595 = vunpack.c.h.b16 %v3790
    %v4596 = vunpack.c.l.b16 %v3791
    %v4597 = vunpack.c.h.b16 %v3791
    %v4598 = vunpack.c.l.b16 %v3792
    %v4599 = vunpack.c.h.b16 %v3792
    %v4600 = vunpack.c.l.b16 %v3793
    %v4601 = vunpack.c.h.b16 %v3793
    %v4602 = vunpack.c.l.b16 %v3794
    %v4603 = vunpack.c.h.b16 %v3794
    %v4604 = vunpack.c.l.b16 %v3795
    %v4605 = vunpack.c.h.b16 %v3795
    %v4606 = vunpack.c.l.b16 %v3796
    %v4607 = vunpack.c.h.b16 %v3796
    %v4608 = vunpack.c.l.b16 %v3797
    %v4609 = vunpack.c.h.b16 %v3797
    %v4610 = vunpack.c.l.b16 %v3798
    %v4611 = vunpack.c.h.b16 %v3798
    %v4612 = vunpack.c.l.b16 %v3799
    %v4613 = vunpack.c.h.b16 %v3799
    %v4614 = vunpack.c.l.b16 %v3800
    %v4615 = vunpack.c.h.b16 %v3800
    %v4616 = vunpack.c.l.b16 %v3801
    %v4617 = vunpack.c.h.b16 %v3801
    %v4618 = vunpack.c.l.b16 %v3802
    %v4619 = vunpack.c.h.b16 %v3802
    %v4620 = vunpack.c.l.b16 %v3803
    %v4621 = vunpack.c.h.b16 %v3803
    %v4622 = vunpack.c.l.b16 %v3804
    %v4623 = vunpack.c.h.b16 %v3804
    %v4624 = vunpack.c.l.b16 %v3805
    %v4625 = vunpack.c.h.b16 %v3805
    %v4626 = vunpack.c.l.b16 %v3806
    %v4627 = vunpack.c.h.b16 %v3806
    %v4628 = vunpack.c.l.b16 %v3807
    %v4629 = vunpack.c.h.b16 %v3807
    %v4630 = vunpack.c.l.b16 %v3808
    %v4631 = vunpack.c.h.b16 %v3808
    %v4632 = vunpack.c.l.b16 %v3809
    %v4633 = vunpack.c.h.b16 %v3809
    %v4634 = vunpack.c.l.b16 %v3810
    %v4635 = vunpack.c.h.b16 %v3810
    %v4636 = vunpack.c.l.b16 %v3811
    %v4637 = vunpack.c.h.b16 %v3811
    %v4638 = vunpack.c.l.b16 %v3812
    %v4639 = vunpack.c.h.b16 %v3812
    %v4640 = vunpack.c.l.b16 %v3813
    %v4641 = vunpack.c.h.b16 %v3813
    %v4642 = vunpack.c.l.b16 %v3814
    %v4643 = vunpack.c.h.b16 %v3814
    %v4644 = vunpack.c.l.b16 %v3815
    %v4645 = vunpack.c.h.b16 %v3815
    %v4646 = vunpack.c.l.b16 %v3816
    %v4647 = vunpack.c.h.b16 %v3816
    %v4648 = vunpack.c.l.b16 %v3817
    %v4649 = vunpack.c.h.b16 %v3817
    %v4650 = vunpack.c.l.b16 %v3818
    %v4651 = vunpack.c.h.b16 %v3818
    %v4652 = vunpack.c.l.b16 %v3819
    %v4653 = vunpack.c.h.b16 %v3819
    %v4654 = vunpack.c.l.b16 %v3820
    %v4655 = vunpack.c.h.b16 %v3820
    %v4656 = vunpack.c.l.b16 %v3821
    %v4657 = vunpack.c.h.b16 %v3821
    %v4658 = vunpack.c.l.b16 %v3822
    %v4659 = vunpack.c.h.b16 %v3822
    %v4660 = vunpack.c.l.b16 %v3823
    %v4661 = vunpack.c.h.b16 %v3823
    %v4662 = vunpack.c.l.b16 %v3824
    %v4663 = vunpack.c.h.b16 %v3824
    %v4664 = vunpack.c.l.b16 %v3825
    %v4665 = vunpack.c.h.b16 %v3825
    %v4666 = vunpack.c.l.b16 %v3826
    %v4667 = vunpack.c.h.b16 %v3826
    %v4668 = vunpack.c.l.b16 %v3827
    %v4669 = vunpack.c.h.b16 %v3827
    %v4670 = vunpack.c.l.b16 %v3828
    %v4671 = vunpack.c.h.b16 %v3828
    %v4672 = vunpack.c.l.b16 %v3829
    %v4673 = vunpack.c.h.b16 %v3829
    %v4674 = vunpack.c.l.b16 %v3830
    %v4675 = vunpack.c.h.b16 %v3830
    %v4676 = vunpack.c.l.b16 %v3831
    %v4677 = vunpack.c.h.b16 %v3831
    %v4678 = vunpack.c.l.b16 %v3832
    %v4679 = vunpack.c.h.b16 %v3832
    %v4680 = vunpack.c.l.b16 %v3833
    %v4681 = vunpack.c.h.b16 %v3833
    %v4682 = vunpack.c.l.b16 %v3834
    %v4683 = vunpack.c.h.b16 %v3834
    %v4684 = vunpack.c.l.b16 %v3835
    %v4685 = vunpack.c.h.b16 %v3835
    %v4686 = vunpack.c.l.b16 %v3836
    %v4687 = vunpack.c.h.b16 %v3836
    %v4688 = vunpack.c.l.b16 %v3837
    %v4689 = vunpack.c.h.b16 %v3837
    %v4690 = vunpack.c.l.b16 %v3838
    %v4691 = vunpack.c.h.b16 %v3838
    %v4692 = vunpack.c.l.b16 %v3839
    %v4693 = vunpack.c.h.b16 %v3839
    %v4694 = vunpack.c.l.b16 %v3840
    %v4695 = vunpack.c.h.b16 %v3840
    %v4696 = vunpack.c.l.b16 %v3841
    %v4697 = vunpack.c.h.b16 %v3841
    %v4698 = vunpack.c.l.b16 %v3842
    %v4699 = vunpack.c.h.b16 %v3842
    %v4700 = vunpack.c.l.b16 %v3843
    %v4701 = vunpack.c.h.b16 %v3843
    %v4702 = vunpack.c.l.b16 %v3844
    %v4703 = vunpack.c.h.b16 %v3844
    %v4704 = vunpack.c.l.b16 %v3845
    %v4705 = vunpack.c.h.b16 %v3845
    %v4706 = vunpack.c.l.b16 %v3846
    %v4707 = vunpack.c.h.b16 %v3846
    %v4708 = vunpack.c.l.b16 %v3847
    %v4709 = vunpack.c.h.b16 %v3847
    %v4710 = vunpack.c.l.b16 %v3848
    %v4711 = vunpack.c.h.b16 %v3848
    %v4712 = vunpack.c.l.b16 %v3849
    %v4713 = vunpack.c.h.b16 %v3849
    %v4714 = vunpack.c.l.b16 %v3850
    %v4715 = vunpack.c.h.b16 %v3850
    %v4716 = vunpack.c.l.b16 %v3851
    %v4717 = vunpack.c.h.b16 %v3851
    %v4718 = vunpack.c.l.b16 %v3852
    %v4719 = vunpack.c.h.b16 %v3852
    %v4720 = vunpack.c.l.b16 %v3853
    %v4721 = vunpack.c.h.b16 %v3853
    %v4722 = vunpack.c.l.b16 %v3854
    %v4723 = vunpack.c.h.b16 %v3854
    %v4724 = vunpack.c.l.b16 %v3855
    %v4725 = vunpack.c.h.b16 %v3855
    %v4726 = vunpack.c.l.b16 %v3856
    %v4727 = vunpack.c.h.b16 %v3856
    %v4728 = vunpack.c.l.b16 %v3857
    %v4729 = vunpack.c.h.b16 %v3857
    %v4730 = vunpack.c.l.b16 %v3858
    %v4731 = vunpack.c.h.b16 %v3858
    %v4732 = vunpack.c.l.b16 %v3859
    %v4733 = vunpack.c.h.b16 %v3859
    %v4734 = vunpack.c.l.b16 %v3860
    %v4735 = vunpack.c.h.b16 %v3860
    %v4736 = vunpack.c.l.b16 %v3861
    %v4737 = vunpack.c.h.b16 %v3861
    %v4738 = vunpack.c.l.b16 %v3862
    %v4739 = vunpack.c.h.b16 %v3862
    %v4740 = vunpack.c.l.b16 %v3863
    %v4741 = vunpack.c.h.b16 %v3863
    %v4742 = vunpack.c.l.b16 %v3864
    %v4743 = vunpack.c.h.b16 %v3864
    %v4744 = vunpack.c.l.b16 %v3865
    %v4745 = vunpack.c.h.b16 %v3865
    %v4746 = vunpack.c.l.b16 %v3866
    %v4747 = vunpack.c.h.b16 %v3866
    %v4748 = vunpack.c.l.b16 %v3867
    %v4749 = vunpack.c.h.b16 %v3867
    %v4750 = vunpack.c.l.b16 %v3868
    %v4751 = vunpack.c.h.b16 %v3868
    %v4752 = vunpack.c.l.b16 %v3869
    %v4753 = vunpack.c.h.b16 %v3869
    %v4754 = vunpack.c.l.b16 %v3870
    %v4755 = vunpack.c.h.b16 %v3870
    %v4756 = vunpack.c.l.b16 %v3871
    %v4757 = vunpack.c.h.b16 %v3871
    %v4758 = vunpack.c.l.b16 %v3872
    %v4759 = vunpack.c.h.b16 %v3872
    %v4760 = vunpack.c.l.b16 %v3873
    %v4761 = vunpack.c.h.b16 %v3873
    %v4762 = vunpack.c.l.b16 %v3874
    %v4763 = vunpack.c.h.b16 %v3874
    %v4764 = vunpack.c.l.b16 %v3875
    %v4765 = vunpack.c.h.b16 %v3875
    %v4766 = vunpack.c.l.b16 %v3876
    %v4767 = vunpack.c.h.b16 %v3876
    %v4768 = vunpack.c.l.b16 %v3877
    %v4769 = vunpack.c.h.b16 %v3877
    %v4770 = vunpack.c.l.b16 %v3878
    %v4771 = vunpack.c.h.b16 %v3878
    %v4772 = vunpack.c.l.b16 %v3879
    %v4773 = vunpack.c.h.b16 %v3879
    %v4774 = vunpack.c.l.b16 %v3880
    %v4775 = vunpack.c.h.b16 %v3880
    %v4776 = vunpack.c.l.b16 %v3881
    %v4777 = vunpack.c.h.b16 %v3881
    %v4778 = vunpack.c.l.b16 %v3882
    %v4779 = vunpack.c.h.b16 %v3882
    %v4780 = vunpack.c.l.b16 %v3883
    %v4781 = vunpack.c.h.b16 %v3883
    %v4782 = vunpack.c.l.b16 %v3884
    %v4783 = vunpack.c.h.b16 %v3884
    %v4784 = vunpack.c.l.b16 %v3885
    %v4785 = vunpack.c.h.b16 %v3885
    %v4786 = vunpack.c.l.b16 %v3886
    %v4787 = vunpack.c.h.b16 %v3886
    %v4788 = vunpack.c.l.b16 %v3887
    %v4789 = vunpack.c.h.b16 %v3887
    %v4790 = vunpack.c.l.b16 %v3888
    %v4791 = vunpack.c.h.b16 %v3888
    %v4792 = vunpack.c.l.b16 %v3889
    %v4793 = vunpack.c.h.b16 %v3889
    %v4794 = vunpack.c.l.b16 %v3890
    %v4795 = vunpack.c.h.b16 %v3890
    %v4796 = vunpack.c.l.b16 %v3891
    %v4797 = vunpack.c.h.b16 %v3891
    %v4798 = vunpack.c.l.b16 %v3892
    %v4799 = vunpack.c.h.b16 %v3892
    %v4800 = vunpack.c.l.b16 %v3893
    %v4801 = vunpack.c.h.b16 %v3893
    %v4802 = vunpack.c.l.b16 %v3894
    %v4803 = vunpack.c.h.b16 %v3894
    %v4804 = vunpack.c.l.b16 %v3895
    %v4805 = vunpack.c.h.b16 %v3895
    %v4806 = vunpack.c.l.b16 %v3896
    %v4807 = vunpack.c.h.b16 %v3896
    %v4808 = vunpack.c.l.b16 %v3897
    %v4809 = vunpack.c.h.b16 %v3897
    %v4810 = vunpack.c.l.b16 %v3898
    %v4811 = vunpack.c.h.b16 %v3898
    %v4812 = vunpack.c.l.b16 %v3899
    %v4813 = vunpack.c.h.b16 %v3899
    %v4814 = vunpack.c.l.b16 %v3900
    %v4815 = vunpack.c.h.b16 %v3900
    %v4816 = vunpack.c.l.b16 %v3901
    %v4817 = vunpack.c.h.b16 %v3901
    %v4818 = vunpack.c.l.b16 %v3902
    %v4819 = vunpack.c.h.b16 %v3902
    %v4820 = vunpack.c.l.b16 %v3903
    %v4821 = vunpack.c.h.b16 %v3903
    %v4822 = vunpack.c.l.b16 %v3904
    %v4823 = vunpack.c.h.b16 %v3904
    %v4824 = vunpack.c.l.b16 %v3905
    %v4825 = vunpack.c.h.b16 %v3905
    %v4826 = vunpack.c.l.b16 %v3906
    %v4827 = vunpack.c.h.b16 %v3906
    %v4828 = vunpack.c.l.b16 %v3907
    %v4829 = vunpack.c.h.b16 %v3907
    %v4830 = vunpack.c.l.b16 %v3908
    %v4831 = vunpack.c.h.b16 %v3908
    %v4832 = vunpack.c.l.b16 %v3909
    %v4833 = vunpack.c.h.b16 %v3909
    %v4834 = vunpack.c.l.b16 %v3910
    %v4835 = vunpack.c.h.b16 %v3910
    %v4836 = vunpack.c.l.b16 %v3911
    %v4837 = vunpack.c.h.b16 %v3911
    %v4838 = vunpack.c.l.b16 %v3912
    %v4839 = vunpack.c.h.b16 %v3912
    %v4840 = vunpack.c.l.b16 %v3913
    %v4841 = vunpack.c.h.b16 %v3913
    %v4842 = vunpack.c.l.b16 %v3914
    %v4843 = vunpack.c.h.b16 %v3914
    %v4844 = vunpack.c.l.b16 %v3915
    %v4845 = vunpack.c.h.b16 %v3915
    %v4846 = vunpack.c.l.b16 %v3916
    %v4847 = vunpack.c.h.b16 %v3916
    %v4848 = vunpack.c.l.b16 %v3917
    %v4849 = vunpack.c.h.b16 %v3917
    %v4850 = vunpack.c.l.b16 %v3918
    %v4851 = vunpack.c.h.b16 %v3918
    %v4852 = vunpack.c.l.b16 %v3919
    %v4853 = vunpack.c.h.b16 %v3919
    %v4854 = vunpack.c.l.b16 %v3920
    %v4855 = vunpack.c.h.b16 %v3920
    %v4856 = vunpack.c.l.b16 %v3921
    %v4857 = vunpack.c.h.b16 %v3921
    %v4858 = vunpack.c.l.b16 %v3922
    %v4859 = vunpack.c.h.b16 %v3922
    %v4860 = vunpack.c.l.b16 %v3923
    %v4861 = vunpack.c.h.b16 %v3923
    %v4862 = vunpack.c.l.b16 %v3924
    %v4863 = vunpack.c.h.b16 %v3924
    %v4864 = vunpack.c.l.b16 %v3925
    %v4865 = vunpack.c.h.b16 %v3925
    %v4866 = vunpack.c.l.b16 %v3926
    %v4867 = vunpack.c.h.b16 %v3926
    %v4868 = vunpack.c.l.b16 %v3927
    %v4869 = vunpack.c.h.b16 %v3927
    %v4870 = vunpack.c.l.b16 %v3928
    %v4871 = vunpack.c.h.b16 %v3928
    %v4872 = vunpack.c.l.b16 %v3929
    %v4873 = vunpack.c.h.b16 %v3929
    %v4874 = vunpack.c.l.b16 %v3930
    %v4875 = vunpack.c.h.b16 %v3930
    %v4876 = vunpack.c.l.b16 %v3931
    %v4877 = vunpack.c.h.b16 %v3931
    %v4878 = vunpack.c.l.b16 %v3932
    %v4879 = vunpack.c.h.b16 %v3932
    %v4880 = vunpack.c.l.b16 %v3933
    %v4881 = vunpack.c.h.b16 %v3933
    %v4882 = vunpack.c.l.b16 %v3934
    %v4883 = vunpack.c.h.b16 %v3934
    %v4884 = vunpack.c.l.b16 %v3935
    %v4885 = vunpack.c.h.b16 %v3935
    %v4886 = vunpack.c.l.b16 %v3936
    %v4887 = vunpack.c.h.b16 %v3936
    %v4888 = vunpack.c.l.b16 %v3937
    %v4889 = vunpack.c.h.b16 %v3937
    %v4890 = vunpack.c.l.b16 %v3938
    %v4891 = vunpack.c.h.b16 %v3938
    %v4892 = vunpack.c.l.b16 %v3939
    %v4893 = vunpack.c.h.b16 %v3939
    %v4894 = vunpack.c.l.b16 %v3940
    %v4895 = vunpack.c.h.b16 %v3940
    %v4896 = vunpack.c.l.b16 %v3941
    %v4897 = vunpack.c.h.b16 %v3941
    %v4898 = vunpack.c.l.b16 %v3942
    %v4899 = vunpack.c.h.b16 %v3942
    %v4900 = vunpack.c.l.b16 %v3943
    %v4901 = vunpack.c.h.b16 %v3943
    %v4902 = vunpack.c.l.b16 %v3944
    %v4903 = vunpack.c.h.b16 %v3944
    %v4904 = vunpack.c.l.b16 %v3945
    %v4905 = vunpack.c.h.b16 %v3945
    %v4906 = vunpack.c.l.b16 %v3946
    %v4907 = vunpack.c.h.b16 %v3946
    %v4908 = vunpack.c.l.b16 %v3947
    %v4909 = vunpack.c.h.b16 %v3947
    %v4910 = vunpack.c.l.b16 %v3948
    %v4911 = vunpack.c.h.b16 %v3948
    %v4912 = vunpack.c.l.b16 %v3949
    %v4913 = vunpack.c.h.b16 %v3949
    %v4914 = vunpack.c.l.b16 %v3950
    %v4915 = vunpack.c.h.b16 %v3950
    %v4916 = vunpack.c.l.b16 %v3951
    %v4917 = vunpack.c.h.b16 %v3951
    %v4918 = vunpack.c.l.b16 %v3952
    %v4919 = vunpack.c.h.b16 %v3952
    %v4920 = vunpack.c.l.b16 %v3953
    %v4921 = vunpack.c.h.b16 %v3953
    %v4922 = vunpack.c.l.b16 %v3954
    %v4923 = vunpack.c.h.b16 %v3954
    %v4924 = vunpack.c.l.b16 %v3955
    %v4925 = vunpack.c.h.b16 %v3955
    %v4926 = vunpack.c.l.b16 %v3956
    %v4927 = vunpack.c.h.b16 %v3956
    %v4928 = vunpack.c.l.b16 %v3957
    %v4929 = vunpack.c.h.b16 %v3957
    %v4930 = vunpack.c.l.b16 %v3958
    %v4931 = vunpack.c.h.b16 %v3958
    %v4932 = vunpack.c.l.b16 %v3959
    %v4933 = vunpack.c.h.b16 %v3959
    %v4934 = vunpack.c.l.b16 %v3960
    %v4935 = vunpack.c.h.b16 %v3960
    %v4936 = vunpack.c.l.b16 %v3961
    %v4937 = vunpack.c.h.b16 %v3961
    %v4938 = vunpack.c.l.b16 %v3962
    %v4939 = vunpack.c.h.b16 %v3962
    %v4940 = vunpack.c.l.b16 %v3963
    %v4941 = vunpack.c.h.b16 %v3963
    %v4942 = vunpack.c.l.b16 %v3964
    %v4943 = vunpack.c.h.b16 %v3964
    %v4944 = vunpack.c.l.b16 %v3965
    %v4945 = vunpack.c.h.b16 %v3965
    %v4946 = vunpack.c.l.b16 %v3966
    %v4947 = vunpack.c.h.b16 %v3966
    %v4948 = vunpack.c.l.b16 %v3967
    %v4949 = vunpack.c.h.b16 %v3967
    %v4950 = vunpack.c.l.b16 %v3968
    %v4951 = vunpack.c.h.b16 %v3968
    %v4952 = vunpack.c.l.b16 %v3969
    %v4953 = vunpack.c.h.b16 %v3969
    %v4954 = vunpack.c.l.b16 %v3970
    %v4955 = vunpack.c.h.b16 %v3970
    %v4956 = vunpack.c.l.b16 %v3971
    %v4957 = vunpack.c.h.b16 %v3971
    %v4958 = vunpack.c.l.b16 %v3972
    %v4959 = vunpack.c.h.b16 %v3972
    %v4960 = vunpack.c.l.b16 %v3973
    %v4961 = vunpack.c.h.b16 %v3973
    %v4962 = vunpack.c.l.b16 %v3974
    %v4963 = vunpack.c.h.b16 %v3974
    %v4964 = vunpack.c.l.b16 %v3975
    %v4965 = vunpack.c.h.b16 %v3975
    %v4966 = vunpack.c.l.b16 %v3976
    %v4967 = vunpack.c.h.b16 %v3976
    %v4968 = vunpack.c.l.b16 %v3977
    %v4969 = vunpack.c.h.b16 %v3977
    %v4970 = vunpack.c.l.b16 %v3978
    %v4971 = vunpack.c.h.b16 %v3978
    %v4972 = vunpack.c.l.b16 %v3979
    %v4973 = vunpack.c.h.b16 %v3979
    %v4974 = vunpack.c.l.b16 %v3980
    %v4975 = vunpack.c.h.b16 %v3980
    %v4976 = vunpack.c.l.b16 %v3981
    %v4977 = vunpack.c.h.b16 %v3981
    %v4978 = vunpack.c.l.b16 %v3982
    %v4979 = vunpack.c.h.b16 %v3982
    %v4980 = vunpack.c.l.b16 %v3983
    %v4981 = vunpack.c.h.b16 %v3983
    %v4982 = vunpack.c.l.b16 %v3984
    %v4983 = vunpack.c.h.b16 %v3984
    %v4984 = vunpack.c.l.b16 %v3985
    %v4985 = vunpack.c.h.b16 %v3985
    %v4986 = vunpack.c.l.b16 %v3986
    %v4987 = vunpack.c.h.b16 %v3986
    %v4988 = vunpack.c.l.b16 %v3987
    %v4989 = vunpack.c.h.b16 %v3987
    %v4990 = vunpack.c.l.b16 %v3988
    %v4991 = vunpack.c.h.b16 %v3988
    %v4992 = vunpack.c.l.b16 %v3989
    %v4993 = vunpack.c.h.b16 %v3989
    %v4994 = vunpack.c.l.b16 %v3990
    %v4995 = vunpack.c.h.b16 %v3990
    %v4996 = vunpack.c.l.b16 %v3991
    %v4997 = vunpack.c.h.b16 %v3991
    %v4998 = vunpack.c.l.b16 %v3992
    %v4999 = vunpack.c.h.b16 %v3992
    %v5000 = vunpack.c.l.b16 %v3993
    %v5001 = vunpack.c.h.b16 %v3993
    %v5002 = vunpack.c.l.b16 %v3994
    %v5003 = vunpack.c.h.b16 %v3994
    %v5004 = vunpack.c.l.b16 %v3995
    %v5005 = vunpack.c.h.b16 %v3995
    %v5006 = vunpack.c.l.b16 %v3996
    %v5007 = vunpack.c.h.b16 %v3996
    %v5008 = vunpack.c.l.b16 %v3997
    %v5009 = vunpack.c.h.b16 %v3997
    %v5010 = vunpack.c.l.b16 %v3998
    %v5011 = vunpack.c.h.b16 %v3998
    %v5012 = vunpack.c.l.b16 %v3999
    %v5013 = vunpack.c.h.b16 %v3999
    %v5014 = vpack.c.b16 %v4444, %v4438
    %v5015 = vpack.c.b16 %v4445, %v4439
    %v5016 = vpack.c.b16 %v4446, %v4440
    %v5017 = vpack.c.b16 %v4447, %v4441
    %v5018 = vpack.c.b16 %v4448, %v4442
    %v5019 = vpack.c.b16 %v4449, %v4443
    %v5020 = vpack.c.b16 %v4456, %v4450
    %v5021 = vpack.c.b16 %v4457, %v4451
    %v5022 = vpack.c.b16 %v4458, %v4452
    %v5023 = vpack.c.b16 %v4459, %v4453
    %v5024 = vpack.c.b16 %v4460, %v4454
    %v5025 = vpack.c.b16 %v4461, %v4455
    %v5026 = vpack.c.b16 %v4468, %v4462
    %v5027 = vpack.c.b16 %v4469, %v4463
    %v5028 = vpack.c.b16 %v4470, %v4464
    %v5029 = vpack.c.b16 %v4471, %v4465
    %v5030 = vpack.c.b16 %v4472, %v4466
    %v5031 = vpack.c.b16 %v4473, %v4467
    %v5032 = vpack.c.b16 %v4480, %v4474
    %v5033 = vpack.c.b16 %v4481, %v4475
    %v5034 = vpack.c.b16 %v4482, %v4476
    %v5035 = vpack.c.b16 %v4483, %v4477
    %v5036 = vpack.c.b16 %v4484, %v4478
    %v5037 = vpack.c.b16 %v4485, %v4479
    %v5038 = vpack.c.b16 %v4492, %v4486
    %v5039 = vpack.c.b16 %v4493, %v4487
    %v5040 = vpack.c.b16 %v4494, %v4488
    %v5041 = vpack.c.b16 %v4495, %v4489
    %v5042 = vpack.c.b16 %v4496, %v4490
    %v5043 = vpack.c.b16 %v4497, %v4491
    %v5044 = vpack.c.b16 %v4504, %v4498
    %v5045 = vpack.c.b16 %v4505, %v4499
    %v5046 = vpack.c.b16 %v4506, %v4500
    %v5047 = vpack.c.b16 %v4507, %v4501
    %v5048 = vpack.c.b16 %v4508, %v4502
    %v5049 = vpack.c.b16 %v4509, %v4503
    %v5050 = vpack.c.b16 %v4516, %v4510
    %v5051 = vpack.c.b16 %v4517, %v4511
    %v5052 = vpack.c.b16 %v4518, %v4512
    %v5053 = vpack.c.b16 %v4519, %v4513
    %v5054 = vpack.c.b16 %v4520, %v4514
    %v5055 = vpack.c.b16 %v4521, %v4515
    %v5056 = vpack.c.b16 %v4528, %v4522
    %v5057 = vpack.c.b16 %v4529, %v4523
    %v5058 = vpack.c.b16 %v4530, %v4524
    %v5059 = vpack.c.b16 %v4531, %v4525
    %v5060 = vpack.c.b16 %v4532, %v4526
    %v5061 = vpack.c.b16 %v4533, %v4527
    %v5062 = vpack.c.b16 %v4540, %v4534
    %v5063 = vpack.c.b16 %v4541, %v4535
    %v5064 = vpack.c.b16 %v4542, %v4536
    %v5065 = vpack.c.b16 %v4543, %v4537
    %v5066 = vpack.c.b16 %v4544, %v4538
    %v5067 = vpack.c.b16 %v4545, %v4539
    %v5068 = vpack.c.b16 %v4552, %v4546
    %v5069 = vpack.c.b16 %v4553, %v4547
    %v5070 = vpack.c.b16 %v4554, %v4548
    %v5071 = vpack.c.b16 %v4555, %v4549
    %v5072 = vpack.c.b16 %v4556, %v4550
    %v5073 = vpack.c.b16 %v4557, %v4551
    %v5074 = vpack.c.b16 %v4564, %v4558
    %v5075 = vpack.c.b16 %v4565, %v4559
    %v5076 = vpack.c.b16 %v4566, %v4560
    %v5077 = vpack.c.b16 %v4567, %v4561
    %v5078 = vpack.c.b16 %v4568, %v4562
    %v5079 = vpack.c.b16 %v4569, %v4563
    %v5080 = vpack.c.b16 %v4576, %v4570
    %v5081 = vpack.c.b16 %v4577, %v4571
    %v5082 = vpack.c.b16 %v4578, %v4572
    %v5083 = vpack.c.b16 %v4579, %v4573
    %v5084 = vpack.c.b16 %v4580, %v4574
    %v5085 = vpack.c.b16 %v4581, %v4575
    %v5086 = vpack.c.b16 %v4588, %v4582
    %v5087 = vpack.c.b16 %v4589, %v4583
    %v5088 = vpack.c.b16 %v4590, %v4584
    %v5089 = vpack.c.b16 %v4591, %v4585
    %v5090 = vpack.c.b16 %v4592, %v4586
    %v5091 = vpack.c.b16 %v4593, %v4587
    %v5092 = vpack.c.b16 %v4600, %v4594
    %v5093 = vpack.c.b16 %v4601, %v4595
    %v5094 = vpack.c.b16 %v4602, %v4596
    %v5095 = vpack.c.b16 %v4603, %v4597
    %v5096 = vpack.c.b16 %v4604, %v4598
    %v5097 = vpack.c.b16 %v4605, %v4599
    %v5098 = vpack.c.b16 %v4612, %v4606
    %v5099 = vpack.c.b16 %v4613, %v4607
    %v5100 = vpack.c.b16 %v4614, %v4608
    %v5101 = vpack.c.b16 %v4615, %v4609
    %v5102 = vpack.c.b16 %v4616, %v4610
    %v5103 = vpack.c.b16 %v4617, %v4611
    %v5104 = vpack.c.b16 %v4624, %v4618
    %v5105 = vpack.c.b16 %v4625, %v4619
    %v5106 = vpack.c.b16 %v4626, %v4620
    %v5107 = vpack.c.b16 %v4627, %v4621
    %v5108 = vpack.c.b16 %v4628, %v4622
    %v5109 = vpack.c.b16 %v4629, %v4623
    %v5110 = vpack.c.b16 %v4636, %v4630
    %v5111 = vpack.c.b16 %v4637, %v4631
    %v5112 = vpack.c.b16 %v4638, %v4632
    %v5113 = vpack.c.b16 %v4639, %v4633
    %v5114 = vpack.c.b16 %v4640, %v4634
    %v5115 = vpack.c.b16 %v4641, %v4635
    %v5116 = vpack.c.b16 %v4648, %v4642
    %v5117 = vpack.c.b16 %v4649, %v4643
    %v5118 = vpack.c.b16 %v4650, %v4644
    %v5119 = vpack.c.b16 %v4651, %v4645
    %v5120 = vpack.c.b16 %v4652, %v4646
    %v5121 = vpack.c.b16 %v4653, %v4647
    %v5122 = vpack.c.b16 %v4660, %v4654
    %v5123 = vpack.c.b16 %v4661, %v4655
    %v5124 = vpack.c.b16 %v4662, %v4656
    %v5125 = vpack.c.b16 %v4663, %v4657
    %v5126 = vpack.c.b16 %v4664, %v4658
    %v5127 = vpack.c.b16 %v4665, %v4659
    %v5128 = vpack.c.b16 %v4672, %v4666
    %v5129 = vpack.c.b16 %v4673, %v4667
    %v5130 = vpack.c.b16 %v4674, %v4668
    %v5131 = vpack.c.b16 %v4675, %v4669
    %v5132 = vpack.c.b16 %v4676, %v4670
    %v5133 = vpack.c.b16 %v4677, %v4671
    %v5134 = vpack.c.b16 %v4684, %v4678
    %v5135 = vpack.c.b16 %v4685, %v4679
    %v5136 = vpack.c.b16 %v4686, %v4680
    %v5137 = vpack.c.b16 %v4687, %v4681
    %v5138 = vpack.c.b16 %v4688, %v4682
    %v5139 = vpack.c.b16 %v4689, %v4683
    %v5140 = vpack.c.b16 %v4696, %v4690
    %v5141 = vpack.c.b16 %v4697, %v4691
    %v5142 = vpack.c.b16 %v4698, %v4692
    %v5143 = vpack.c.b16 %v4699, %v4693
    %v5144 = vpack.c.b16 %v4700, %v4694
    %v5145 = vpack.c.b16 %v4701, %v4695
    %v5146 = vpack.c.b16 %v4708, %v4702
    %v5147 = vpack.c.b16 %v4709, %v4703
    %v5148 = vpack.c.b16 %v4710, %v4704
    %v5149 = vpack.c.b16 %v4711, %v4705
    %v5150 = vpack.c.b16 %v4712, %v4706
    %v5151 = vpack.c.b16 %v4713, %v4707
    %v5152 = vpack.c.b16 %v4720, %v4714
    %v5153 = vpack.c.b16 %v4721, %v4715
    %v5154 = vpack.c.b16 %v4722, %v4716
    %v5155 = vpack.c.b16 %v4723, %v4717
    %v5156 = vpack.c.b16 %v4724, %v4718
    %v5157 = vpack.c.b16 %v4725, %v4719
    %v5158 = vpack.c.b16 %v4732, %v4726
    %v5159 = vpack.c.b16 %v4733, %v4727
    %v5160 = vpack.c.b16 %v4734, %v4728
    %v5161 = vpack.c.b16 %v4735, %v4729
    %v5162 = vpack.c.b16 %v4736, %v4730
    %v5163 = vpack.c.b16 %v4737, %v4731
    %v5164 = vpack.c.b16 %v4744, %v4738
    %v5165 = vpack.c.b16 %v4745, %v4739
    %v5166 = vpack.c.b16 %v4746, %v4740
    %v5167 = vpack.c.b16 %v4747, %v4741
    %v5168 = vpack.c.b16 %v4748, %v4742
    %v5169 = vpack.c.b16 %v4749, %v4743
    %v5170 = vpack.c.b16 %v4756, %v4750
    %v5171 = vpack.c.b16 %v4757, %v4751
    %v5172 = vpack.c.b16 %v4758, %v4752
    %v5173 = vpack.c.b16 %v4759, %v4753
    %v5174 = vpack.c.b16 %v4760, %v4754
    %v5175 = vpack.c.b16 %v4761, %v4755
    %v5176 = vpack.c.b16 %v4768, %v4762
    %v5177 = vpack.c.b16 %v4769, %v4763
    %v5178 = vpack.c.b16 %v4770, %v4764
    %v5179 = vpack.c.b16 %v4771, %v4765
    %v5180 = vpack.c.b16 %v4772, %v4766
    %v5181 = vpack.c.b16 %v4773, %v4767
    %v5182 = vpack.c.b16 %v4780, %v4774
    %v5183 = vpack.c.b16 %v4781, %v4775
    %v5184 = vpack.c.b16 %v4782, %v4776
    %v5185 = vpack.c.b16 %v4783, %v4777
    %v5186 = vpack.c.b16 %v4784, %v4778
    %v5187 = vpack.c.b16 %v4785, %v4779
    %v5188 = vpack.c.b16 %v4792, %v4786
    %v5189 = vpack.c.b16 %v4793, %v4787
    %v5190 = vpack.c.b16 %v4794, %v4788
    %v5191 = vpack.c.b16 %v4795, %v4789
    %v5192 = vpack.c.b16 %v4796, %v4790
    %v5193 = vpack.c.b16 %v4797, %v4791
    %v5194 = vpack.c.b16 %v4804, %v4798
    %v5195 = vpack.c.b16 %v4805, %v4799
    %v5196 = vpack.c.b16 %v4806, %v4800
    %v5197 = vpack.c.b16 %v4807, %v4801
    %v5198 = vpack.c.b16 %v4808, %v4802
    %v5199 = vpack.c.b16 %v4809, %v4803
    %v5200 = vpack.c.b16 %v4816, %v4810
    %v5201 = vpack.c.b16 %v4817, %v4811
    %v5202 = vpack.c.b16 %v4818, %v4812
    %v5203 = vpack.c.b16 %v4819, %v4813
    %v5204 = vpack.c.b16 %v4820, %v4814
    %v5205 = vpack.c.b16 %v4821, %v4815
    %v5206 = vpack.c.b16 %v4828, %v4822
    %v5207 = vpack.c.b16 %v4829, %v4823
    %v5208 = vpack.c.b16 %v4830, %v4824
    %v5209 = vpack.c.b16 %v4831, %v4825
    %v5210 = vpack.c.b16 %v4832, %v4826
    %v5211 = vpack.c.b16 %v4833, %v4827
    %v5212 = vpack.c.b16 %v4840, %v4834
    %v5213 = vpack.c.b16 %v4841, %v4835
    %v5214 = vpack.c.b16 %v4842, %v4836
    %v5215 = vpack.c.b16 %v4843, %v4837
    %v5216 = vpack.c.b16 %v4844, %v4838
    %v5217 = vpack.c.b16 %v4845, %v4839
    %v5218 = vpack.c.b16 %v4852, %v4846
    %v5219 = vpack.c.b16 %v4853, %v4847
    %v5220 = vpack.c.b16 %v4854, %v4848
    %v5221 = vpack.c.b16 %v4855, %v4849
    %v5222 = vpack.c.b16 %v4856, %v4850
    %v5223 = vpack.c.b16 %v4857, %v4851
    %v5224 = vpack.c.b16 %v4864, %v4858
    %v5225 = vpack.c.b16 %v4865, %v4859
    %v5226 = vpack.c.b16 %v4866, %v4860
    %v5227 = vpack.c.b16 %v4867, %v4861
    %v5228 = vpack.c.b16 %v4868, %v4862
    %v5229 = vpack.c.b16 %v4869, %v4863
    %v5230 = vpack.c.b16 %v4876, %v4870
    %v5231 = vpack.c.b16 %v4877, %v4871
    %v5232 = vpack.c.b16 %v4878, %v4872
    %v5233 = vpack.c.b16 %v4879, %v4873
    %v5234 = vpack.c.b16 %v4880, %v4874
    %v5235 = vpack.c.b16 %v4881, %v4875
    %v5236 = vpack.c.b16 %v4888, %v4882
    %v5237 = vpack.c.b16 %v4889, %v4883
    %v5238 = vpack.c.b16 %v4890, %v4884
    %v5239 = vpack.c.b16 %v4891, %v4885
    %v5240 = vpack.c.b16 %v4892, %v4886
    %v5241 = vpack.c.b16 %v4893, %v4887
    %v5242 = vpack.c.b16 %v4900, %v4894
    %v5243 = vpack.c.b16 %v4901, %v4895
    %v5244 = vpack.c.b16 %v4902, %v4896
    %v5245 = vpack.c.b16 %v4903, %v4897
    %v5246 = vpack.c.b16 %v4904, %v4898
    %v5247 = vpack.c.b16 %v4905, %v4899
    %v5248 = vpack.c.b16 %v4912, %v4906
    %v5249 = vpack.c.b16 %v4913, %v4907
    %v5250 = vpack.c.b16 %v4914, %v4908
    %v5251 = vpack.c.b16 %v4915, %v4909
    %v5252 = vpack.c.b16 %v4916, %v4910
    %v5253 = vpack.c.b16 %v4917, %v4911
    %v5254 = vpack.c.b16 %v4924, %v4918
    %v5255 = vpack.c.b16 %v4925, %v4919
    %v5256 = vpack.c.b16 %v4926, %v4920
    %v5257 = vpack.c.b16 %v4927, %v4921
    %v5258 = vpack.c.b16 %v4928, %v4922
    %v5259 = vpack.c.b16 %v4929, %v4923
    %v5260 = vpack.c.b16 %v4936, %v4930
    %v5261 = vpack.c.b16 %v4937, %v4931
    %v5262 = vpack.c.b16 %v4938, %v4932
    %v5263 = vpack.c.b16 %v4939, %v4933
    %v5264 = vpack.c.b16 %v4940, %v4934
    %v5265 = vpack.c.b16 %v4941, %v4935
    %v5266 = vpack.c.b16 %v4948, %v4942
    %v5267 = vpack.c.b16 %v4949, %v4943
    %v5268 = vpack.c.b16 %v4950, %v4944
    %v5269 = vpack.c.b16 %v4951, %v4945
    %v5270 = vpack.c.b16 %v4952, %v4946
    %v5271 = vpack.c.b16 %v4953, %v4947
    %v5272 = vpack.c.b16 %v4960, %v4954
    %v5273 = vpack.c.b16 %v4961, %v4955
    %v5274 = vpack.c.b16 %v4962, %v4956
    %v5275 = vpack.c.b16 %v4963, %v4957
    %v5276 = vpack.c.b16 %v4964, %v4958
    %v5277 = vpack.c.b16 %v4965, %v4959
    %v5278 = vpack.c.b16 %v4972, %v4966
    %v5279 = vpack.c.b16 %v4973, %v4967
    %v5280 = vpack.c.b16 %v4974, %v4968
    %v5281 = vpack.c.b16 %v4975, %v4969
    %v5282 = vpack.c.b16 %v4976, %v4970
    %v5283 = vpack.c.b16 %v4977, %v4971
    %v5284 = vpack.c.b16 %v4984, %v4978
    %v5285 = vpack.c.b16 %v4985, %v4979
    %v5286 = vpack.c.b16 %v4986, %v4980
    %v5287 = vpack.c.b16 %v4987, %v4981
    %v5288 = vpack.c.b16 %v4988, %v4982
    %v5289 = vpack.c.b16 %v4989, %v4983
    %v5290 = vpack.c.b16 %v4996, %v4990
    %v5291 = vpack.c.b16 %v4997, %v4991
    %v5292 = vpack.c.b16 %v4998, %v4992
    %v5293 = vpack.c.b16 %v4999, %v4993
    %v5294 = vpack.c.b16 %v5000, %v4994
    %v5295 = vpack.c.b16 %v5001, %v4995
    %v5296 = vpack.c.b16 %v5008, %v5002
    %v5297 = vpack.c.b16 %v5009, %v5003
    %v5298 = vpack.c.b16 %v5010, %v5004
    %v5299 = vpack.c.b16 %v5011, %v5005
    %v5300 = vpack.c.b16 %v5012, %v5006
    %v5301 = vpack.c.b16 %v5013, %v5007
    %5590 = vmatprep.subr.bf16.mxu0 %v5057
    %5591 = vmatpush1.bf16.msra.mxu0 %v5056
    %5592 = vmatprep.subr.bf16.mxu0 %v5051
    %5593 = vmatpush1.bf16.msra.mxu0 %v5050
    %5594 = vmatprep.subr.bf16.mxu0 %v5045
    %5595 = vmatpush1.bf16.msra.mxu0 %v5044
    %5596 = vmatprep.subr.bf16.mxu0 %v5039
    %5597 = vmatpush1.bf16.msra.mxu0 %v5038
    %5598 = vmatprep.subr.bf16.mxu0 %v5033
    %5599 = vmatpush1.bf16.msra.mxu0 %v5032
    %5600 = vmatprep.subr.bf16.mxu0 %v5027
    %5601 = vmatpush1.bf16.msra.mxu0 %v5026
    %5602 = vmatprep.subr.bf16.mxu0 %v5021
    %5603 = vmatpush1.bf16.msra.mxu0 %v5020
    %5604 = vmatprep.subr.bf16.mxu0 %v5015
    %5605 = vmatpush1.bf16.msra.mxu0 %v5014
    %5606 = vmatprep.subr.bf16.mxu0 %v5105
    %5607 = vmatpush2.bf16.msra.mxu0 %v5104
    %5608 = vmatprep.subr.bf16.mxu0 %v5099
    %5609 = vmatpush2.bf16.msra.mxu0 %v5098
    %5610 = vmatprep.subr.bf16.mxu0 %v5093
    %5611 = vmatpush2.bf16.msra.mxu0 %v5092
    %5612 = vmatprep.subr.bf16.mxu0 %v5087
    %5613 = vmatpush2.bf16.msra.mxu0 %v5086
    %5614 = vmatprep.subr.bf16.mxu0 %v5081
    %5615 = vmatpush2.bf16.msra.mxu0 %v5080
    %5616 = vmatprep.subr.bf16.mxu0 %v5075
    %5617 = vmatpush2.bf16.msra.mxu0 %v5074
    %5618 = vmatprep.subr.bf16.mxu0 %v5069
    %5619 = vmatpush2.bf16.msra.mxu0 %v5068
    %5620 = vmatprep.subr.bf16.mxu0 %v5063
    %5621 = vmatpush2.bf16.msra.mxu0 %v5062
    %5622 = vmatprep.mubr.bf16.mxu0 %v4139
    %5623 = vmatmul.mubr.bf16.gmra.mxu0 %v4138
    %v5624 = vpop.f32.mrf.mxu0
    %v5625 = vadd.f32 0.0, %v5624
    %v5626 = vpop.f32.mrf.mxu0
    %v5627 = vadd.f32 0.0, %v5626
    %v5628 = vpop.f32.mrf.mxu0
    %v5629 = vpop.f32.mrf.mxu0
    %5630 = vdwg.mxu0
    %5631 = vmatprep.subr.bf16.mxu0 %v5153
    %5632 = vmatpush1.bf16.msra.mxu0 %v5152
    %5633 = vmatprep.subr.bf16.mxu0 %v5147
    %5634 = vmatpush1.bf16.msra.mxu0 %v5146
    %5635 = vmatprep.subr.bf16.mxu0 %v5141
    %5636 = vmatpush1.bf16.msra.mxu0 %v5140
    %5637 = vmatprep.subr.bf16.mxu0 %v5135
    %5638 = vmatpush1.bf16.msra.mxu0 %v5134
    %5639 = vmatprep.subr.bf16.mxu0 %v5129
    %5640 = vmatpush1.bf16.msra.mxu0 %v5128
    %5641 = vmatprep.subr.bf16.mxu0 %v5123
    %5642 = vmatpush1.bf16.msra.mxu0 %v5122
    %5643 = vmatprep.subr.bf16.mxu0 %v5117
    %5644 = vmatpush1.bf16.msra.mxu0 %v5116
    %5645 = vmatprep.subr.bf16.mxu0 %v5111
    %5646 = vmatpush1.bf16.msra.mxu0 %v5110
    %5647 = vmatprep.subr.bf16.mxu0 %v5201
    %5648 = vmatpush2.bf16.msra.mxu0 %v5200
    %5649 = vmatprep.subr.bf16.mxu0 %v5195
    %5650 = vmatpush2.bf16.msra.mxu0 %v5194
    %5651 = vmatprep.subr.bf16.mxu0 %v5189
    %5652 = vmatpush2.bf16.msra.mxu0 %v5188
    %5653 = vmatprep.subr.bf16.mxu0 %v5183
    %5654 = vmatpush2.bf16.msra.mxu0 %v5182
    %5655 = vmatprep.subr.bf16.mxu0 %v5177
    %5656 = vmatpush2.bf16.msra.mxu0 %v5176
    %5657 = vmatprep.subr.bf16.mxu0 %v5171
    %5658 = vmatpush2.bf16.msra.mxu0 %v5170
    %5659 = vmatprep.subr.bf16.mxu0 %v5165
    %5660 = vmatpush2.bf16.msra.mxu0 %v5164
    %5661 = vmatprep.subr.bf16.mxu0 %v5159
    %5662 = vmatpush2.bf16.msra.mxu0 %v5158
    %5663 = vmatprep.mubr.bf16.mxu0 %v4141
    %5664 = vmatmul.mubr.bf16.gmra.mxu0 %v4140
    %v5665 = vpop.f32.mrf.mxu0
    %v5666 = vadd.f32 %v5625, %v5665
    %v5667 = vpop.f32.mrf.mxu0
    %v5668 = vadd.f32 %v5627, %v5667
    %v5669 = vpop.f32.mrf.mxu0
    %v5670 = vpop.f32.mrf.mxu0
    %5671 = vdwg.mxu0
    %5672 = vmatprep.subr.bf16.mxu0 %v5249
    %5673 = vmatpush1.bf16.msra.mxu0 %v5248
    %5674 = vmatprep.subr.bf16.mxu0 %v5243
    %5675 = vmatpush1.bf16.msra.mxu0 %v5242
    %5676 = vmatprep.subr.bf16.mxu0 %v5237
    %5677 = vmatpush1.bf16.msra.mxu0 %v5236
    %5678 = vmatprep.subr.bf16.mxu0 %v5231
    %5679 = vmatpush1.bf16.msra.mxu0 %v5230
    %5680 = vmatprep.subr.bf16.mxu0 %v5225
    %5681 = vmatpush1.bf16.msra.mxu0 %v5224
    %5682 = vmatprep.subr.bf16.mxu0 %v5219
    %5683 = vmatpush1.bf16.msra.mxu0 %v5218
    %5684 = vmatprep.subr.bf16.mxu0 %v5213
    %5685 = vmatpush1.bf16.msra.mxu0 %v5212
    %5686 = vmatprep.subr.bf16.mxu0 %v5207
    %5687 = vmatpush1.bf16.msra.mxu0 %v5206
    %5688 = vmatprep.subr.bf16.mxu0 %v5297
    %5689 = vmatpush2.bf16.msra.mxu0 %v5296
    %5690 = vmatprep.subr.bf16.mxu0 %v5291
    %5691 = vmatpush2.bf16.msra.mxu0 %v5290
    %5692 = vmatprep.subr.bf16.mxu0 %v5285
    %5693 = vmatpush2.bf16.msra.mxu0 %v5284
    %5694 = vmatprep.subr.bf16.mxu0 %v5279
    %5695 = vmatpush2.bf16.msra.mxu0 %v5278
    %5696 = vmatprep.subr.bf16.mxu0 %v5273
    %5697 = vmatpush2.bf16.msra.mxu0 %v5272
    %5698 = vmatprep.subr.bf16.mxu0 %v5267
    %5699 = vmatpush2.bf16.msra.mxu0 %v5266
    %5700 = vmatprep.subr.bf16.mxu0 %v5261
    %5701 = vmatpush2.bf16.msra.mxu0 %v5260
    %5702 = vmatprep.subr.bf16.mxu0 %v5255
    %5703 = vmatpush2.bf16.msra.mxu0 %v5254
    %5704 = vmatprep.mubr.bf16.mxu0 %v4143
    %5705 = vmatmul.mubr.bf16.gmra.mxu0 %v4142
    %v5706 = vpop.f32.mrf.mxu0
    %v5707 = vadd.f32 %v5666, %v5706
    %v5708 = vpop.f32.mrf.mxu0
    %v5709 = vadd.f32 %v5668, %v5708
    %v5710 = vpop.f32.mrf.mxu0
    %v5711 = vpop.f32.mrf.mxu0
    %5712 = vdwg.mxu0
    %5713 = vmatprep.subr.bf16.mxu0 %v5059
    %5714 = vmatpush1.bf16.msra.mxu0 %v5058
    %5715 = vmatprep.subr.bf16.mxu0 %v5053
    %5716 = vmatpush1.bf16.msra.mxu0 %v5052
    %5717 = vmatprep.subr.bf16.mxu0 %v5047
    %5718 = vmatpush1.bf16.msra.mxu0 %v5046
    %5719 = vmatprep.subr.bf16.mxu0 %v5041
    %5720 = vmatpush1.bf16.msra.mxu0 %v5040
    %5721 = vmatprep.subr.bf16.mxu0 %v5035
    %5722 = vmatpush1.bf16.msra.mxu0 %v5034
    %5723 = vmatprep.subr.bf16.mxu0 %v5029
    %5724 = vmatpush1.bf16.msra.mxu0 %v5028
    %5725 = vmatprep.subr.bf16.mxu0 %v5023
    %5726 = vmatpush1.bf16.msra.mxu0 %v5022
    %5727 = vmatprep.subr.bf16.mxu0 %v5017
    %5728 = vmatpush1.bf16.msra.mxu0 %v5016
    %5729 = vmatprep.subr.bf16.mxu0 %v5107
    %5730 = vmatpush2.bf16.msra.mxu0 %v5106
    %5731 = vmatprep.subr.bf16.mxu0 %v5101
    %5732 = vmatpush2.bf16.msra.mxu0 %v5100
    %5733 = vmatprep.subr.bf16.mxu0 %v5095
    %5734 = vmatpush2.bf16.msra.mxu0 %v5094
    %5735 = vmatprep.subr.bf16.mxu0 %v5089
    %5736 = vmatpush2.bf16.msra.mxu0 %v5088
    %5737 = vmatprep.subr.bf16.mxu0 %v5083
    %5738 = vmatpush2.bf16.msra.mxu0 %v5082
    %5739 = vmatprep.subr.bf16.mxu0 %v5077
    %5740 = vmatpush2.bf16.msra.mxu0 %v5076
    %5741 = vmatprep.subr.bf16.mxu0 %v5071
    %5742 = vmatpush2.bf16.msra.mxu0 %v5070
    %5743 = vmatprep.subr.bf16.mxu0 %v5065
    %5744 = vmatpush2.bf16.msra.mxu0 %v5064
    %5745 = vmatprep.mubr.bf16.mxu0 %v4139
    %5746 = vmatmul.mubr.bf16.gmra.mxu0 %v4138
    %v5747 = vpop.f32.mrf.mxu0
    %v5748 = vadd.f32 0.0, %v5747
    %v5749 = vpop.f32.mrf.mxu0
    %v5750 = vadd.f32 0.0, %v5749
    %v5751 = vpop.f32.mrf.mxu0
    %v5752 = vpop.f32.mrf.mxu0
    %5753 = vdwg.mxu0
    %5754 = vmatprep.subr.bf16.mxu0 %v5155
    %5755 = vmatpush1.bf16.msra.mxu0 %v5154
    %5756 = vmatprep.subr.bf16.mxu0 %v5149
    %5757 = vmatpush1.bf16.msra.mxu0 %v5148
    %5758 = vmatprep.subr.bf16.mxu0 %v5143
    %5759 = vmatpush1.bf16.msra.mxu0 %v5142
    %5760 = vmatprep.subr.bf16.mxu0 %v5137
    %5761 = vmatpush1.bf16.msra.mxu0 %v5136
    %5762 = vmatprep.subr.bf16.mxu0 %v5131
    %5763 = vmatpush1.bf16.msra.mxu0 %v5130
    %5764 = vmatprep.subr.bf16.mxu0 %v5125
    %5765 = vmatpush1.bf16.msra.mxu0 %v5124
    %5766 = vmatprep.subr.bf16.mxu0 %v5119
    %5767 = vmatpush1.bf16.msra.mxu0 %v5118
    %5768 = vmatprep.subr.bf16.mxu0 %v5113
    %5769 = vmatpush1.bf16.msra.mxu0 %v5112
    %5770 = vmatprep.subr.bf16.mxu0 %v5203
    %5771 = vmatpush2.bf16.msra.mxu0 %v5202
    %5772 = vmatprep.subr.bf16.mxu0 %v5197
    %5773 = vmatpush2.bf16.msra.mxu0 %v5196
    %5774 = vmatprep.subr.bf16.mxu0 %v5191
    %5775 = vmatpush2.bf16.msra.mxu0 %v5190
    %5776 = vmatprep.subr.bf16.mxu0 %v5185
    %5777 = vmatpush2.bf16.msra.mxu0 %v5184
    %5778 = vmatprep.subr.bf16.mxu0 %v5179
    %5779 = vmatpush2.bf16.msra.mxu0 %v5178
    %5780 = vmatprep.subr.bf16.mxu0 %v5173
    %5781 = vmatpush2.bf16.msra.mxu0 %v5172
    %5782 = vmatprep.subr.bf16.mxu0 %v5167
    %5783 = vmatpush2.bf16.msra.mxu0 %v5166
    %5784 = vmatprep.subr.bf16.mxu0 %v5161
    %5785 = vmatpush2.bf16.msra.mxu0 %v5160
    %5786 = vmatprep.mubr.bf16.mxu0 %v4141
    %5787 = vmatmul.mubr.bf16.gmra.mxu0 %v4140
    %v5788 = vpop.f32.mrf.mxu0
    %v5789 = vadd.f32 %v5748, %v5788
    %v5790 = vpop.f32.mrf.mxu0
    %v5791 = vadd.f32 %v5750, %v5790
    %v5792 = vpop.f32.mrf.mxu0
    %v5793 = vpop.f32.mrf.mxu0
    %5794 = vdwg.mxu0
    %5795 = vmatprep.subr.bf16.mxu0 %v5251
    %5796 = vmatpush1.bf16.msra.mxu0 %v5250
    %5797 = vmatprep.subr.bf16.mxu0 %v5245
    %5798 = vmatpush1.bf16.msra.mxu0 %v5244
    %5799 = vmatprep.subr.bf16.mxu0 %v5239
    %5800 = vmatpush1.bf16.msra.mxu0 %v5238
    %5801 = vmatprep.subr.bf16.mxu0 %v5233
    %5802 = vmatpush1.bf16.msra.mxu0 %v5232
    %5803 = vmatprep.subr.bf16.mxu0 %v5227
    %5804 = vmatpush1.bf16.msra.mxu0 %v5226
    %5805 = vmatprep.subr.bf16.mxu0 %v5221
    %5806 = vmatpush1.bf16.msra.mxu0 %v5220
    %5807 = vmatprep.subr.bf16.mxu0 %v5215
    %5808 = vmatpush1.bf16.msra.mxu0 %v5214
    %5809 = vmatprep.subr.bf16.mxu0 %v5209
    %5810 = vmatpush1.bf16.msra.mxu0 %v5208
    %5811 = vmatprep.subr.bf16.mxu0 %v5299
    %5812 = vmatpush2.bf16.msra.mxu0 %v5298
    %5813 = vmatprep.subr.bf16.mxu0 %v5293
    %5814 = vmatpush2.bf16.msra.mxu0 %v5292
    %5815 = vmatprep.subr.bf16.mxu0 %v5287
    %5816 = vmatpush2.bf16.msra.mxu0 %v5286
    %5817 = vmatprep.subr.bf16.mxu0 %v5281
    %5818 = vmatpush2.bf16.msra.mxu0 %v5280
    %5819 = vmatprep.subr.bf16.mxu0 %v5275
    %5820 = vmatpush2.bf16.msra.mxu0 %v5274
    %5821 = vmatprep.subr.bf16.mxu0 %v5269
    %5822 = vmatpush2.bf16.msra.mxu0 %v5268
    %5823 = vmatprep.subr.bf16.mxu0 %v5263
    %5824 = vmatpush2.bf16.msra.mxu0 %v5262
    %5825 = vmatprep.subr.bf16.mxu0 %v5257
    %5826 = vmatpush2.bf16.msra.mxu0 %v5256
    %5827 = vmatprep.mubr.bf16.mxu0 %v4143
    %5828 = vmatmul.mubr.bf16.gmra.mxu0 %v4142
    %v5829 = vpop.f32.mrf.mxu0
    %v5830 = vadd.f32 %v5789, %v5829
    %v5831 = vpop.f32.mrf.mxu0
    %v5832 = vadd.f32 %v5791, %v5831
    %v5833 = vpop.f32.mrf.mxu0
    %v5834 = vpop.f32.mrf.mxu0
    %5835 = vdwg.mxu0
    %5836 = vmatprep.subr.bf16.mxu0 %v5061
    %5837 = vmatpush1.bf16.msra.mxu0 %v5060
    %5838 = vmatprep.subr.bf16.mxu0 %v5055
    %5839 = vmatpush1.bf16.msra.mxu0 %v5054
    %5840 = vmatprep.subr.bf16.mxu0 %v5049
    %5841 = vmatpush1.bf16.msra.mxu0 %v5048
    %5842 = vmatprep.subr.bf16.mxu0 %v5043
    %5843 = vmatpush1.bf16.msra.mxu0 %v5042
    %5844 = vmatprep.subr.bf16.mxu0 %v5037
    %5845 = vmatpush1.bf16.msra.mxu0 %v5036
    %5846 = vmatprep.subr.bf16.mxu0 %v5031
    %5847 = vmatpush1.bf16.msra.mxu0 %v5030
    %5848 = vmatprep.subr.bf16.mxu0 %v5025
    %5849 = vmatpush1.bf16.msra.mxu0 %v5024
    %5850 = vmatprep.subr.bf16.mxu0 %v5019
    %5851 = vmatpush1.bf16.msra.mxu0 %v5018
    %5852 = vmatprep.subr.bf16.mxu0 %v5109
    %5853 = vmatpush2.bf16.msra.mxu0 %v5108
    %5854 = vmatprep.subr.bf16.mxu0 %v5103
    %5855 = vmatpush2.bf16.msra.mxu0 %v5102
    %5856 = vmatprep.subr.bf16.mxu0 %v5097
    %5857 = vmatpush2.bf16.msra.mxu0 %v5096
    %5858 = vmatprep.subr.bf16.mxu0 %v5091
    %5859 = vmatpush2.bf16.msra.mxu0 %v5090
    %5860 = vmatprep.subr.bf16.mxu0 %v5085
    %5861 = vmatpush2.bf16.msra.mxu0 %v5084
    %5862 = vmatprep.subr.bf16.mxu0 %v5079
    %5863 = vmatpush2.bf16.msra.mxu0 %v5078
    %5864 = vmatprep.subr.bf16.mxu0 %v5073
    %5865 = vmatpush2.bf16.msra.mxu0 %v5072
    %5866 = vmatprep.subr.bf16.mxu0 %v5067
    %5867 = vmatpush2.bf16.msra.mxu0 %v5066
    %5868 = vmatprep.mubr.bf16.mxu0 %v4139
    %5869 = vmatmul.mubr.bf16.gmra.mxu0 %v4138
    %v5870 = vpop.f32.mrf.mxu0
    %v5871 = vadd.f32 0.0, %v5870
    %v5872 = vpop.f32.mrf.mxu0
    %v5873 = vadd.f32 0.0, %v5872
    %v5874 = vpop.f32.mrf.mxu0
    %v5875 = vpop.f32.mrf.mxu0
    %5876 = vdwg.mxu0
    %5877 = vmatprep.subr.bf16.mxu0 %v5157
    %5878 = vmatpush1.bf16.msra.mxu0 %v5156
    %5879 = vmatprep.subr.bf16.mxu0 %v5151
    %5880 = vmatpush1.bf16.msra.mxu0 %v5150
    %5881 = vmatprep.subr.bf16.mxu0 %v5145
    %5882 = vmatpush1.bf16.msra.mxu0 %v5144
    %5883 = vmatprep.subr.bf16.mxu0 %v5139
    %5884 = vmatpush1.bf16.msra.mxu0 %v5138
    %5885 = vmatprep.subr.bf16.mxu0 %v5133
    %5886 = vmatpush1.bf16.msra.mxu0 %v5132
    %5887 = vmatprep.subr.bf16.mxu0 %v5127
    %5888 = vmatpush1.bf16.msra.mxu0 %v5126
    %5889 = vmatprep.subr.bf16.mxu0 %v5121
    %5890 = vmatpush1.bf16.msra.mxu0 %v5120
    %5891 = vmatprep.subr.bf16.mxu0 %v5115
    %5892 = vmatpush1.bf16.msra.mxu0 %v5114
    %5893 = vmatprep.subr.bf16.mxu0 %v5205
    %5894 = vmatpush2.bf16.msra.mxu0 %v5204
    %5895 = vmatprep.subr.bf16.mxu0 %v5199
    %5896 = vmatpush2.bf16.msra.mxu0 %v5198
    %5897 = vmatprep.subr.bf16.mxu0 %v5193
    %5898 = vmatpush2.bf16.msra.mxu0 %v5192
    %5899 = vmatprep.subr.bf16.mxu0 %v5187
    %5900 = vmatpush2.bf16.msra.mxu0 %v5186
    %5901 = vmatprep.subr.bf16.mxu0 %v5181
    %5902 = vmatpush2.bf16.msra.mxu0 %v5180
    %5903 = vmatprep.subr.bf16.mxu0 %v5175
    %5904 = vmatpush2.bf16.msra.mxu0 %v5174
    %5905 = vmatprep.subr.bf16.mxu0 %v5169
    %5906 = vmatpush2.bf16.msra.mxu0 %v5168
    %5907 = vmatprep.subr.bf16.mxu0 %v5163
    %5908 = vmatpush2.bf16.msra.mxu0 %v5162
    %5909 = vmatprep.mubr.bf16.mxu0 %v4141
    %5910 = vmatmul.mubr.bf16.gmra.mxu0 %v4140
    %v5911 = vpop.f32.mrf.mxu0
    %v5912 = vadd.f32 %v5871, %v5911
    %v5913 = vpop.f32.mrf.mxu0
    %v5914 = vadd.f32 %v5873, %v5913
    %v5915 = vpop.f32.mrf.mxu0
    %v5916 = vpop.f32.mrf.mxu0
    %5917 = vdwg.mxu0
    %5918 = vmatprep.subr.bf16.mxu0 %v5253
    %5919 = vmatpush1.bf16.msra.mxu0 %v5252
    %5920 = vmatprep.subr.bf16.mxu0 %v5247
    %5921 = vmatpush1.bf16.msra.mxu0 %v5246
    %5922 = vmatprep.subr.bf16.mxu0 %v5241
    %5923 = vmatpush1.bf16.msra.mxu0 %v5240
    %5924 = vmatprep.subr.bf16.mxu0 %v5235
    %5925 = vmatpush1.bf16.msra.mxu0 %v5234
    %5926 = vmatprep.subr.bf16.mxu0 %v5229
    %5927 = vmatpush1.bf16.msra.mxu0 %v5228
    %5928 = vmatprep.subr.bf16.mxu0 %v5223
    %5929 = vmatpush1.bf16.msra.mxu0 %v5222
    %5930 = vmatprep.subr.bf16.mxu0 %v5217
    %5931 = vmatpush1.bf16.msra.mxu0 %v5216
    %5932 = vmatprep.subr.bf16.mxu0 %v5211
    %5933 = vmatpush1.bf16.msra.mxu0 %v5210
    %5934 = vmatprep.subr.bf16.mxu0 %v5301
    %5935 = vmatpush2.bf16.msra.mxu0 %v5300
    %5936 = vmatprep.subr.bf16.mxu0 %v5295
    %5937 = vmatpush2.bf16.msra.mxu0 %v5294
    %5938 = vmatprep.subr.bf16.mxu0 %v5289
    %5939 = vmatpush2.bf16.msra.mxu0 %v5288
    %5940 = vmatprep.subr.bf16.mxu0 %v5283
    %5941 = vmatpush2.bf16.msra.mxu0 %v5282
    %5942 = vmatprep.subr.bf16.mxu0 %v5277
    %5943 = vmatpush2.bf16.msra.mxu0 %v5276
    %5944 = vmatprep.subr.bf16.mxu0 %v5271
    %5945 = vmatpush2.bf16.msra.mxu0 %v5270
    %5946 = vmatprep.subr.bf16.mxu0 %v5265
    %5947 = vmatpush2.bf16.msra.mxu0 %v5264
    %5948 = vmatprep.subr.bf16.mxu0 %v5259
    %5949 = vmatpush2.bf16.msra.mxu0 %v5258
    %5950 = vmatprep.mubr.bf16.mxu0 %v4143
    %5951 = vmatmul.mubr.bf16.gmra.mxu0 %v4142
    %v5952 = vpop.f32.mrf.mxu0
    %v5953 = vadd.f32 %v5912, %v5952
    %v5954 = vpop.f32.mrf.mxu0
    %v5955 = vadd.f32 %v5914, %v5954
    %v5956 = vpop.f32.mrf.mxu0
    %v5957 = vpop.f32.mrf.mxu0
    %5958 = vdwg.mxu0
    %5959 = vst [vmem:[#allocation8] sm:$0xff] %v5707
    %5960 = vst [vmem:[#allocation8 + $0x8] sm:$0xff] %v5709
    %5961 = vst [vmem:[#allocation8 + $0x10] sm:$0xff] %v5830
    %5962 = vst [vmem:[#allocation8 + $0x18] sm:$0xff] %v5832
    %5963 = vst [vmem:[#allocation8 + $0x20] sm:$0xff] %v5953
    %5964 = vst [vmem:[#allocation8 + $0x28] sm:$0xff] %v5955
    // Predicated region
    $region30: #{tpu_custom_call.1} parent=1 // pred_check
      _
    $region31: #{tpu_custom_call.1} parent=1 // pred_check_branch
      %5966 = sbr.rel (0) target = $region33
    $region32: #{tpu_custom_call.1} parent=1 // pred_region
      %s5968 = ssub.s32 768, 768
      %5969 = vsyncadd [#allocation4], %s5968
      %s5971 = sshll.u32 [#allocation8], 4
      %s5972 = int_to_ptr.vmem [resolvable:$true] %s5971
      %5974 = dma.vmem_to_hbm [thread:$0]  %s5972, 768, %s4, [#allocation4]
    $region33: #{tpu_custom_call.1} parent=1 // pred_fallthru
      _
    // Predicated region
    $region34: #{tpu_custom_call.1} parent=1 // pred_check
      _
    $region35: #{tpu_custom_call.1} parent=1 // pred_check_branch
      %5976 = sbr.rel (0) target = $region37
    $region36: #{tpu_custom_call.1} parent=1 // pred_region
      %5977 = dma.done [#allocation4], 768
    $region37: #{tpu_custom_call.1} parent=1 // pred_fallthru
      _
    %5978 = vsyncpa [#allocation3], 1
    %5979 = vsyncpa [#allocation6], 1
    %5980 = vsyncpa [#allocation4], 1

</llo_original>
